<compile_context>
chip_gen: v5e
topology: v5e:2x2
jax: 0.10.0
libtpu: 0.0.40
codegen_flags: <defaults>
</compile_context>

<pallas_src>
import functools

import numpy as np
import jax
import jax.numpy as jnp
from jax.experimental import pallas as pl
from jax.experimental.pallas import tpu as pltpu

LAYER1 = 128      # conv out channels
LAYER2 = 128      # fc hidden
KSIZE = 3
NBRANCH = 6
OUT_W = 128       # lane-dense output slab width
CHUNK = 1536      # fc reduction chunk (6144 / 4), multiple of 128


def actor_critic_kernel(xp_ref, wa_ref, wc_ref, ba_ref, bc_ref,
                        fcw_ref, fcb_ref, wout_ref, bout_ref,
                        out_ref, *, action_dim):
    """Fused actor+critic forward for one row block.

    xp_ref  : (K, RB, 6144) bf16  im2col'd input, scalar broadcast over the
                                  128 channel lanes; col = (br*T + t)*128 + c
    wa/wc   : (K, 1, 6144)  f32   conv weights in the same column order
    ba/bc   : (1, 6144)     f32   conv biases in the same column order
    fcw_ref : (6144, 128)   bf16  shared fc weight, rows permuted to match
    fcb_ref : (1, 128)      f32
    wout    : (128, 128)    bf16  cols [0:A) = actor head, col A = critic head
    bout    : (1, 128)      f32
    out_ref : (2, RB, 128)  f32   [0] actor rows, [1] critic rows
    """
    rb = out_ref.shape[1]
    k_in = fcw_ref.shape[0]
    n_fc = fcw_ref.shape[1]

    def head_fc(w_ref, b_ref):
        # Conv (VPU, f32) fused with the fc matmul (MXU, bf16) in K-chunks:
        # the ReLU'd conv chunk is consumed immediately -- no slab scratch.
        acc = jnp.zeros((rb, n_fc), jnp.float32)
        for j in range(0, k_in, CHUNK):
            conv = b_ref[:, j:j + CHUNK]                       # (1, CHUNK) f32
            for k in range(KSIZE):
                xk = xp_ref[k, :, j:j + CHUNK].astype(jnp.float32)
                conv = conv + xk * w_ref[k, :, j:j + CHUNK]
            conv = jnp.maximum(conv, 0.0).astype(jnp.bfloat16)
            acc = acc + jnp.dot(conv, fcw_ref[j:j + CHUNK, :],
                                preferred_element_type=jnp.float32)
        return jnp.maximum(acc + fcb_ref[...], 0.0)            # (RB, 128) f32

    fc_a = head_fc(wa_ref, ba_ref)
    fc_c = head_fc(wc_ref, bc_ref)

    # Fused actor/critic output heads, lane-dense 8-aligned stores.
    out_a = jnp.dot(fc_a.astype(jnp.bfloat16), wout_ref[...],
                    preferred_element_type=jnp.float32) + bout_ref[...]
    out_c = jnp.dot(fc_c.astype(jnp.bfloat16), wout_ref[...],
                    preferred_element_type=jnp.float32) + bout_ref[...]

    col = jax.lax.broadcasted_iota(jnp.int32, out_a.shape, 1)
    out_ref[0] = jnp.where(col < action_dim, jax.nn.sigmoid(out_a), out_a)
    out_ref[1] = out_c


def prepare_actor_critic_params(params, action_dim):
    """One-time (init) weight layout work: nothing here runs per step."""
    wA, bA, wC, bC, fcW, fcb, aW, ab, vW, vb = params
    T = fcW.shape[1] // (NBRANCH * LAYER1)
    K_IN = NBRANCH * LAYER1 * T

    def flat_conv_w(w):   # (6, 128, 3) -> (K, 1, 6144) matching xp column order
        wt = jnp.transpose(w, (2, 0, 1))                                    # (K,6,128)
        wt = jnp.broadcast_to(wt[:, :, None, :], (KSIZE, NBRANCH, T, LAYER1))
        return wt.reshape(KSIZE, 1, K_IN).astype(jnp.float32)

    def flat_conv_b(b):   # (6, 128) -> (1, 6144)
        bb = jnp.broadcast_to(b[:, None, :], (NBRANCH, T, LAYER1))
        return bb.reshape(1, K_IN).astype(jnp.float32)

    # fc.weight: (128, 6144) with PyTorch column order (branch, channel, t)
    #   -> (6144, 128) with row order (branch, t, channel) [matches xp/conv]
    fcw_k = fcW.reshape(LAYER2, NBRANCH, LAYER1, T).transpose(1, 3, 2, 0)
    fcw_k = fcw_k.reshape(K_IN, LAYER2).astype(jnp.bfloat16)
    fcb_k = fcb.reshape(1, LAYER2).astype(jnp.float32)

    # Combined output head: cols [0:A) = actor_output, col A = critic_output.
    wout = jnp.zeros((LAYER2, OUT_W), jnp.float32)
    wout = wout.at[:, :action_dim].set(aW.T).at[:, action_dim:action_dim + 1].set(vW.T)
    bout = jnp.zeros((1, OUT_W), jnp.float32)
    bout = bout.at[0, :action_dim].set(ab).at[0, action_dim].set(vb[0])

    return (flat_conv_w(wA), flat_conv_w(wC), flat_conv_b(bA), flat_conv_b(bC),
            fcw_k, fcb_k, wout.astype(jnp.bfloat16), bout)


def actor_critic_forward(x, prep, action_dim, exploration_param=0.05,
                         row_block=None):
    """Replicates ActorCritic.forward (random_action=False path).

    Returns (action, action_logprobs, value, action_mean)."""
    wa_f, wc_f, ba_f, bc_f, fcw_k, fcb_k, wout, bout = prep
    K_IN = fcw_k.shape[0]
    T = K_IN // (NBRANCH * LAYER1)
    B, ch, L = x.shape
    assert ch == NBRANCH and L - KSIZE + 1 == T

    # --- per-step glue: im2col + channel-lane broadcast (bf16 to halve DMA) --
    # xp[k, b, (br*T + t)*128 + c] = x[b, br, t + k]
    x = x.astype(jnp.float32)
    patches = jnp.stack([x[:, :, k:k + T] for k in range(KSIZE)], axis=0)   # (K,B,6,T)
    xp = jnp.broadcast_to(patches[..., None],
                          (KSIZE, B, NBRANCH, T, LAYER1)).reshape(KSIZE, B, K_IN)
    xp = xp.astype(jnp.bfloat16)

    # Pad batch to a multiple of 8 so every row block is sublane-aligned.
    B_pad = max(8, ((B + 7) // 8) * 8)
    if B_pad > B:
        xp = jnp.pad(xp, ((0, 0), (0, B_pad - B), (0, 0)))

    rb = row_block or (B_pad if B_pad <= 64 else 8)
    assert rb % 8 == 0 and B_pad % rb == 0
    grid_rows = B_pad // rb

    def full(shape):
        return pl.BlockSpec(shape, lambda i: (0,) * len(shape))

    grid_spec = pltpu.PrefetchScalarGridSpec(
        num_scalar_prefetch=0,
        grid=(grid_rows,),
        in_specs=[
            pl.BlockSpec((KSIZE, rb, K_IN), lambda i: (0, i, 0)),   # xp row block
            full(wa_f.shape), full(wc_f.shape),
            full(ba_f.shape), full(bc_f.shape),
            full(fcw_k.shape), full(fcb_k.shape),
            full(wout.shape), full(bout.shape),
        ],
        out_specs=pl.BlockSpec((2, rb, OUT_W), lambda i: (0, i, 0)),
    )

    out = pl.pallas_call(
        functools.partial(actor_critic_kernel, action_dim=action_dim),
        out_shape=jax.ShapeDtypeStruct((2, B_pad, OUT_W), jnp.float32),
        grid_spec=grid_spec,
        compiler_params=pltpu.CompilerParams(
            dimension_semantics=("parallel",)),
    )(xp, wa_f, wc_f, ba_f, bc_f, fcw_k, fcb_k, wout, bout)

    mean = out[0, :B, :action_dim]
    value = out[1, :B, action_dim:action_dim + 1]

    # random_action == False  =>  action == action_mean; the log-prob of a
    # diagonal N(mean, var*I) at its own mean is the closed-form constant.
    # TODO(synk): MultivariateNormal .sample() path (random_action=True) not implemented.
    var = exploration_param ** 2
    logp_const = -0.5 * action_dim * (np.log(2.0 * np.pi) + np.log(var))
    action_logprobs = jnp.full((B,), logp_const, dtype=jnp.float32)
    return mean, action_logprobs, value, mean


# ------------------------- reference (plain JAX) -------------------------
def ref_forward(x, params):
    wA, bA, wC, bC, fcW, fcb, aW, ab, vW, vb = params
    B, _, L = x.shape
    T = L - 2
    hi = jax.lax.Precision.HIGHEST

    def head(cw, cb):
        feats = []
        for br in range(NBRANCH):
            xc = x[:, br, :]
            patches = jnp.stack([xc[:, k:k + T] for k in range(KSIZE)], axis=1)   # (B,3,T)
            conv = jnp.einsum('bkt,ck->bct', patches, cw[br], precision=hi)
            conv = jnp.maximum(conv + cb[br][None, :, None], 0.0)                 # (B,128,T)
            feats.append(conv.reshape(B, -1))
        merge = jnp.concatenate(feats, axis=1)                                    # (B, 6144)
        return jnp.maximum(jnp.dot(merge, fcW.T, precision=hi) + fcb, 0.0)

    mean = jax.nn.sigmoid(jnp.dot(head(wA, bA), aW.T, precision=hi) + ab)
    value = jnp.dot(head(wC, bC), vW.T, precision=hi) + vb
    return mean, value


if __name__ == "__main__":
    B = 2
    state_length = 10          # forced by numFcInput = 6144
    action_dim = 4
    exploration_param = 0.05

    key = jax.random.PRNGKey(0)
    kx, *ks = jax.random.split(key, 11)

    def uinit(k, shape, fan_in):
        bound = 1.0 / np.sqrt(fan_in)
        return jax.random.uniform(k, shape, jnp.float32, -bound, bound)

    params = (
        uinit(ks[0], (NBRANCH, LAYER1, KSIZE), KSIZE),          # actor conv weights
        uinit(ks[1], (NBRANCH, LAYER1), KSIZE),                 # actor conv biases
        uinit(ks[2], (NBRANCH, LAYER1, KSIZE), KSIZE),          # critic conv weights
        uinit(ks[3], (NBRANCH, LAYER1), KSIZE),                 # critic conv biases
        uinit(ks[4], (LAYER2, NBRANCH * LAYER1 * (state_length - 2)), 6144),  # fc weight
        uinit(ks[5], (LAYER2,), 6144),                          # fc bias
        uinit(ks[6], (action_dim, LAYER2), LAYER2),             # actor_output weight
        uinit(ks[7], (action_dim,), LAYER2),                    # actor_output bias
        uinit(ks[8], (1, LAYER2), LAYER2),                      # critic_output weight
        uinit(ks[9], (1,), LAYER2),                             # critic_output bias
    )

    x = jax.random.normal(kx, (B, NBRANCH, state_length), jnp.float32)

    # One-time layout work (hoisted out of the per-step path).
    prep = jax.block_until_ready(prepare_actor_critic_params(params, action_dim))

    fwd = jax.jit(lambda xx, pp: actor_critic_forward(
        xx, pp, action_dim, exploration_param))

    action, logp, value, mean = fwd(x, prep)
    jax.block_until_ready((action, logp, value, mean))

    mean_ref, value_ref = ref_forward(x, params)
    err_m = float(jnp.max(jnp.abs(mean - mean_ref)))
    err_v = float(jnp.max(jnp.abs(value - value_ref)))
    assert err_m < 5e-2 and err_v < 5e-2, (err_m, err_v)

    print("KERNEL_OK")
</pallas_src>

<mosaic_0001>
module attributes {stable_mosaic.version = 11 : i64} {
  func.func @actor_critic_kernel(%arg0: i32, %arg1: memref<3x8x6144xbf16, #tpu.memory_space<vmem>>, %arg2: memref<3x1x6144xf32, #tpu.memory_space<vmem>>, %arg3: memref<3x1x6144xf32, #tpu.memory_space<vmem>>, %arg4: memref<1x6144xf32, #tpu.memory_space<vmem>>, %arg5: memref<1x6144xf32, #tpu.memory_space<vmem>>, %arg6: memref<6144x128xbf16, #tpu.memory_space<vmem>>, %arg7: memref<1x128xf32, #tpu.memory_space<vmem>>, %arg8: memref<128x128xbf16, #tpu.memory_space<vmem>>, %arg9: memref<1x128xf32, #tpu.memory_space<vmem>>, %arg10: memref<2x8x128xf32, #tpu.memory_space<vmem>>) attributes {dimension_semantics = [#tpu.dimension_semantics<parallel>], iteration_bounds = array<i64: 1>, scalar_prefetch = 0 : i64, scratch_operands = 0 : i64, tpu.core_type = #tpu.core_type<tc>, window_params = [{transform_indices = @transform_0, window_bounds = array<i64: 3, 8, 6144>}, {pipeline_mode = #tpu.pipeline_mode<synchronous>, transform_indices = @transform_1, window_bounds = array<i64: 3, 1, 6144>}, {pipeline_mode = #tpu.pipeline_mode<synchronous>, transform_indices = @transform_2, window_bounds = array<i64: 3, 1, 6144>}, {pipeline_mode = #tpu.pipeline_mode<synchronous>, transform_indices = @transform_3, window_bounds = array<i64: 1, 6144>}, {pipeline_mode = #tpu.pipeline_mode<synchronous>, transform_indices = @transform_4, window_bounds = array<i64: 1, 6144>}, {pipeline_mode = #tpu.pipeline_mode<synchronous>, transform_indices = @transform_5, window_bounds = array<i64: 6144, 128>}, {pipeline_mode = #tpu.pipeline_mode<synchronous>, transform_indices = @transform_6, window_bounds = array<i64: 1, 128>}, {pipeline_mode = #tpu.pipeline_mode<synchronous>, transform_indices = @transform_7, window_bounds = array<i64: 128, 128>}, {pipeline_mode = #tpu.pipeline_mode<synchronous>, transform_indices = @transform_8, window_bounds = array<i64: 1, 128>}, {transform_indices = @transform_9, window_bounds = array<i64: 2, 8, 128>}]} {
    %cst = arith.constant 0.000000e+00 : f32
    %0 = vector.broadcast %cst : f32 to vector<8x128xf32>
    %c0 = arith.constant 0 : index
    %c0_0 = arith.constant 0 : index
    %1 = vector.load %arg4[%c0, %c0_0] : memref<1x6144xf32, #tpu.memory_space<vmem>>, vector<1x1536xf32>
    %c0_1 = arith.constant 0 : index
    %c0_2 = arith.constant 0 : index
    %c0_3 = arith.constant 0 : index
    %2 = vector.load %arg1[%c0_1, %c0_2, %c0_3] : memref<3x8x6144xbf16, #tpu.memory_space<vmem>>, vector<1x8x1536xbf16>
    %3 = vector.shape_cast %2 : vector<1x8x1536xbf16> to vector<8x1536xbf16>
    %4 = arith.extf %3 : vector<8x1536xbf16> to vector<8x1536xf32>
    %c0_4 = arith.constant 0 : index
    %c0_5 = arith.constant 0 : index
    %c0_6 = arith.constant 0 : index
    %5 = vector.load %arg2[%c0_4, %c0_5, %c0_6] : memref<3x1x6144xf32, #tpu.memory_space<vmem>>, vector<1x1x1536xf32>
    %6 = vector.shape_cast %5 : vector<1x1x1536xf32> to vector<1x1536xf32>
    %7 = vector.broadcast %6 : vector<1x1536xf32> to vector<8x1536xf32>
    %8 = arith.mulf %4, %7 : vector<8x1536xf32>
    %9 = vector.broadcast %1 : vector<1x1536xf32> to vector<8x1536xf32>
    %10 = arith.addf %9, %8 : vector<8x1536xf32>
    %c1 = arith.constant 1 : index
    %c0_7 = arith.constant 0 : index
    %c0_8 = arith.constant 0 : index
    %11 = vector.load %arg1[%c1, %c0_7, %c0_8] : memref<3x8x6144xbf16, #tpu.memory_space<vmem>>, vector<1x8x1536xbf16>
    %12 = vector.shape_cast %11 : vector<1x8x1536xbf16> to vector<8x1536xbf16>
    %13 = arith.extf %12 : vector<8x1536xbf16> to vector<8x1536xf32>
    %c1_9 = arith.constant 1 : index
    %c0_10 = arith.constant 0 : index
    %c0_11 = arith.constant 0 : index
    %14 = vector.load %arg2[%c1_9, %c0_10, %c0_11] : memref<3x1x6144xf32, #tpu.memory_space<vmem>>, vector<1x1x1536xf32>
    %15 = vector.shape_cast %14 : vector<1x1x1536xf32> to vector<1x1536xf32>
    %16 = vector.broadcast %15 : vector<1x1536xf32> to vector<8x1536xf32>
    %17 = arith.mulf %13, %16 : vector<8x1536xf32>
    %18 = arith.addf %10, %17 : vector<8x1536xf32>
    %c2 = arith.constant 2 : index
    %c0_12 = arith.constant 0 : index
    %c0_13 = arith.constant 0 : index
    %19 = vector.load %arg1[%c2, %c0_12, %c0_13] : memref<3x8x6144xbf16, #tpu.memory_space<vmem>>, vector<1x8x1536xbf16>
    %20 = vector.shape_cast %19 : vector<1x8x1536xbf16> to vector<8x1536xbf16>
    %21 = arith.extf %20 : vector<8x1536xbf16> to vector<8x1536xf32>
    %c2_14 = arith.constant 2 : index
    %c0_15 = arith.constant 0 : index
    %c0_16 = arith.constant 0 : index
    %22 = vector.load %arg2[%c2_14, %c0_15, %c0_16] : memref<3x1x6144xf32, #tpu.memory_space<vmem>>, vector<1x1x1536xf32>
    %23 = vector.shape_cast %22 : vector<1x1x1536xf32> to vector<1x1536xf32>
    %24 = vector.broadcast %23 : vector<1x1536xf32> to vector<8x1536xf32>
    %25 = arith.mulf %21, %24 : vector<8x1536xf32>
    %26 = arith.addf %18, %25 : vector<8x1536xf32>
    %cst_17 = arith.constant 0.000000e+00 : f32
    %27 = vector.broadcast %cst_17 : f32 to vector<8x1536xf32>
    %28 = arith.maximumf %26, %27 : vector<8x1536xf32>
    %29 = arith.truncf %28 : vector<8x1536xf32> to vector<8x1536xbf16>
    %c0_18 = arith.constant 0 : index
    %c0_19 = arith.constant 0 : index
    %30 = vector.load %arg6[%c0_18, %c0_19] : memref<6144x128xbf16, #tpu.memory_space<vmem>>, vector<1536x128xbf16>
    %cst_20 = arith.constant dense<0.000000e+00> : vector<8x128xf32>
    %31 = tpu.matmul %29, %30, %cst_20 {dimension_numbers = #tpu.dot_dimension_numbers<[1], [0], [0], [1], [0, 0, 1, 1], [], []>} : vector<8x1536xbf16>, vector<1536x128xbf16>, vector<8x128xf32> -> vector<8x128xf32>
    %32 = arith.addf %0, %31 : vector<8x128xf32>
    %c0_21 = arith.constant 0 : index
    %c1536 = arith.constant 1536 : index
    %33 = vector.load %arg4[%c0_21, %c1536] : memref<1x6144xf32, #tpu.memory_space<vmem>>, vector<1x1536xf32>
    %c0_22 = arith.constant 0 : index
    %c0_23 = arith.constant 0 : index
    %c1536_24 = arith.constant 1536 : index
    %34 = vector.load %arg1[%c0_22, %c0_23, %c1536_24] : memref<3x8x6144xbf16, #tpu.memory_space<vmem>>, vector<1x8x1536xbf16>
    %35 = vector.shape_cast %34 : vector<1x8x1536xbf16> to vector<8x1536xbf16>
    %36 = arith.extf %35 : vector<8x1536xbf16> to vector<8x1536xf32>
    %c0_25 = arith.constant 0 : index
    %c0_26 = arith.constant 0 : index
    %c1536_27 = arith.constant 1536 : index
    %37 = vector.load %arg2[%c0_25, %c0_26, %c1536_27] : memref<3x1x6144xf32, #tpu.memory_space<vmem>>, vector<1x1x1536xf32>
    %38 = vector.shape_cast %37 : vector<1x1x1536xf32> to vector<1x1536xf32>
    %39 = vector.broadcast %38 : vector<1x1536xf32> to vector<8x1536xf32>
    %40 = arith.mulf %36, %39 : vector<8x1536xf32>
    %41 = vector.broadcast %33 : vector<1x1536xf32> to vector<8x1536xf32>
    %42 = arith.addf %41, %40 : vector<8x1536xf32>
    %c1_28 = arith.constant 1 : index
    %c0_29 = arith.constant 0 : index
    %c1536_30 = arith.constant 1536 : index
    %43 = vector.load %arg1[%c1_28, %c0_29, %c1536_30] : memref<3x8x6144xbf16, #tpu.memory_space<vmem>>, vector<1x8x1536xbf16>
    %44 = vector.shape_cast %43 : vector<1x8x1536xbf16> to vector<8x1536xbf16>
    %45 = arith.extf %44 : vector<8x1536xbf16> to vector<8x1536xf32>
    %c1_31 = arith.constant 1 : index
    %c0_32 = arith.constant 0 : index
    %c1536_33 = arith.constant 1536 : index
    %46 = vector.load %arg2[%c1_31, %c0_32, %c1536_33] : memref<3x1x6144xf32, #tpu.memory_space<vmem>>, vector<1x1x1536xf32>
    %47 = vector.shape_cast %46 : vector<1x1x1536xf32> to vector<1x1536xf32>
    %48 = vector.broadcast %47 : vector<1x1536xf32> to vector<8x1536xf32>
    %49 = arith.mulf %45, %48 : vector<8x1536xf32>
    %50 = arith.addf %42, %49 : vector<8x1536xf32>
    %c2_34 = arith.constant 2 : index
    %c0_35 = arith.constant 0 : index
    %c1536_36 = arith.constant 1536 : index
    %51 = vector.load %arg1[%c2_34, %c0_35, %c1536_36] : memref<3x8x6144xbf16, #tpu.memory_space<vmem>>, vector<1x8x1536xbf16>
    %52 = vector.shape_cast %51 : vector<1x8x1536xbf16> to vector<8x1536xbf16>
    %53 = arith.extf %52 : vector<8x1536xbf16> to vector<8x1536xf32>
    %c2_37 = arith.constant 2 : index
    %c0_38 = arith.constant 0 : index
    %c1536_39 = arith.constant 1536 : index
    %54 = vector.load %arg2[%c2_37, %c0_38, %c1536_39] : memref<3x1x6144xf32, #tpu.memory_space<vmem>>, vector<1x1x1536xf32>
    %55 = vector.shape_cast %54 : vector<1x1x1536xf32> to vector<1x1536xf32>
    %56 = vector.broadcast %55 : vector<1x1536xf32> to vector<8x1536xf32>
    %57 = arith.mulf %53, %56 : vector<8x1536xf32>
    %58 = arith.addf %50, %57 : vector<8x1536xf32>
    %cst_40 = arith.constant 0.000000e+00 : f32
    %59 = vector.broadcast %cst_40 : f32 to vector<8x1536xf32>
    %60 = arith.maximumf %58, %59 : vector<8x1536xf32>
    %61 = arith.truncf %60 : vector<8x1536xf32> to vector<8x1536xbf16>
    %c1536_41 = arith.constant 1536 : index
    %c0_42 = arith.constant 0 : index
    %62 = vector.load %arg6[%c1536_41, %c0_42] : memref<6144x128xbf16, #tpu.memory_space<vmem>>, vector<1536x128xbf16>
    %cst_43 = arith.constant dense<0.000000e+00> : vector<8x128xf32>
    %63 = tpu.matmul %61, %62, %cst_43 {dimension_numbers = #tpu.dot_dimension_numbers<[1], [0], [0], [1], [0, 0, 1, 1], [], []>} : vector<8x1536xbf16>, vector<1536x128xbf16>, vector<8x128xf32> -> vector<8x128xf32>
    %64 = arith.addf %32, %63 : vector<8x128xf32>
    %c0_44 = arith.constant 0 : index
    %c3072 = arith.constant 3072 : index
    %65 = vector.load %arg4[%c0_44, %c3072] : memref<1x6144xf32, #tpu.memory_space<vmem>>, vector<1x1536xf32>
    %c0_45 = arith.constant 0 : index
    %c0_46 = arith.constant 0 : index
    %c3072_47 = arith.constant 3072 : index
    %66 = vector.load %arg1[%c0_45, %c0_46, %c3072_47] : memref<3x8x6144xbf16, #tpu.memory_space<vmem>>, vector<1x8x1536xbf16>
    %67 = vector.shape_cast %66 : vector<1x8x1536xbf16> to vector<8x1536xbf16>
    %68 = arith.extf %67 : vector<8x1536xbf16> to vector<8x1536xf32>
    %c0_48 = arith.constant 0 : index
    %c0_49 = arith.constant 0 : index
    %c3072_50 = arith.constant 3072 : index
    %69 = vector.load %arg2[%c0_48, %c0_49, %c3072_50] : memref<3x1x6144xf32, #tpu.memory_space<vmem>>, vector<1x1x1536xf32>
    %70 = vector.shape_cast %69 : vector<1x1x1536xf32> to vector<1x1536xf32>
    %71 = vector.broadcast %70 : vector<1x1536xf32> to vector<8x1536xf32>
    %72 = arith.mulf %68, %71 : vector<8x1536xf32>
    %73 = vector.broadcast %65 : vector<1x1536xf32> to vector<8x1536xf32>
    %74 = arith.addf %73, %72 : vector<8x1536xf32>
    %c1_51 = arith.constant 1 : index
    %c0_52 = arith.constant 0 : index
    %c3072_53 = arith.constant 3072 : index
    %75 = vector.load %arg1[%c1_51, %c0_52, %c3072_53] : memref<3x8x6144xbf16, #tpu.memory_space<vmem>>, vector<1x8x1536xbf16>
    %76 = vector.shape_cast %75 : vector<1x8x1536xbf16> to vector<8x1536xbf16>
    %77 = arith.extf %76 : vector<8x1536xbf16> to vector<8x1536xf32>
    %c1_54 = arith.constant 1 : index
    %c0_55 = arith.constant 0 : index
    %c3072_56 = arith.constant 3072 : index
    %78 = vector.load %arg2[%c1_54, %c0_55, %c3072_56] : memref<3x1x6144xf32, #tpu.memory_space<vmem>>, vector<1x1x1536xf32>
    %79 = vector.shape_cast %78 : vector<1x1x1536xf32> to vector<1x1536xf32>
    %80 = vector.broadcast %79 : vector<1x1536xf32> to vector<8x1536xf32>
    %81 = arith.mulf %77, %80 : vector<8x1536xf32>
    %82 = arith.addf %74, %81 : vector<8x1536xf32>
    %c2_57 = arith.constant 2 : index
    %c0_58 = arith.constant 0 : index
    %c3072_59 = arith.constant 3072 : index
    %83 = vector.load %arg1[%c2_57, %c0_58, %c3072_59] : memref<3x8x6144xbf16, #tpu.memory_space<vmem>>, vector<1x8x1536xbf16>
    %84 = vector.shape_cast %83 : vector<1x8x1536xbf16> to vector<8x1536xbf16>
    %85 = arith.extf %84 : vector<8x1536xbf16> to vector<8x1536xf32>
    %c2_60 = arith.constant 2 : index
    %c0_61 = arith.constant 0 : index
    %c3072_62 = arith.constant 3072 : index
    %86 = vector.load %arg2[%c2_60, %c0_61, %c3072_62] : memref<3x1x6144xf32, #tpu.memory_space<vmem>>, vector<1x1x1536xf32>
    %87 = vector.shape_cast %86 : vector<1x1x1536xf32> to vector<1x1536xf32>
    %88 = vector.broadcast %87 : vector<1x1536xf32> to vector<8x1536xf32>
    %89 = arith.mulf %85, %88 : vector<8x1536xf32>
    %90 = arith.addf %82, %89 : vector<8x1536xf32>
    %cst_63 = arith.constant 0.000000e+00 : f32
    %91 = vector.broadcast %cst_63 : f32 to vector<8x1536xf32>
    %92 = arith.maximumf %90, %91 : vector<8x1536xf32>
    %93 = arith.truncf %92 : vector<8x1536xf32> to vector<8x1536xbf16>
    %c3072_64 = arith.constant 3072 : index
    %c0_65 = arith.constant 0 : index
    %94 = vector.load %arg6[%c3072_64, %c0_65] : memref<6144x128xbf16, #tpu.memory_space<vmem>>, vector<1536x128xbf16>
    %cst_66 = arith.constant dense<0.000000e+00> : vector<8x128xf32>
    %95 = tpu.matmul %93, %94, %cst_66 {dimension_numbers = #tpu.dot_dimension_numbers<[1], [0], [0], [1], [0, 0, 1, 1], [], []>} : vector<8x1536xbf16>, vector<1536x128xbf16>, vector<8x128xf32> -> vector<8x128xf32>
    %96 = arith.addf %64, %95 : vector<8x128xf32>
    %c0_67 = arith.constant 0 : index
    %c4608 = arith.constant 4608 : index
    %97 = vector.load %arg4[%c0_67, %c4608] : memref<1x6144xf32, #tpu.memory_space<vmem>>, vector<1x1536xf32>
    %c0_68 = arith.constant 0 : index
    %c0_69 = arith.constant 0 : index
    %c4608_70 = arith.constant 4608 : index
    %98 = vector.load %arg1[%c0_68, %c0_69, %c4608_70] : memref<3x8x6144xbf16, #tpu.memory_space<vmem>>, vector<1x8x1536xbf16>
    %99 = vector.shape_cast %98 : vector<1x8x1536xbf16> to vector<8x1536xbf16>
    %100 = arith.extf %99 : vector<8x1536xbf16> to vector<8x1536xf32>
    %c0_71 = arith.constant 0 : index
    %c0_72 = arith.constant 0 : index
    %c4608_73 = arith.constant 4608 : index
    %101 = vector.load %arg2[%c0_71, %c0_72, %c4608_73] : memref<3x1x6144xf32, #tpu.memory_space<vmem>>, vector<1x1x1536xf32>
    %102 = vector.shape_cast %101 : vector<1x1x1536xf32> to vector<1x1536xf32>
    %103 = vector.broadcast %102 : vector<1x1536xf32> to vector<8x1536xf32>
    %104 = arith.mulf %100, %103 : vector<8x1536xf32>
    %105 = vector.broadcast %97 : vector<1x1536xf32> to vector<8x1536xf32>
    %106 = arith.addf %105, %104 : vector<8x1536xf32>
    %c1_74 = arith.constant 1 : index
    %c0_75 = arith.constant 0 : index
    %c4608_76 = arith.constant 4608 : index
    %107 = vector.load %arg1[%c1_74, %c0_75, %c4608_76] : memref<3x8x6144xbf16, #tpu.memory_space<vmem>>, vector<1x8x1536xbf16>
    %108 = vector.shape_cast %107 : vector<1x8x1536xbf16> to vector<8x1536xbf16>
    %109 = arith.extf %108 : vector<8x1536xbf16> to vector<8x1536xf32>
    %c1_77 = arith.constant 1 : index
    %c0_78 = arith.constant 0 : index
    %c4608_79 = arith.constant 4608 : index
    %110 = vector.load %arg2[%c1_77, %c0_78, %c4608_79] : memref<3x1x6144xf32, #tpu.memory_space<vmem>>, vector<1x1x1536xf32>
    %111 = vector.shape_cast %110 : vector<1x1x1536xf32> to vector<1x1536xf32>
    %112 = vector.broadcast %111 : vector<1x1536xf32> to vector<8x1536xf32>
    %113 = arith.mulf %109, %112 : vector<8x1536xf32>
    %114 = arith.addf %106, %113 : vector<8x1536xf32>
    %c2_80 = arith.constant 2 : index
    %c0_81 = arith.constant 0 : index
    %c4608_82 = arith.constant 4608 : index
    %115 = vector.load %arg1[%c2_80, %c0_81, %c4608_82] : memref<3x8x6144xbf16, #tpu.memory_space<vmem>>, vector<1x8x1536xbf16>
    %116 = vector.shape_cast %115 : vector<1x8x1536xbf16> to vector<8x1536xbf16>
    %117 = arith.extf %116 : vector<8x1536xbf16> to vector<8x1536xf32>
    %c2_83 = arith.constant 2 : index
    %c0_84 = arith.constant 0 : index
    %c4608_85 = arith.constant 4608 : index
    %118 = vector.load %arg2[%c2_83, %c0_84, %c4608_85] : memref<3x1x6144xf32, #tpu.memory_space<vmem>>, vector<1x1x1536xf32>
    %119 = vector.shape_cast %118 : vector<1x1x1536xf32> to vector<1x1536xf32>
    %120 = vector.broadcast %119 : vector<1x1536xf32> to vector<8x1536xf32>
    %121 = arith.mulf %117, %120 : vector<8x1536xf32>
    %122 = arith.addf %114, %121 : vector<8x1536xf32>
    %cst_86 = arith.constant 0.000000e+00 : f32
    %123 = vector.broadcast %cst_86 : f32 to vector<8x1536xf32>
    %124 = arith.maximumf %122, %123 : vector<8x1536xf32>
    %125 = arith.truncf %124 : vector<8x1536xf32> to vector<8x1536xbf16>
    %c4608_87 = arith.constant 4608 : index
    %c0_88 = arith.constant 0 : index
    %126 = vector.load %arg6[%c4608_87, %c0_88] : memref<6144x128xbf16, #tpu.memory_space<vmem>>, vector<1536x128xbf16>
    %cst_89 = arith.constant dense<0.000000e+00> : vector<8x128xf32>
    %127 = tpu.matmul %125, %126, %cst_89 {dimension_numbers = #tpu.dot_dimension_numbers<[1], [0], [0], [1], [0, 0, 1, 1], [], []>} : vector<8x1536xbf16>, vector<1536x128xbf16>, vector<8x128xf32> -> vector<8x128xf32>
    %128 = arith.addf %96, %127 : vector<8x128xf32>
    %c0_90 = arith.constant 0 : index
    %c0_91 = arith.constant 0 : index
    %129 = vector.load %arg7[%c0_90, %c0_91] : memref<1x128xf32, #tpu.memory_space<vmem>>, vector<1x128xf32>
    %130 = vector.broadcast %129 : vector<1x128xf32> to vector<8x128xf32>
    %131 = arith.addf %128, %130 : vector<8x128xf32>
    %cst_92 = arith.constant 0.000000e+00 : f32
    %132 = vector.broadcast %cst_92 : f32 to vector<8x128xf32>
    %133 = arith.maximumf %131, %132 : vector<8x128xf32>
    %cst_93 = arith.constant 0.000000e+00 : f32
    %134 = vector.broadcast %cst_93 : f32 to vector<8x128xf32>
    %c0_94 = arith.constant 0 : index
    %c0_95 = arith.constant 0 : index
    %135 = vector.load %arg5[%c0_94, %c0_95] : memref<1x6144xf32, #tpu.memory_space<vmem>>, vector<1x1536xf32>
    %c0_96 = arith.constant 0 : index
    %c0_97 = arith.constant 0 : index
    %c0_98 = arith.constant 0 : index
    %136 = vector.load %arg1[%c0_96, %c0_97, %c0_98] : memref<3x8x6144xbf16, #tpu.memory_space<vmem>>, vector<1x8x1536xbf16>
    %137 = vector.shape_cast %136 : vector<1x8x1536xbf16> to vector<8x1536xbf16>
    %138 = arith.extf %137 : vector<8x1536xbf16> to vector<8x1536xf32>
    %c0_99 = arith.constant 0 : index
    %c0_100 = arith.constant 0 : index
    %c0_101 = arith.constant 0 : index
    %139 = vector.load %arg3[%c0_99, %c0_100, %c0_101] : memref<3x1x6144xf32, #tpu.memory_space<vmem>>, vector<1x1x1536xf32>
    %140 = vector.shape_cast %139 : vector<1x1x1536xf32> to vector<1x1536xf32>
    %141 = vector.broadcast %140 : vector<1x1536xf32> to vector<8x1536xf32>
    %142 = arith.mulf %138, %141 : vector<8x1536xf32>
    %143 = vector.broadcast %135 : vector<1x1536xf32> to vector<8x1536xf32>
    %144 = arith.addf %143, %142 : vector<8x1536xf32>
    %c1_102 = arith.constant 1 : index
    %c0_103 = arith.constant 0 : index
    %c0_104 = arith.constant 0 : index
    %145 = vector.load %arg1[%c1_102, %c0_103, %c0_104] : memref<3x8x6144xbf16, #tpu.memory_space<vmem>>, vector<1x8x1536xbf16>
    %146 = vector.shape_cast %145 : vector<1x8x1536xbf16> to vector<8x1536xbf16>
    %147 = arith.extf %146 : vector<8x1536xbf16> to vector<8x1536xf32>
    %c1_105 = arith.constant 1 : index
    %c0_106 = arith.constant 0 : index
    %c0_107 = arith.constant 0 : index
    %148 = vector.load %arg3[%c1_105, %c0_106, %c0_107] : memref<3x1x6144xf32, #tpu.memory_space<vmem>>, vector<1x1x1536xf32>
    %149 = vector.shape_cast %148 : vector<1x1x1536xf32> to vector<1x1536xf32>
    %150 = vector.broadcast %149 : vector<1x1536xf32> to vector<8x1536xf32>
    %151 = arith.mulf %147, %150 : vector<8x1536xf32>
    %152 = arith.addf %144, %151 : vector<8x1536xf32>
    %c2_108 = arith.constant 2 : index
    %c0_109 = arith.constant 0 : index
    %c0_110 = arith.constant 0 : index
    %153 = vector.load %arg1[%c2_108, %c0_109, %c0_110] : memref<3x8x6144xbf16, #tpu.memory_space<vmem>>, vector<1x8x1536xbf16>
    %154 = vector.shape_cast %153 : vector<1x8x1536xbf16> to vector<8x1536xbf16>
    %155 = arith.extf %154 : vector<8x1536xbf16> to vector<8x1536xf32>
    %c2_111 = arith.constant 2 : index
    %c0_112 = arith.constant 0 : index
    %c0_113 = arith.constant 0 : index
    %156 = vector.load %arg3[%c2_111, %c0_112, %c0_113] : memref<3x1x6144xf32, #tpu.memory_space<vmem>>, vector<1x1x1536xf32>
    %157 = vector.shape_cast %156 : vector<1x1x1536xf32> to vector<1x1536xf32>
    %158 = vector.broadcast %157 : vector<1x1536xf32> to vector<8x1536xf32>
    %159 = arith.mulf %155, %158 : vector<8x1536xf32>
    %160 = arith.addf %152, %159 : vector<8x1536xf32>
    %cst_114 = arith.constant 0.000000e+00 : f32
    %161 = vector.broadcast %cst_114 : f32 to vector<8x1536xf32>
    %162 = arith.maximumf %160, %161 : vector<8x1536xf32>
    %163 = arith.truncf %162 : vector<8x1536xf32> to vector<8x1536xbf16>
    %c0_115 = arith.constant 0 : index
    %c0_116 = arith.constant 0 : index
    %164 = vector.load %arg6[%c0_115, %c0_116] : memref<6144x128xbf16, #tpu.memory_space<vmem>>, vector<1536x128xbf16>
    %cst_117 = arith.constant dense<0.000000e+00> : vector<8x128xf32>
    %165 = tpu.matmul %163, %164, %cst_117 {dimension_numbers = #tpu.dot_dimension_numbers<[1], [0], [0], [1], [0, 0, 1, 1], [], []>} : vector<8x1536xbf16>, vector<1536x128xbf16>, vector<8x128xf32> -> vector<8x128xf32>
    %166 = arith.addf %134, %165 : vector<8x128xf32>
    %c0_118 = arith.constant 0 : index
    %c1536_119 = arith.constant 1536 : index
    %167 = vector.load %arg5[%c0_118, %c1536_119] : memref<1x6144xf32, #tpu.memory_space<vmem>>, vector<1x1536xf32>
    %c0_120 = arith.constant 0 : index
    %c0_121 = arith.constant 0 : index
    %c1536_122 = arith.constant 1536 : index
    %168 = vector.load %arg1[%c0_120, %c0_121, %c1536_122] : memref<3x8x6144xbf16, #tpu.memory_space<vmem>>, vector<1x8x1536xbf16>
    %169 = vector.shape_cast %168 : vector<1x8x1536xbf16> to vector<8x1536xbf16>
    %170 = arith.extf %169 : vector<8x1536xbf16> to vector<8x1536xf32>
    %c0_123 = arith.constant 0 : index
    %c0_124 = arith.constant 0 : index
    %c1536_125 = arith.constant 1536 : index
    %171 = vector.load %arg3[%c0_123, %c0_124, %c1536_125] : memref<3x1x6144xf32, #tpu.memory_space<vmem>>, vector<1x1x1536xf32>
    %172 = vector.shape_cast %171 : vector<1x1x1536xf32> to vector<1x1536xf32>
    %173 = vector.broadcast %172 : vector<1x1536xf32> to vector<8x1536xf32>
    %174 = arith.mulf %170, %173 : vector<8x1536xf32>
    %175 = vector.broadcast %167 : vector<1x1536xf32> to vector<8x1536xf32>
    %176 = arith.addf %175, %174 : vector<8x1536xf32>
    %c1_126 = arith.constant 1 : index
    %c0_127 = arith.constant 0 : index
    %c1536_128 = arith.constant 1536 : index
    %177 = vector.load %arg1[%c1_126, %c0_127, %c1536_128] : memref<3x8x6144xbf16, #tpu.memory_space<vmem>>, vector<1x8x1536xbf16>
    %178 = vector.shape_cast %177 : vector<1x8x1536xbf16> to vector<8x1536xbf16>
    %179 = arith.extf %178 : vector<8x1536xbf16> to vector<8x1536xf32>
    %c1_129 = arith.constant 1 : index
    %c0_130 = arith.constant 0 : index
    %c1536_131 = arith.constant 1536 : index
    %180 = vector.load %arg3[%c1_129, %c0_130, %c1536_131] : memref<3x1x6144xf32, #tpu.memory_space<vmem>>, vector<1x1x1536xf32>
    %181 = vector.shape_cast %180 : vector<1x1x1536xf32> to vector<1x1536xf32>
    %182 = vector.broadcast %181 : vector<1x1536xf32> to vector<8x1536xf32>
    %183 = arith.mulf %179, %182 : vector<8x1536xf32>
    %184 = arith.addf %176, %183 : vector<8x1536xf32>
    %c2_132 = arith.constant 2 : index
    %c0_133 = arith.constant 0 : index
    %c1536_134 = arith.constant 1536 : index
    %185 = vector.load %arg1[%c2_132, %c0_133, %c1536_134] : memref<3x8x6144xbf16, #tpu.memory_space<vmem>>, vector<1x8x1536xbf16>
    %186 = vector.shape_cast %185 : vector<1x8x1536xbf16> to vector<8x1536xbf16>
    %187 = arith.extf %186 : vector<8x1536xbf16> to vector<8x1536xf32>
    %c2_135 = arith.constant 2 : index
    %c0_136 = arith.constant 0 : index
    %c1536_137 = arith.constant 1536 : index
    %188 = vector.load %arg3[%c2_135, %c0_136, %c1536_137] : memref<3x1x6144xf32, #tpu.memory_space<vmem>>, vector<1x1x1536xf32>
    %189 = vector.shape_cast %188 : vector<1x1x1536xf32> to vector<1x1536xf32>
    %190 = vector.broadcast %189 : vector<1x1536xf32> to vector<8x1536xf32>
    %191 = arith.mulf %187, %190 : vector<8x1536xf32>
    %192 = arith.addf %184, %191 : vector<8x1536xf32>
    %cst_138 = arith.constant 0.000000e+00 : f32
    %193 = vector.broadcast %cst_138 : f32 to vector<8x1536xf32>
    %194 = arith.maximumf %192, %193 : vector<8x1536xf32>
    %195 = arith.truncf %194 : vector<8x1536xf32> to vector<8x1536xbf16>
    %c1536_139 = arith.constant 1536 : index
    %c0_140 = arith.constant 0 : index
    %196 = vector.load %arg6[%c1536_139, %c0_140] : memref<6144x128xbf16, #tpu.memory_space<vmem>>, vector<1536x128xbf16>
    %cst_141 = arith.constant dense<0.000000e+00> : vector<8x128xf32>
    %197 = tpu.matmul %195, %196, %cst_141 {dimension_numbers = #tpu.dot_dimension_numbers<[1], [0], [0], [1], [0, 0, 1, 1], [], []>} : vector<8x1536xbf16>, vector<1536x128xbf16>, vector<8x128xf32> -> vector<8x128xf32>
    %198 = arith.addf %166, %197 : vector<8x128xf32>
    %c0_142 = arith.constant 0 : index
    %c3072_143 = arith.constant 3072 : index
    %199 = vector.load %arg5[%c0_142, %c3072_143] : memref<1x6144xf32, #tpu.memory_space<vmem>>, vector<1x1536xf32>
    %c0_144 = arith.constant 0 : index
    %c0_145 = arith.constant 0 : index
    %c3072_146 = arith.constant 3072 : index
    %200 = vector.load %arg1[%c0_144, %c0_145, %c3072_146] : memref<3x8x6144xbf16, #tpu.memory_space<vmem>>, vector<1x8x1536xbf16>
    %201 = vector.shape_cast %200 : vector<1x8x1536xbf16> to vector<8x1536xbf16>
    %202 = arith.extf %201 : vector<8x1536xbf16> to vector<8x1536xf32>
    %c0_147 = arith.constant 0 : index
    %c0_148 = arith.constant 0 : index
    %c3072_149 = arith.constant 3072 : index
    %203 = vector.load %arg3[%c0_147, %c0_148, %c3072_149] : memref<3x1x6144xf32, #tpu.memory_space<vmem>>, vector<1x1x1536xf32>
    %204 = vector.shape_cast %203 : vector<1x1x1536xf32> to vector<1x1536xf32>
    %205 = vector.broadcast %204 : vector<1x1536xf32> to vector<8x1536xf32>
    %206 = arith.mulf %202, %205 : vector<8x1536xf32>
    %207 = vector.broadcast %199 : vector<1x1536xf32> to vector<8x1536xf32>
    %208 = arith.addf %207, %206 : vector<8x1536xf32>
    %c1_150 = arith.constant 1 : index
    %c0_151 = arith.constant 0 : index
    %c3072_152 = arith.constant 3072 : index
    %209 = vector.load %arg1[%c1_150, %c0_151, %c3072_152] : memref<3x8x6144xbf16, #tpu.memory_space<vmem>>, vector<1x8x1536xbf16>
    %210 = vector.shape_cast %209 : vector<1x8x1536xbf16> to vector<8x1536xbf16>
    %211 = arith.extf %210 : vector<8x1536xbf16> to vector<8x1536xf32>
    %c1_153 = arith.constant 1 : index
    %c0_154 = arith.constant 0 : index
    %c3072_155 = arith.constant 3072 : index
    %212 = vector.load %arg3[%c1_153, %c0_154, %c3072_155] : memref<3x1x6144xf32, #tpu.memory_space<vmem>>, vector<1x1x1536xf32>
    %213 = vector.shape_cast %212 : vector<1x1x1536xf32> to vector<1x1536xf32>
    %214 = vector.broadcast %213 : vector<1x1536xf32> to vector<8x1536xf32>
    %215 = arith.mulf %211, %214 : vector<8x1536xf32>
    %216 = arith.addf %208, %215 : vector<8x1536xf32>
    %c2_156 = arith.constant 2 : index
    %c0_157 = arith.constant 0 : index
    %c3072_158 = arith.constant 3072 : index
    %217 = vector.load %arg1[%c2_156, %c0_157, %c3072_158] : memref<3x8x6144xbf16, #tpu.memory_space<vmem>>, vector<1x8x1536xbf16>
    %218 = vector.shape_cast %217 : vector<1x8x1536xbf16> to vector<8x1536xbf16>
    %219 = arith.extf %218 : vector<8x1536xbf16> to vector<8x1536xf32>
    %c2_159 = arith.constant 2 : index
    %c0_160 = arith.constant 0 : index
    %c3072_161 = arith.constant 3072 : index
    %220 = vector.load %arg3[%c2_159, %c0_160, %c3072_161] : memref<3x1x6144xf32, #tpu.memory_space<vmem>>, vector<1x1x1536xf32>
    %221 = vector.shape_cast %220 : vector<1x1x1536xf32> to vector<1x1536xf32>
    %222 = vector.broadcast %221 : vector<1x1536xf32> to vector<8x1536xf32>
    %223 = arith.mulf %219, %222 : vector<8x1536xf32>
    %224 = arith.addf %216, %223 : vector<8x1536xf32>
    %cst_162 = arith.constant 0.000000e+00 : f32
    %225 = vector.broadcast %cst_162 : f32 to vector<8x1536xf32>
    %226 = arith.maximumf %224, %225 : vector<8x1536xf32>
    %227 = arith.truncf %226 : vector<8x1536xf32> to vector<8x1536xbf16>
    %c3072_163 = arith.constant 3072 : index
    %c0_164 = arith.constant 0 : index
    %228 = vector.load %arg6[%c3072_163, %c0_164] : memref<6144x128xbf16, #tpu.memory_space<vmem>>, vector<1536x128xbf16>
    %cst_165 = arith.constant dense<0.000000e+00> : vector<8x128xf32>
    %229 = tpu.matmul %227, %228, %cst_165 {dimension_numbers = #tpu.dot_dimension_numbers<[1], [0], [0], [1], [0, 0, 1, 1], [], []>} : vector<8x1536xbf16>, vector<1536x128xbf16>, vector<8x128xf32> -> vector<8x128xf32>
    %230 = arith.addf %198, %229 : vector<8x128xf32>
    %c0_166 = arith.constant 0 : index
    %c4608_167 = arith.constant 4608 : index
    %231 = vector.load %arg5[%c0_166, %c4608_167] : memref<1x6144xf32, #tpu.memory_space<vmem>>, vector<1x1536xf32>
    %c0_168 = arith.constant 0 : index
    %c0_169 = arith.constant 0 : index
    %c4608_170 = arith.constant 4608 : index
    %232 = vector.load %arg1[%c0_168, %c0_169, %c4608_170] : memref<3x8x6144xbf16, #tpu.memory_space<vmem>>, vector<1x8x1536xbf16>
    %233 = vector.shape_cast %232 : vector<1x8x1536xbf16> to vector<8x1536xbf16>
    %234 = arith.extf %233 : vector<8x1536xbf16> to vector<8x1536xf32>
    %c0_171 = arith.constant 0 : index
    %c0_172 = arith.constant 0 : index
    %c4608_173 = arith.constant 4608 : index
    %235 = vector.load %arg3[%c0_171, %c0_172, %c4608_173] : memref<3x1x6144xf32, #tpu.memory_space<vmem>>, vector<1x1x1536xf32>
    %236 = vector.shape_cast %235 : vector<1x1x1536xf32> to vector<1x1536xf32>
    %237 = vector.broadcast %236 : vector<1x1536xf32> to vector<8x1536xf32>
    %238 = arith.mulf %234, %237 : vector<8x1536xf32>
    %239 = vector.broadcast %231 : vector<1x1536xf32> to vector<8x1536xf32>
    %240 = arith.addf %239, %238 : vector<8x1536xf32>
    %c1_174 = arith.constant 1 : index
    %c0_175 = arith.constant 0 : index
    %c4608_176 = arith.constant 4608 : index
    %241 = vector.load %arg1[%c1_174, %c0_175, %c4608_176] : memref<3x8x6144xbf16, #tpu.memory_space<vmem>>, vector<1x8x1536xbf16>
    %242 = vector.shape_cast %241 : vector<1x8x1536xbf16> to vector<8x1536xbf16>
    %243 = arith.extf %242 : vector<8x1536xbf16> to vector<8x1536xf32>
    %c1_177 = arith.constant 1 : index
    %c0_178 = arith.constant 0 : index
    %c4608_179 = arith.constant 4608 : index
    %244 = vector.load %arg3[%c1_177, %c0_178, %c4608_179] : memref<3x1x6144xf32, #tpu.memory_space<vmem>>, vector<1x1x1536xf32>
    %245 = vector.shape_cast %244 : vector<1x1x1536xf32> to vector<1x1536xf32>
    %246 = vector.broadcast %245 : vector<1x1536xf32> to vector<8x1536xf32>
    %247 = arith.mulf %243, %246 : vector<8x1536xf32>
    %248 = arith.addf %240, %247 : vector<8x1536xf32>
    %c2_180 = arith.constant 2 : index
    %c0_181 = arith.constant 0 : index
    %c4608_182 = arith.constant 4608 : index
    %249 = vector.load %arg1[%c2_180, %c0_181, %c4608_182] : memref<3x8x6144xbf16, #tpu.memory_space<vmem>>, vector<1x8x1536xbf16>
    %250 = vector.shape_cast %249 : vector<1x8x1536xbf16> to vector<8x1536xbf16>
    %251 = arith.extf %250 : vector<8x1536xbf16> to vector<8x1536xf32>
    %c2_183 = arith.constant 2 : index
    %c0_184 = arith.constant 0 : index
    %c4608_185 = arith.constant 4608 : index
    %252 = vector.load %arg3[%c2_183, %c0_184, %c4608_185] : memref<3x1x6144xf32, #tpu.memory_space<vmem>>, vector<1x1x1536xf32>
    %253 = vector.shape_cast %252 : vector<1x1x1536xf32> to vector<1x1536xf32>
    %254 = vector.broadcast %253 : vector<1x1536xf32> to vector<8x1536xf32>
    %255 = arith.mulf %251, %254 : vector<8x1536xf32>
    %256 = arith.addf %248, %255 : vector<8x1536xf32>
    %cst_186 = arith.constant 0.000000e+00 : f32
    %257 = vector.broadcast %cst_186 : f32 to vector<8x1536xf32>
    %258 = arith.maximumf %256, %257 : vector<8x1536xf32>
    %259 = arith.truncf %258 : vector<8x1536xf32> to vector<8x1536xbf16>
    %c4608_187 = arith.constant 4608 : index
    %c0_188 = arith.constant 0 : index
    %260 = vector.load %arg6[%c4608_187, %c0_188] : memref<6144x128xbf16, #tpu.memory_space<vmem>>, vector<1536x128xbf16>
    %cst_189 = arith.constant dense<0.000000e+00> : vector<8x128xf32>
    %261 = tpu.matmul %259, %260, %cst_189 {dimension_numbers = #tpu.dot_dimension_numbers<[1], [0], [0], [1], [0, 0, 1, 1], [], []>} : vector<8x1536xbf16>, vector<1536x128xbf16>, vector<8x128xf32> -> vector<8x128xf32>
    %262 = arith.addf %230, %261 : vector<8x128xf32>
    %c0_190 = arith.constant 0 : index
    %c0_191 = arith.constant 0 : index
    %263 = vector.load %arg7[%c0_190, %c0_191] : memref<1x128xf32, #tpu.memory_space<vmem>>, vector<1x128xf32>
    %264 = vector.broadcast %263 : vector<1x128xf32> to vector<8x128xf32>
    %265 = arith.addf %262, %264 : vector<8x128xf32>
    %cst_192 = arith.constant 0.000000e+00 : f32
    %266 = vector.broadcast %cst_192 : f32 to vector<8x128xf32>
    %267 = arith.maximumf %265, %266 : vector<8x128xf32>
    %268 = arith.truncf %133 : vector<8x128xf32> to vector<8x128xbf16>
    %c0_193 = arith.constant 0 : index
    %c0_194 = arith.constant 0 : index
    %269 = vector.load %arg8[%c0_193, %c0_194] : memref<128x128xbf16, #tpu.memory_space<vmem>>, vector<128x128xbf16>
    %cst_195 = arith.constant dense<0.000000e+00> : vector<8x128xf32>
    %270 = tpu.matmul %268, %269, %cst_195 {dimension_numbers = #tpu.dot_dimension_numbers<[1], [0], [0], [1], [0, 0, 1, 1], [], []>} : vector<8x128xbf16>, vector<128x128xbf16>, vector<8x128xf32> -> vector<8x128xf32>
    %c0_196 = arith.constant 0 : index
    %c0_197 = arith.constant 0 : index
    %271 = vector.load %arg9[%c0_196, %c0_197] : memref<1x128xf32, #tpu.memory_space<vmem>>, vector<1x128xf32>
    %272 = vector.broadcast %271 : vector<1x128xf32> to vector<8x128xf32>
    %273 = arith.addf %270, %272 : vector<8x128xf32>
    %274 = arith.truncf %267 : vector<8x128xf32> to vector<8x128xbf16>
    %c0_198 = arith.constant 0 : index
    %c0_199 = arith.constant 0 : index
    %275 = vector.load %arg8[%c0_198, %c0_199] : memref<128x128xbf16, #tpu.memory_space<vmem>>, vector<128x128xbf16>
    %cst_200 = arith.constant dense<0.000000e+00> : vector<8x128xf32>
    %276 = tpu.matmul %274, %275, %cst_200 {dimension_numbers = #tpu.dot_dimension_numbers<[1], [0], [0], [1], [0, 0, 1, 1], [], []>} : vector<8x128xbf16>, vector<128x128xbf16>, vector<8x128xf32> -> vector<8x128xf32>
    %c0_201 = arith.constant 0 : index
    %c0_202 = arith.constant 0 : index
    %277 = vector.load %arg9[%c0_201, %c0_202] : memref<1x128xf32, #tpu.memory_space<vmem>>, vector<1x128xf32>
    %278 = vector.broadcast %277 : vector<1x128xf32> to vector<8x128xf32>
    %279 = arith.addf %276, %278 : vector<8x128xf32>
    %280 = tpu.iota {dimensions = array<i32: 1>} : vector<8x128xi32>
    %c4_i32 = arith.constant 4 : i32
    %281 = vector.broadcast %c4_i32 : i32 to vector<8x128xi32>
    %282 = arith.cmpi slt, %280, %281 : vector<8x128xi32>
    %283 = arith.negf %273 : vector<8x128xf32>
    %284 = math.exp %283 : vector<8x128xf32>
    %cst_203 = arith.constant 1.000000e+00 : f32
    %285 = vector.broadcast %cst_203 : f32 to vector<8x128xf32>
    %286 = arith.addf %285, %284 : vector<8x128xf32>
    %287 = arith.divf %285, %286 : vector<8x128xf32>
    %288 = arith.select %282, %287, %273 : vector<8x128xi1>, vector<8x128xf32>
    %c0_204 = arith.constant 0 : index
    %c0_205 = arith.constant 0 : index
    %c0_206 = arith.constant 0 : index
    %289 = vector.load %arg10[%c0_204, %c0_205, %c0_206] : memref<2x8x128xf32, #tpu.memory_space<vmem>>, vector<1x8x128xf32>
    %290 = vector.shape_cast %289 : vector<1x8x128xf32> to vector<8x128xf32>
    %291 = vector.shape_cast %288 : vector<8x128xf32> to vector<1x8x128xf32>
    tpu.vector_store %arg10[%c0_204, %c0_205, %c0_206], %291 {strides = array<i32>} : memref<2x8x128xf32, #tpu.memory_space<vmem>>, vector<1x8x128xf32>,
    %c1_207 = arith.constant 1 : index
    %c0_208 = arith.constant 0 : index
    %c0_209 = arith.constant 0 : index
    %292 = vector.load %arg10[%c1_207, %c0_208, %c0_209] : memref<2x8x128xf32, #tpu.memory_space<vmem>>, vector<1x8x128xf32>
    %293 = vector.shape_cast %292 : vector<1x8x128xf32> to vector<8x128xf32>
    %294 = vector.shape_cast %279 : vector<8x128xf32> to vector<1x8x128xf32>
    tpu.vector_store %arg10[%c1_207, %c0_208, %c0_209], %294 {strides = array<i32>} : memref<2x8x128xf32, #tpu.memory_space<vmem>>, vector<1x8x128xf32>,
    return
  }
  func.func @transform_0(%arg0: i32) -> (i32, i32, i32) {
    %c0_i32 = arith.constant 0 : i32
    %c0_i32_0 = arith.constant 0 : i32
    %c0_i32_1 = arith.constant 0 : i32
    return %c0_i32, %arg0, %c0_i32_0 : i32, i32, i32
  }
  func.func @transform_1(%arg0: i32) -> (i32, i32, i32) {
    %c0_i32 = arith.constant 0 : i32
    %c0_i32_0 = arith.constant 0 : i32
    %c0_i32_1 = arith.constant 0 : i32
    %c0_i32_2 = arith.constant 0 : i32
    return %c0_i32, %c0_i32_0, %c0_i32_1 : i32, i32, i32
  }
  func.func @transform_2(%arg0: i32) -> (i32, i32, i32) {
    %c0_i32 = arith.constant 0 : i32
    %c0_i32_0 = arith.constant 0 : i32
    %c0_i32_1 = arith.constant 0 : i32
    %c0_i32_2 = arith.constant 0 : i32
    return %c0_i32, %c0_i32_0, %c0_i32_1 : i32, i32, i32
  }
  func.func @transform_3(%arg0: i32) -> (i32, i32) {
    %c0_i32 = arith.constant 0 : i32
    %c0_i32_0 = arith.constant 0 : i32
    %c0_i32_1 = arith.constant 0 : i32
    return %c0_i32, %c0_i32_0 : i32, i32
  }
  func.func @transform_4(%arg0: i32) -> (i32, i32) {
    %c0_i32 = arith.constant 0 : i32
    %c0_i32_0 = arith.constant 0 : i32
    %c0_i32_1 = arith.constant 0 : i32
    return %c0_i32, %c0_i32_0 : i32, i32
  }
  func.func @transform_5(%arg0: i32) -> (i32, i32) {
    %c0_i32 = arith.constant 0 : i32
    %c0_i32_0 = arith.constant 0 : i32
    %c0_i32_1 = arith.constant 0 : i32
    return %c0_i32, %c0_i32_0 : i32, i32
  }
  func.func @transform_6(%arg0: i32) -> (i32, i32) {
    %c0_i32 = arith.constant 0 : i32
    %c0_i32_0 = arith.constant 0 : i32
    %c0_i32_1 = arith.constant 0 : i32
    return %c0_i32, %c0_i32_0 : i32, i32
  }
  func.func @transform_7(%arg0: i32) -> (i32, i32) {
    %c0_i32 = arith.constant 0 : i32
    %c0_i32_0 = arith.constant 0 : i32
    %c0_i32_1 = arith.constant 0 : i32
    return %c0_i32, %c0_i32_0 : i32, i32
  }
  func.func @transform_8(%arg0: i32) -> (i32, i32) {
    %c0_i32 = arith.constant 0 : i32
    %c0_i32_0 = arith.constant 0 : i32
    %c0_i32_1 = arith.constant 0 : i32
    return %c0_i32, %c0_i32_0 : i32, i32
  }
  func.func @transform_9(%arg0: i32) -> (i32, i32, i32) {
    %c0_i32 = arith.constant 0 : i32
    %c0_i32_0 = arith.constant 0 : i32
    %c0_i32_1 = arith.constant 0 : i32
    return %c0_i32, %arg0, %c0_i32_0 : i32, i32, i32
  }
}

</mosaic_0001>

<llo_original>
// kernel: _lambda_.1
$region0: #{_lambda_.1}
  #allocation0 [shape = 'u32[]', space=smem, size = 0x4, offset = 0x4, fixed_abs, tag = 'smem constant byte address 0x4 - core index']
  #allocation1 [shape = 'u32[72,128]{1,0:T(1,128)}', space=vmem, size = 0x9000, scoped, tag = 'internal scratch']
  %s0 = inlined_call_operand.vmem [shape: bf16[3,8,6144], index: 0, kind: input, shape index: {}]
  %s1 = inlined_call_operand.hbm [shape: f32[3,1,6144], index: 1, kind: input, shape index: {}]
  %s2 = inlined_call_operand.hbm [shape: f32[3,1,6144], index: 2, kind: input, shape index: {}]
  %s3 = inlined_call_operand.hbm [shape: f32[1,6144], index: 3, kind: input, shape index: {}]
  %s4 = inlined_call_operand.hbm [shape: f32[1,6144], index: 4, kind: input, shape index: {}]
  %s5 = inlined_call_operand.hbm [shape: bf16[6144,128], index: 5, kind: input, shape index: {}]
  %s6 = inlined_call_operand.hbm [shape: f32[1,128], index: 6, kind: input, shape index: {}]
  %s7 = inlined_call_operand.hbm [shape: bf16[128,128], index: 7, kind: input, shape index: {}]
  %s8 = inlined_call_operand.hbm [shape: f32[1,128], index: 8, kind: input, shape index: {}]
  %s9 = inlined_call_operand.vmem [shape: f32[2,8,128], index: 9, kind: output, shape index: {}]
  %s10 = sld [smem:[#allocation0]]
  $region78: #{_lambda_.1} parent=0
    _
  %s12 = ssub.s32 1, %s10
  %s13 = scalar_select 0, %s12, %s10
  $region1: #{_lambda_.1} parent=0
    #allocation2 [shape = 'u8[73728]{0}', space=vmem, size = 0x12000, scoped, tag = 'input window, operand 1, single buffered']
    #allocation3 [shape = 's32[1]{0}', space=sflag, size = 0x4, scoped, tag = 'scoped memory for _lambda_.1']
    #allocation4 [shape = 'u8[73728]{0}', space=vmem, size = 0x12000, scoped, tag = 'input window, operand 2, single buffered']
    #allocation5 [shape = 's32[1]{0}', space=sflag, size = 0x4, scoped, tag = 'scoped memory for _lambda_.1']
    #allocation6 [shape = 'u8[24576]{0}', space=vmem, size = 0x6000, scoped, tag = 'input window, operand 3, single buffered']
    #allocation7 [shape = 'u8[24576]{0}', space=vmem, size = 0x6000, scoped, tag = 'input window, operand 4, single buffered']
    #allocation8 [shape = 's32[1]{0}', space=sflag, size = 0x4, scoped, tag = 'scoped memory for _lambda_.1']
    #allocation9 [shape = 'u8[1572864]{0}', space=vmem, size = 0x180000, scoped, tag = 'input window, operand 5, single buffered']
    #allocation10 [shape = 'u8[512]{0}', space=vmem, size = 0x400, scoped, tag = 'input window, operand 6, single buffered']
    #allocation11 [shape = 's32[1]{0}', space=sflag, size = 0x4, scoped, tag = 'scoped memory for _lambda_.1']
    #allocation12 [shape = 'u8[32768]{0}', space=vmem, size = 0x8000, scoped, tag = 'input window, operand 7, single buffered']
    #allocation13 [shape = 'u8[512]{0}', space=vmem, size = 0x400, scoped, tag = 'input window, operand 8, single buffered']
    #allocation14 [shape = 's32[1]{0}', space=sflag, size = 0x4, scoped, tag = 'scoped memory for _lambda_.1']
    %14 = vsyncpa [#allocation3], 0
    %15 = vsyncpa [#allocation5], 0
    %16 = vsyncpa [#allocation8], 0
    %17 = vsyncpa [#allocation11], 0
    %18 = vsyncpa [#allocation14], 0
    // Predicated region
    $region2: #{_lambda_.1} parent=1 // pred_check
      _
    $region3: #{_lambda_.1} parent=1 // pred_check_branch
      %20 = sbr.rel (0) target = $region5
    $region4: #{_lambda_.1} parent=1 // pred_region
      _
    $region5: #{_lambda_.1} parent=1 // pred_fallthru
      _
    // Predicated region
    $region6: #{_lambda_.1} parent=1 // pred_check
      _
    $region7: #{_lambda_.1} parent=1 // pred_check_branch
      %22 = sbr.rel (0) target = $region9
    $region8: #{_lambda_.1} parent=1 // pred_region
      %24 = vsyncadd [#allocation3], 0
      %s25 = sshll.u32 %s1, 4
      %s26 = int_to_ptr.hbm [resolvable:$true] %s25
      %s27 = sshll.u32 [#allocation2], 4
      %s28 = int_to_ptr.vmem [resolvable:$true] %s27
      %33 = dma.hbm_to_vmem [thread:$0]  %s26, 2304, %s28, [#allocation3], 768, 768, 48
    $region9: #{_lambda_.1} parent=1 // pred_fallthru
      _
    // Predicated region
    $region10: #{_lambda_.1} parent=1 // pred_check
      _
    $region11: #{_lambda_.1} parent=1 // pred_check_branch
      %35 = sbr.rel (0) target = $region13
    $region12: #{_lambda_.1} parent=1 // pred_region
      %37 = vsyncadd [#allocation5], 0
      %s38 = sshll.u32 %s2, 4
      %s39 = int_to_ptr.hbm [resolvable:$true] %s38
      %s40 = sshll.u32 [#allocation4], 4
      %s41 = int_to_ptr.vmem [resolvable:$true] %s40
      %46 = dma.hbm_to_vmem [thread:$0]  %s39, 2304, %s41, [#allocation5], 768, 768, 48
    $region13: #{_lambda_.1} parent=1 // pred_fallthru
      _
    // Predicated region
    $region14: #{_lambda_.1} parent=1 // pred_check
      _
    $region15: #{_lambda_.1} parent=1 // pred_check_branch
      %48 = sbr.rel (0) target = $region17
    $region16: #{_lambda_.1} parent=1 // pred_region
      %50 = vsyncadd [#allocation5], 0
      %s52 = sshll.u32 %s3, 4
      %s53 = int_to_ptr.hbm [resolvable:$true] %s52
      %s54 = sshll.u32 [#allocation6], 4
      %s55 = int_to_ptr.vmem [resolvable:$true] %s54
      %57 = dma.hbm_to_vmem [thread:$0]  %s53, 768, %s55, [#allocation5]
    $region17: #{_lambda_.1} parent=1 // pred_fallthru
      _
    // Predicated region
    $region18: #{_lambda_.1} parent=1 // pred_check
      _
    $region19: #{_lambda_.1} parent=1 // pred_check_branch
      %59 = sbr.rel (0) target = $region21
    $region20: #{_lambda_.1} parent=1 // pred_region
      %61 = vsyncadd [#allocation8], 0
      %s63 = sshll.u32 %s4, 4
      %s64 = int_to_ptr.hbm [resolvable:$true] %s63
      %s65 = sshll.u32 [#allocation7], 4
      %s66 = int_to_ptr.vmem [resolvable:$true] %s65
      %68 = dma.hbm_to_vmem [thread:$0]  %s64, 768, %s66, [#allocation8]
    $region21: #{_lambda_.1} parent=1 // pred_fallthru
      _
    // Predicated region
    $region22: #{_lambda_.1} parent=1 // pred_check
      _
    $region23: #{_lambda_.1} parent=1 // pred_check_branch
      %70 = sbr.rel (0) target = $region25
    $region24: #{_lambda_.1} parent=1 // pred_region
      %72 = vsyncadd [#allocation8], 0
      %s73 = sshll.u32 %s5, 4
      %s74 = int_to_ptr.hbm [resolvable:$true] %s73
      %s75 = sshll.u32 [#allocation9], 4
      %s76 = int_to_ptr.vmem [resolvable:$true] %s75
      %81 = dma.hbm_to_vmem [thread:$0]  %s74, 49152, %s76, [#allocation8], 64, 64, 4
    $region25: #{_lambda_.1} parent=1 // pred_fallthru
      _
    // Predicated region
    $region26: #{_lambda_.1} parent=1 // pred_check
      _
    $region27: #{_lambda_.1} parent=1 // pred_check_branch
      %83 = sbr.rel (0) target = $region29
    $region28: #{_lambda_.1} parent=1 // pred_region
      %85 = vsyncadd [#allocation11], 0
      %s87 = sshll.u32 %s6, 4
      %s88 = int_to_ptr.hbm [resolvable:$true] %s87
      %s89 = sshll.u32 [#allocation10], 4
      %s90 = int_to_ptr.vmem [resolvable:$true] %s89
      %92 = dma.hbm_to_vmem [thread:$0]  %s88, 16, %s90, [#allocation11]
    $region29: #{_lambda_.1} parent=1 // pred_fallthru
      _
    // Predicated region
    $region30: #{_lambda_.1} parent=1 // pred_check
      _
    $region31: #{_lambda_.1} parent=1 // pred_check_branch
      %94 = sbr.rel (0) target = $region33
    $region32: #{_lambda_.1} parent=1 // pred_region
      %96 = vsyncadd [#allocation11], 0
      %s97 = sshll.u32 %s7, 4
      %s98 = int_to_ptr.hbm [resolvable:$true] %s97
      %s99 = sshll.u32 [#allocation12], 4
      %s100 = int_to_ptr.vmem [resolvable:$true] %s99
      %105 = dma.hbm_to_vmem [thread:$0]  %s98, 1024, %s100, [#allocation11], 64, 64, 4
    $region33: #{_lambda_.1} parent=1 // pred_fallthru
      _
    // Predicated region
    $region34: #{_lambda_.1} parent=1 // pred_check
      _
    $region35: #{_lambda_.1} parent=1 // pred_check_branch
      %107 = sbr.rel (0) target = $region37
    $region36: #{_lambda_.1} parent=1 // pred_region
      %109 = vsyncadd [#allocation14], 0
      %s111 = sshll.u32 %s8, 4
      %s112 = int_to_ptr.hbm [resolvable:$true] %s111
      %s113 = sshll.u32 [#allocation13], 4
      %s114 = int_to_ptr.vmem [resolvable:$true] %s113
      %116 = dma.hbm_to_vmem [thread:$0]  %s112, 16, %s114, [#allocation14]
    $region37: #{_lambda_.1} parent=1 // pred_fallthru
      _
    // Predicated region
    $region38: #{_lambda_.1} parent=1 // pred_check
      _
    $region39: #{_lambda_.1} parent=1 // pred_check_branch
      %118 = sbr.rel (0) target = $region41
    $region40: #{_lambda_.1} parent=1 // pred_region
      %120 = dma.done [#allocation3], 2304
    $region41: #{_lambda_.1} parent=1 // pred_fallthru
      _
    // Predicated region
    $region42: #{_lambda_.1} parent=1 // pred_check
      _
    $region43: #{_lambda_.1} parent=1 // pred_check_branch
      %122 = sbr.rel (0) target = $region45
    $region44: #{_lambda_.1} parent=1 // pred_region
      %124 = dma.done [#allocation5], 2304
    $region45: #{_lambda_.1} parent=1 // pred_fallthru
      _
    // Predicated region
    $region46: #{_lambda_.1} parent=1 // pred_check
      _
    $region47: #{_lambda_.1} parent=1 // pred_check_branch
      %126 = sbr.rel (0) target = $region49
    $region48: #{_lambda_.1} parent=1 // pred_region
      %128 = dma.done [#allocation5], 768
    $region49: #{_lambda_.1} parent=1 // pred_fallthru
      _
    // Predicated region
    $region50: #{_lambda_.1} parent=1 // pred_check
      _
    $region51: #{_lambda_.1} parent=1 // pred_check_branch
      %130 = sbr.rel (0) target = $region53
    $region52: #{_lambda_.1} parent=1 // pred_region
      %132 = dma.done [#allocation8], 768
    $region53: #{_lambda_.1} parent=1 // pred_fallthru
      _
    // Predicated region
    $region54: #{_lambda_.1} parent=1 // pred_check
      _
    $region55: #{_lambda_.1} parent=1 // pred_check_branch
      %134 = sbr.rel (0) target = $region57
    $region56: #{_lambda_.1} parent=1 // pred_region
      %136 = dma.done [#allocation8], 49152
    $region57: #{_lambda_.1} parent=1 // pred_fallthru
      _
    // Predicated region
    $region58: #{_lambda_.1} parent=1 // pred_check
      _
    $region59: #{_lambda_.1} parent=1 // pred_check_branch
      %138 = sbr.rel (0) target = $region61
    $region60: #{_lambda_.1} parent=1 // pred_region
      %140 = dma.done [#allocation11], 16
    $region61: #{_lambda_.1} parent=1 // pred_fallthru
      _
    // Predicated region
    $region62: #{_lambda_.1} parent=1 // pred_check
      _
    $region63: #{_lambda_.1} parent=1 // pred_check_branch
      %142 = sbr.rel (0) target = $region65
    $region64: #{_lambda_.1} parent=1 // pred_region
      %144 = dma.done [#allocation11], 1024
    $region65: #{_lambda_.1} parent=1 // pred_fallthru
      _
    // Predicated region
    $region66: #{_lambda_.1} parent=1 // pred_check
      _
    $region67: #{_lambda_.1} parent=1 // pred_check_branch
      %146 = sbr.rel (0) target = $region69
    $region68: #{_lambda_.1} parent=1 // pred_region
      %148 = dma.done [#allocation14], 16
    $region69: #{_lambda_.1} parent=1 // pred_fallthru
      _
    %v149 = vld [vmem:[#allocation6] sm:$0xff]
    %v150 = vld [vmem:[#allocation6 + $0x8] sm:$0xf]
    %v151 = vld [vmem:[%s0] sm:$0xff]
    %v152 = vld [vmem:[%s0 + $0x8] sm:$0xff]
    %v153 = vld [vmem:[%s0 + $0x10] sm:$0xff]
    %v154 = vld [vmem:[%s0 + $0x18] sm:$0xff]
    %v155 = vld [vmem:[%s0 + $0x20] sm:$0xff]
    %v156 = vld [vmem:[%s0 + $0x28] sm:$0xff]
    %v157 = vunpack.c.l.bf16 %v151
    %v158 = vunpack.c.h.bf16 %v151
    %v159 = vunpack.c.l.bf16 %v152
    %v160 = vunpack.c.h.bf16 %v152
    %v161 = vunpack.c.l.bf16 %v153
    %v162 = vunpack.c.h.bf16 %v153
    %v163 = vunpack.c.l.bf16 %v154
    %v164 = vunpack.c.h.bf16 %v154
    %v165 = vunpack.c.l.bf16 %v155
    %v166 = vunpack.c.h.bf16 %v155
    %v167 = vunpack.c.l.bf16 %v156
    %v168 = vunpack.c.h.bf16 %v156
    %v169 = vld [vmem:[#allocation2] sm:$0xff]
    %v170 = vld [vmem:[#allocation2 + $0x8] sm:$0xf]
    %v173 = vperm.slane %v169, 0
    %v174 = vperm.slane %v169, 1
    %v175 = vperm.slane %v169, 2
    %v176 = vperm.slane %v169, 3
    %v177 = vperm.slane %v169, 4
    %v178 = vperm.slane %v169, 5
    %v179 = vperm.slane %v169, 6
    %v180 = vperm.slane %v169, 7
    %v181 = vperm.slane %v170, 0
    %v182 = vperm.slane %v170, 1
    %v183 = vperm.slane %v170, 2
    %v184 = vperm.slane %v170, 3
    %v197 = vmul.f32 %v157, %v173
    %v198 = vmul.f32 %v158, %v174
    %v199 = vmul.f32 %v159, %v175
    %v200 = vmul.f32 %v160, %v176
    %v201 = vmul.f32 %v161, %v177
    %v202 = vmul.f32 %v162, %v178
    %v203 = vmul.f32 %v163, %v179
    %v204 = vmul.f32 %v164, %v180
    %v205 = vmul.f32 %v165, %v181
    %v206 = vmul.f32 %v166, %v182
    %v207 = vmul.f32 %v167, %v183
    %v208 = vmul.f32 %v168, %v184
    %v211 = vperm.slane %v149, 0
    %v212 = vperm.slane %v149, 1
    %v213 = vperm.slane %v149, 2
    %v214 = vperm.slane %v149, 3
    %v215 = vperm.slane %v149, 4
    %v216 = vperm.slane %v149, 5
    %v217 = vperm.slane %v149, 6
    %v218 = vperm.slane %v149, 7
    %v219 = vperm.slane %v150, 0
    %v220 = vperm.slane %v150, 1
    %v221 = vperm.slane %v150, 2
    %v222 = vperm.slane %v150, 3
    %v235 = vadd.f32 %v211, %v197
    %v236 = vadd.f32 %v212, %v198
    %v237 = vadd.f32 %v213, %v199
    %v238 = vadd.f32 %v214, %v200
    %v239 = vadd.f32 %v215, %v201
    %v240 = vadd.f32 %v216, %v202
    %v241 = vadd.f32 %v217, %v203
    %v242 = vadd.f32 %v218, %v204
    %v243 = vadd.f32 %v219, %v205
    %v244 = vadd.f32 %v220, %v206
    %v245 = vadd.f32 %v221, %v207
    %v246 = vadd.f32 %v222, %v208
    %s247 = scalar_lea.vmem %s0, 192
    %v248 = vld [vmem:[%s247] sm:$0xff]
    %v249 = vld [vmem:[%s247 + $0x8] sm:$0xff]
    %v250 = vld [vmem:[%s247 + $0x10] sm:$0xff]
    %v251 = vld [vmem:[%s247 + $0x18] sm:$0xff]
    %v252 = vld [vmem:[%s247 + $0x20] sm:$0xff]
    %v253 = vld [vmem:[%s247 + $0x28] sm:$0xff]
    %v254 = vunpack.c.l.bf16 %v248
    %v255 = vunpack.c.h.bf16 %v248
    %v256 = vunpack.c.l.bf16 %v249
    %v257 = vunpack.c.h.bf16 %v249
    %v258 = vunpack.c.l.bf16 %v250
    %v259 = vunpack.c.h.bf16 %v250
    %v260 = vunpack.c.l.bf16 %v251
    %v261 = vunpack.c.h.bf16 %v251
    %v262 = vunpack.c.l.bf16 %v252
    %v263 = vunpack.c.h.bf16 %v252
    %v264 = vunpack.c.l.bf16 %v253
    %v265 = vunpack.c.h.bf16 %v253
    %s266 = scalar_lea.vmem [#allocation2], 48
    %v267 = vld [vmem:[%s266] sm:$0xff]
    %v268 = vld [vmem:[%s266 + $0x8] sm:$0xf]
    %v271 = vperm.slane %v267, 0
    %v272 = vperm.slane %v267, 1
    %v273 = vperm.slane %v267, 2
    %v274 = vperm.slane %v267, 3
    %v275 = vperm.slane %v267, 4
    %v276 = vperm.slane %v267, 5
    %v277 = vperm.slane %v267, 6
    %v278 = vperm.slane %v267, 7
    %v279 = vperm.slane %v268, 0
    %v280 = vperm.slane %v268, 1
    %v281 = vperm.slane %v268, 2
    %v282 = vperm.slane %v268, 3
    %v295 = vmul.f32 %v254, %v271
    %v296 = vmul.f32 %v255, %v272
    %v297 = vmul.f32 %v256, %v273
    %v298 = vmul.f32 %v257, %v274
    %v299 = vmul.f32 %v258, %v275
    %v300 = vmul.f32 %v259, %v276
    %v301 = vmul.f32 %v260, %v277
    %v302 = vmul.f32 %v261, %v278
    %v303 = vmul.f32 %v262, %v279
    %v304 = vmul.f32 %v263, %v280
    %v305 = vmul.f32 %v264, %v281
    %v306 = vmul.f32 %v265, %v282
    %v307 = vadd.f32 %v235, %v295
    %v308 = vadd.f32 %v236, %v296
    %v309 = vadd.f32 %v237, %v297
    %v310 = vadd.f32 %v238, %v298
    %v311 = vadd.f32 %v239, %v299
    %v312 = vadd.f32 %v240, %v300
    %v313 = vadd.f32 %v241, %v301
    %v314 = vadd.f32 %v242, %v302
    %v315 = vadd.f32 %v243, %v303
    %v316 = vadd.f32 %v244, %v304
    %v317 = vadd.f32 %v245, %v305
    %v318 = vadd.f32 %v246, %v306
    %s319 = scalar_lea.vmem %s0, 384
    %v320 = vld [vmem:[%s319] sm:$0xff]
    %v321 = vld [vmem:[%s319 + $0x8] sm:$0xff]
    %v322 = vld [vmem:[%s319 + $0x10] sm:$0xff]
    %v323 = vld [vmem:[%s319 + $0x18] sm:$0xff]
    %v324 = vld [vmem:[%s319 + $0x20] sm:$0xff]
    %v325 = vld [vmem:[%s319 + $0x28] sm:$0xff]
    %v326 = vunpack.c.l.bf16 %v320
    %v327 = vunpack.c.h.bf16 %v320
    %v328 = vunpack.c.l.bf16 %v321
    %v329 = vunpack.c.h.bf16 %v321
    %v330 = vunpack.c.l.bf16 %v322
    %v331 = vunpack.c.h.bf16 %v322
    %v332 = vunpack.c.l.bf16 %v323
    %v333 = vunpack.c.h.bf16 %v323
    %v334 = vunpack.c.l.bf16 %v324
    %v335 = vunpack.c.h.bf16 %v324
    %v336 = vunpack.c.l.bf16 %v325
    %v337 = vunpack.c.h.bf16 %v325
    %s338 = scalar_lea.vmem [#allocation2], 96
    %v339 = vld [vmem:[%s338] sm:$0xff]
    %v340 = vld [vmem:[%s338 + $0x8] sm:$0xf]
    %v343 = vperm.slane %v339, 0
    %v344 = vperm.slane %v339, 1
    %v345 = vperm.slane %v339, 2
    %v346 = vperm.slane %v339, 3
    %v347 = vperm.slane %v339, 4
    %v348 = vperm.slane %v339, 5
    %v349 = vperm.slane %v339, 6
    %v350 = vperm.slane %v339, 7
    %v351 = vperm.slane %v340, 0
    %v352 = vperm.slane %v340, 1
    %v353 = vperm.slane %v340, 2
    %v354 = vperm.slane %v340, 3
    %v367 = vmul.f32 %v326, %v343
    %v368 = vmul.f32 %v327, %v344
    %v369 = vmul.f32 %v328, %v345
    %v370 = vmul.f32 %v329, %v346
    %v371 = vmul.f32 %v330, %v347
    %v372 = vmul.f32 %v331, %v348
    %v373 = vmul.f32 %v332, %v349
    %v374 = vmul.f32 %v333, %v350
    %v375 = vmul.f32 %v334, %v351
    %v376 = vmul.f32 %v335, %v352
    %v377 = vmul.f32 %v336, %v353
    %v378 = vmul.f32 %v337, %v354
    %v379 = vadd.f32 %v307, %v367
    %v380 = vadd.f32 %v308, %v368
    %v381 = vadd.f32 %v309, %v369
    %v382 = vadd.f32 %v310, %v370
    %v383 = vadd.f32 %v311, %v371
    %v384 = vadd.f32 %v312, %v372
    %v385 = vadd.f32 %v313, %v373
    %v386 = vadd.f32 %v314, %v374
    %v387 = vadd.f32 %v315, %v375
    %v388 = vadd.f32 %v316, %v376
    %v389 = vadd.f32 %v317, %v377
    %v390 = vadd.f32 %v318, %v378
    %v391 = vmax.f32 %v379, 0.0
    %v392 = vmax.f32 %v380, 0.0
    %v393 = vmax.f32 %v381, 0.0
    %v394 = vmax.f32 %v382, 0.0
    %v395 = vmax.f32 %v383, 0.0
    %v396 = vmax.f32 %v384, 0.0
    %v397 = vmax.f32 %v385, 0.0
    %v398 = vmax.f32 %v386, 0.0
    %v399 = vmax.f32 %v387, 0.0
    %v400 = vmax.f32 %v388, 0.0
    %v401 = vmax.f32 %v389, 0.0
    %v402 = vmax.f32 %v390, 0.0
    %v403 = vpack.c.bf16 %v391, %v391
    %v404 = vpack.c.bf16 %v392, %v392
    %v405 = vpack.c.bf16 %v393, %v393
    %v406 = vpack.c.bf16 %v394, %v394
    %v407 = vpack.c.bf16 %v395, %v395
    %v408 = vpack.c.bf16 %v396, %v396
    %v409 = vpack.c.bf16 %v397, %v397
    %v410 = vpack.c.bf16 %v398, %v398
    %v411 = vpack.c.bf16 %v399, %v399
    %v412 = vpack.c.bf16 %v400, %v400
    %v413 = vpack.c.bf16 %v401, %v401
    %v414 = vpack.c.bf16 %v402, %v402
    %v415 = vld [vmem:[#allocation9] sm:$0xf]
    %v416 = vld [vmem:[#allocation9 + $0x4] sm:$0xf]
    %v417 = vld [vmem:[#allocation9 + $0x8] sm:$0xf]
    %v418 = vld [vmem:[#allocation9 + $0xc] sm:$0xf]
    %v419 = vld [vmem:[#allocation9 + $0x10] sm:$0xf]
    %v420 = vld [vmem:[#allocation9 + $0x14] sm:$0xf]
    %v421 = vld [vmem:[#allocation9 + $0x18] sm:$0xf]
    %v422 = vld [vmem:[#allocation9 + $0x1c] sm:$0xf]
    %v423 = vld [vmem:[#allocation9 + $0x20] sm:$0xf]
    %v424 = vld [vmem:[#allocation9 + $0x24] sm:$0xf]
    %v425 = vld [vmem:[#allocation9 + $0x28] sm:$0xf]
    %v426 = vld [vmem:[#allocation9 + $0x2c] sm:$0xf]
    %v427 = vld [vmem:[#allocation9 + $0x30] sm:$0xf]
    %v428 = vld [vmem:[#allocation9 + $0x34] sm:$0xf]
    %v429 = vld [vmem:[#allocation9 + $0x38] sm:$0xf]
    %v430 = vld [vmem:[#allocation9 + $0x3c] sm:$0xf]
    %v431 = vld [vmem:[#allocation9 + $0x40] sm:$0xf]
    %v432 = vld [vmem:[#allocation9 + $0x44] sm:$0xf]
    %v433 = vld [vmem:[#allocation9 + $0x48] sm:$0xf]
    %v434 = vld [vmem:[#allocation9 + $0x4c] sm:$0xf]
    %v435 = vld [vmem:[#allocation9 + $0x50] sm:$0xf]
    %v436 = vld [vmem:[#allocation9 + $0x54] sm:$0xf]
    %v437 = vld [vmem:[#allocation9 + $0x58] sm:$0xf]
    %v438 = vld [vmem:[#allocation9 + $0x5c] sm:$0xf]
    %v439 = vld [vmem:[#allocation9 + $0x60] sm:$0xf]
    %v440 = vld [vmem:[#allocation9 + $0x64] sm:$0xf]
    %v441 = vld [vmem:[#allocation9 + $0x68] sm:$0xf]
    %v442 = vld [vmem:[#allocation9 + $0x6c] sm:$0xf]
    %v443 = vld [vmem:[#allocation9 + $0x70] sm:$0xf]
    %v444 = vld [vmem:[#allocation9 + $0x74] sm:$0xf]
    %v445 = vld [vmem:[#allocation9 + $0x78] sm:$0xf]
    %v446 = vld [vmem:[#allocation9 + $0x7c] sm:$0xf]
    %v447 = vld [vmem:[#allocation9 + $0x80] sm:$0xf]
    %v448 = vld [vmem:[#allocation9 + $0x84] sm:$0xf]
    %v449 = vld [vmem:[#allocation9 + $0x88] sm:$0xf]
    %v450 = vld [vmem:[#allocation9 + $0x8c] sm:$0xf]
    %v451 = vld [vmem:[#allocation9 + $0x90] sm:$0xf]
    %v452 = vld [vmem:[#allocation9 + $0x94] sm:$0xf]
    %v453 = vld [vmem:[#allocation9 + $0x98] sm:$0xf]
    %v454 = vld [vmem:[#allocation9 + $0x9c] sm:$0xf]
    %v455 = vld [vmem:[#allocation9 + $0xa0] sm:$0xf]
    %v456 = vld [vmem:[#allocation9 + $0xa4] sm:$0xf]
    %v457 = vld [vmem:[#allocation9 + $0xa8] sm:$0xf]
    %v458 = vld [vmem:[#allocation9 + $0xac] sm:$0xf]
    %v459 = vld [vmem:[#allocation9 + $0xb0] sm:$0xf]
    %v460 = vld [vmem:[#allocation9 + $0xb4] sm:$0xf]
    %v461 = vld [vmem:[#allocation9 + $0xb8] sm:$0xf]
    %v462 = vld [vmem:[#allocation9 + $0xbc] sm:$0xf]
    %v463 = vld [vmem:[#allocation9 + $0xc0] sm:$0xf]
    %v464 = vld [vmem:[#allocation9 + $0xc4] sm:$0xf]
    %v465 = vld [vmem:[#allocation9 + $0xc8] sm:$0xf]
    %v466 = vld [vmem:[#allocation9 + $0xcc] sm:$0xf]
    %v467 = vld [vmem:[#allocation9 + $0xd0] sm:$0xf]
    %v468 = vld [vmem:[#allocation9 + $0xd4] sm:$0xf]
    %v469 = vld [vmem:[#allocation9 + $0xd8] sm:$0xf]
    %v470 = vld [vmem:[#allocation9 + $0xdc] sm:$0xf]
    %v471 = vld [vmem:[#allocation9 + $0xe0] sm:$0xf]
    %v472 = vld [vmem:[#allocation9 + $0xe4] sm:$0xf]
    %v473 = vld [vmem:[#allocation9 + $0xe8] sm:$0xf]
    %v474 = vld [vmem:[#allocation9 + $0xec] sm:$0xf]
    %v475 = vld [vmem:[#allocation9 + $0xf0] sm:$0xf]
    %v476 = vld [vmem:[#allocation9 + $0xf4] sm:$0xf]
    %v477 = vld [vmem:[#allocation9 + $0xf8] sm:$0xf]
    %v478 = vld [vmem:[#allocation9 + $0xfc] sm:$0xf]
    %v479 = vld [vmem:[#allocation9 + $0x100] sm:$0xf]
    %v480 = vld [vmem:[#allocation9 + $0x104] sm:$0xf]
    %v481 = vld [vmem:[#allocation9 + $0x108] sm:$0xf]
    %v482 = vld [vmem:[#allocation9 + $0x10c] sm:$0xf]
    %v483 = vld [vmem:[#allocation9 + $0x110] sm:$0xf]
    %v484 = vld [vmem:[#allocation9 + $0x114] sm:$0xf]
    %v485 = vld [vmem:[#allocation9 + $0x118] sm:$0xf]
    %v486 = vld [vmem:[#allocation9 + $0x11c] sm:$0xf]
    %v487 = vld [vmem:[#allocation9 + $0x120] sm:$0xf]
    %v488 = vld [vmem:[#allocation9 + $0x124] sm:$0xf]
    %v489 = vld [vmem:[#allocation9 + $0x128] sm:$0xf]
    %v490 = vld [vmem:[#allocation9 + $0x12c] sm:$0xf]
    %v491 = vld [vmem:[#allocation9 + $0x130] sm:$0xf]
    %v492 = vld [vmem:[#allocation9 + $0x134] sm:$0xf]
    %v493 = vld [vmem:[#allocation9 + $0x138] sm:$0xf]
    %v494 = vld [vmem:[#allocation9 + $0x13c] sm:$0xf]
    %v495 = vld [vmem:[#allocation9 + $0x140] sm:$0xf]
    %v496 = vld [vmem:[#allocation9 + $0x144] sm:$0xf]
    %v497 = vld [vmem:[#allocation9 + $0x148] sm:$0xf]
    %v498 = vld [vmem:[#allocation9 + $0x14c] sm:$0xf]
    %v499 = vld [vmem:[#allocation9 + $0x150] sm:$0xf]
    %v500 = vld [vmem:[#allocation9 + $0x154] sm:$0xf]
    %v501 = vld [vmem:[#allocation9 + $0x158] sm:$0xf]
    %v502 = vld [vmem:[#allocation9 + $0x15c] sm:$0xf]
    %v503 = vld [vmem:[#allocation9 + $0x160] sm:$0xf]
    %v504 = vld [vmem:[#allocation9 + $0x164] sm:$0xf]
    %v505 = vld [vmem:[#allocation9 + $0x168] sm:$0xf]
    %v506 = vld [vmem:[#allocation9 + $0x16c] sm:$0xf]
    %v507 = vld [vmem:[#allocation9 + $0x170] sm:$0xf]
    %v508 = vld [vmem:[#allocation9 + $0x174] sm:$0xf]
    %v509 = vld [vmem:[#allocation9 + $0x178] sm:$0xf]
    %v510 = vld [vmem:[#allocation9 + $0x17c] sm:$0xf]
    %v511 = vld [vmem:[#allocation9 + $0x180] sm:$0xf]
    %v512 = vld [vmem:[#allocation9 + $0x184] sm:$0xf]
    %v513 = vld [vmem:[#allocation9 + $0x188] sm:$0xf]
    %v514 = vld [vmem:[#allocation9 + $0x18c] sm:$0xf]
    %v515 = vld [vmem:[#allocation9 + $0x190] sm:$0xf]
    %v516 = vld [vmem:[#allocation9 + $0x194] sm:$0xf]
    %v517 = vld [vmem:[#allocation9 + $0x198] sm:$0xf]
    %v518 = vld [vmem:[#allocation9 + $0x19c] sm:$0xf]
    %v519 = vld [vmem:[#allocation9 + $0x1a0] sm:$0xf]
    %v520 = vld [vmem:[#allocation9 + $0x1a4] sm:$0xf]
    %v521 = vld [vmem:[#allocation9 + $0x1a8] sm:$0xf]
    %v522 = vld [vmem:[#allocation9 + $0x1ac] sm:$0xf]
    %v523 = vld [vmem:[#allocation9 + $0x1b0] sm:$0xf]
    %v524 = vld [vmem:[#allocation9 + $0x1b4] sm:$0xf]
    %v525 = vld [vmem:[#allocation9 + $0x1b8] sm:$0xf]
    %v526 = vld [vmem:[#allocation9 + $0x1bc] sm:$0xf]
    %v527 = vld [vmem:[#allocation9 + $0x1c0] sm:$0xf]
    %v528 = vld [vmem:[#allocation9 + $0x1c4] sm:$0xf]
    %v529 = vld [vmem:[#allocation9 + $0x1c8] sm:$0xf]
    %v530 = vld [vmem:[#allocation9 + $0x1cc] sm:$0xf]
    %v531 = vld [vmem:[#allocation9 + $0x1d0] sm:$0xf]
    %v532 = vld [vmem:[#allocation9 + $0x1d4] sm:$0xf]
    %v533 = vld [vmem:[#allocation9 + $0x1d8] sm:$0xf]
    %v534 = vld [vmem:[#allocation9 + $0x1dc] sm:$0xf]
    %v535 = vld [vmem:[#allocation9 + $0x1e0] sm:$0xf]
    %v536 = vld [vmem:[#allocation9 + $0x1e4] sm:$0xf]
    %v537 = vld [vmem:[#allocation9 + $0x1e8] sm:$0xf]
    %v538 = vld [vmem:[#allocation9 + $0x1ec] sm:$0xf]
    %v539 = vld [vmem:[#allocation9 + $0x1f0] sm:$0xf]
    %v540 = vld [vmem:[#allocation9 + $0x1f4] sm:$0xf]
    %v541 = vld [vmem:[#allocation9 + $0x1f8] sm:$0xf]
    %v542 = vld [vmem:[#allocation9 + $0x1fc] sm:$0xf]
    %v543 = vld [vmem:[#allocation9 + $0x200] sm:$0xf]
    %v544 = vld [vmem:[#allocation9 + $0x204] sm:$0xf]
    %v545 = vld [vmem:[#allocation9 + $0x208] sm:$0xf]
    %v546 = vld [vmem:[#allocation9 + $0x20c] sm:$0xf]
    %v547 = vld [vmem:[#allocation9 + $0x210] sm:$0xf]
    %v548 = vld [vmem:[#allocation9 + $0x214] sm:$0xf]
    %v549 = vld [vmem:[#allocation9 + $0x218] sm:$0xf]
    %v550 = vld [vmem:[#allocation9 + $0x21c] sm:$0xf]
    %v551 = vld [vmem:[#allocation9 + $0x220] sm:$0xf]
    %v552 = vld [vmem:[#allocation9 + $0x224] sm:$0xf]
    %v553 = vld [vmem:[#allocation9 + $0x228] sm:$0xf]
    %v554 = vld [vmem:[#allocation9 + $0x22c] sm:$0xf]
    %v555 = vld [vmem:[#allocation9 + $0x230] sm:$0xf]
    %v556 = vld [vmem:[#allocation9 + $0x234] sm:$0xf]
    %v557 = vld [vmem:[#allocation9 + $0x238] sm:$0xf]
    %v558 = vld [vmem:[#allocation9 + $0x23c] sm:$0xf]
    %v559 = vld [vmem:[#allocation9 + $0x240] sm:$0xf]
    %v560 = vld [vmem:[#allocation9 + $0x244] sm:$0xf]
    %v561 = vld [vmem:[#allocation9 + $0x248] sm:$0xf]
    %v562 = vld [vmem:[#allocation9 + $0x24c] sm:$0xf]
    %v563 = vld [vmem:[#allocation9 + $0x250] sm:$0xf]
    %v564 = vld [vmem:[#allocation9 + $0x254] sm:$0xf]
    %v565 = vld [vmem:[#allocation9 + $0x258] sm:$0xf]
    %v566 = vld [vmem:[#allocation9 + $0x25c] sm:$0xf]
    %v567 = vld [vmem:[#allocation9 + $0x260] sm:$0xf]
    %v568 = vld [vmem:[#allocation9 + $0x264] sm:$0xf]
    %v569 = vld [vmem:[#allocation9 + $0x268] sm:$0xf]
    %v570 = vld [vmem:[#allocation9 + $0x26c] sm:$0xf]
    %v571 = vld [vmem:[#allocation9 + $0x270] sm:$0xf]
    %v572 = vld [vmem:[#allocation9 + $0x274] sm:$0xf]
    %v573 = vld [vmem:[#allocation9 + $0x278] sm:$0xf]
    %v574 = vld [vmem:[#allocation9 + $0x27c] sm:$0xf]
    %v575 = vld [vmem:[#allocation9 + $0x280] sm:$0xf]
    %v576 = vld [vmem:[#allocation9 + $0x284] sm:$0xf]
    %v577 = vld [vmem:[#allocation9 + $0x288] sm:$0xf]
    %v578 = vld [vmem:[#allocation9 + $0x28c] sm:$0xf]
    %v579 = vld [vmem:[#allocation9 + $0x290] sm:$0xf]
    %v580 = vld [vmem:[#allocation9 + $0x294] sm:$0xf]
    %v581 = vld [vmem:[#allocation9 + $0x298] sm:$0xf]
    %v582 = vld [vmem:[#allocation9 + $0x29c] sm:$0xf]
    %v583 = vld [vmem:[#allocation9 + $0x2a0] sm:$0xf]
    %v584 = vld [vmem:[#allocation9 + $0x2a4] sm:$0xf]
    %v585 = vld [vmem:[#allocation9 + $0x2a8] sm:$0xf]
    %v586 = vld [vmem:[#allocation9 + $0x2ac] sm:$0xf]
    %v587 = vld [vmem:[#allocation9 + $0x2b0] sm:$0xf]
    %v588 = vld [vmem:[#allocation9 + $0x2b4] sm:$0xf]
    %v589 = vld [vmem:[#allocation9 + $0x2b8] sm:$0xf]
    %v590 = vld [vmem:[#allocation9 + $0x2bc] sm:$0xf]
    %v591 = vld [vmem:[#allocation9 + $0x2c0] sm:$0xf]
    %v592 = vld [vmem:[#allocation9 + $0x2c4] sm:$0xf]
    %v593 = vld [vmem:[#allocation9 + $0x2c8] sm:$0xf]
    %v594 = vld [vmem:[#allocation9 + $0x2cc] sm:$0xf]
    %v595 = vld [vmem:[#allocation9 + $0x2d0] sm:$0xf]
    %v596 = vld [vmem:[#allocation9 + $0x2d4] sm:$0xf]
    %v597 = vld [vmem:[#allocation9 + $0x2d8] sm:$0xf]
    %v598 = vld [vmem:[#allocation9 + $0x2dc] sm:$0xf]
    %v599 = vld [vmem:[#allocation9 + $0x2e0] sm:$0xf]
    %v600 = vld [vmem:[#allocation9 + $0x2e4] sm:$0xf]
    %v601 = vld [vmem:[#allocation9 + $0x2e8] sm:$0xf]
    %v602 = vld [vmem:[#allocation9 + $0x2ec] sm:$0xf]
    %v603 = vld [vmem:[#allocation9 + $0x2f0] sm:$0xf]
    %v604 = vld [vmem:[#allocation9 + $0x2f4] sm:$0xf]
    %v605 = vld [vmem:[#allocation9 + $0x2f8] sm:$0xf]
    %v606 = vld [vmem:[#allocation9 + $0x2fc] sm:$0xf]
    %v607 = vld [vmem:[#allocation6 + $0xc] sm:$0xff]
    %v608 = vld [vmem:[#allocation6 + $0x14] sm:$0xf]
    %v609 = vld [vmem:[%s0 + $0x30] sm:$0xff]
    %v610 = vld [vmem:[%s0 + $0x38] sm:$0xff]
    %v611 = vld [vmem:[%s0 + $0x40] sm:$0xff]
    %v612 = vld [vmem:[%s0 + $0x48] sm:$0xff]
    %v613 = vld [vmem:[%s0 + $0x50] sm:$0xff]
    %v614 = vld [vmem:[%s0 + $0x58] sm:$0xff]
    %v615 = vunpack.c.l.bf16 %v609
    %v616 = vunpack.c.h.bf16 %v609
    %v617 = vunpack.c.l.bf16 %v610
    %v618 = vunpack.c.h.bf16 %v610
    %v619 = vunpack.c.l.bf16 %v611
    %v620 = vunpack.c.h.bf16 %v611
    %v621 = vunpack.c.l.bf16 %v612
    %v622 = vunpack.c.h.bf16 %v612
    %v623 = vunpack.c.l.bf16 %v613
    %v624 = vunpack.c.h.bf16 %v613
    %v625 = vunpack.c.l.bf16 %v614
    %v626 = vunpack.c.h.bf16 %v614
    %v627 = vld [vmem:[#allocation2 + $0xc] sm:$0xff]
    %v628 = vld [vmem:[#allocation2 + $0x14] sm:$0xf]
    %v631 = vperm.slane %v627, 0
    %v632 = vperm.slane %v627, 1
    %v633 = vperm.slane %v627, 2
    %v634 = vperm.slane %v627, 3
    %v635 = vperm.slane %v627, 4
    %v636 = vperm.slane %v627, 5
    %v637 = vperm.slane %v627, 6
    %v638 = vperm.slane %v627, 7
    %v639 = vperm.slane %v628, 0
    %v640 = vperm.slane %v628, 1
    %v641 = vperm.slane %v628, 2
    %v642 = vperm.slane %v628, 3
    %v655 = vmul.f32 %v615, %v631
    %v656 = vmul.f32 %v616, %v632
    %v657 = vmul.f32 %v617, %v633
    %v658 = vmul.f32 %v618, %v634
    %v659 = vmul.f32 %v619, %v635
    %v660 = vmul.f32 %v620, %v636
    %v661 = vmul.f32 %v621, %v637
    %v662 = vmul.f32 %v622, %v638
    %v663 = vmul.f32 %v623, %v639
    %v664 = vmul.f32 %v624, %v640
    %v665 = vmul.f32 %v625, %v641
    %v666 = vmul.f32 %v626, %v642
    %v669 = vperm.slane %v607, 0
    %v670 = vperm.slane %v607, 1
    %v671 = vperm.slane %v607, 2
    %v672 = vperm.slane %v607, 3
    %v673 = vperm.slane %v607, 4
    %v674 = vperm.slane %v607, 5
    %v675 = vperm.slane %v607, 6
    %v676 = vperm.slane %v607, 7
    %v677 = vperm.slane %v608, 0
    %v678 = vperm.slane %v608, 1
    %v679 = vperm.slane %v608, 2
    %v680 = vperm.slane %v608, 3
    %v693 = vadd.f32 %v669, %v655
    %v694 = vadd.f32 %v670, %v656
    %v695 = vadd.f32 %v671, %v657
    %v696 = vadd.f32 %v672, %v658
    %v697 = vadd.f32 %v673, %v659
    %v698 = vadd.f32 %v674, %v660
    %v699 = vadd.f32 %v675, %v661
    %v700 = vadd.f32 %v676, %v662
    %v701 = vadd.f32 %v677, %v663
    %v702 = vadd.f32 %v678, %v664
    %v703 = vadd.f32 %v679, %v665
    %v704 = vadd.f32 %v680, %v666
    %v705 = vld [vmem:[%s247 + $0x30] sm:$0xff]
    %v706 = vld [vmem:[%s247 + $0x38] sm:$0xff]
    %v707 = vld [vmem:[%s247 + $0x40] sm:$0xff]
    %v708 = vld [vmem:[%s247 + $0x48] sm:$0xff]
    %v709 = vld [vmem:[%s247 + $0x50] sm:$0xff]
    %v710 = vld [vmem:[%s247 + $0x58] sm:$0xff]
    %v711 = vunpack.c.l.bf16 %v705
    %v712 = vunpack.c.h.bf16 %v705
    %v713 = vunpack.c.l.bf16 %v706
    %v714 = vunpack.c.h.bf16 %v706
    %v715 = vunpack.c.l.bf16 %v707
    %v716 = vunpack.c.h.bf16 %v707
    %v717 = vunpack.c.l.bf16 %v708
    %v718 = vunpack.c.h.bf16 %v708
    %v719 = vunpack.c.l.bf16 %v709
    %v720 = vunpack.c.h.bf16 %v709
    %v721 = vunpack.c.l.bf16 %v710
    %v722 = vunpack.c.h.bf16 %v710
    %v723 = vld [vmem:[%s266 + $0xc] sm:$0xff]
    %v724 = vld [vmem:[%s266 + $0x14] sm:$0xf]
    %v727 = vperm.slane %v723, 0
    %v728 = vperm.slane %v723, 1
    %v729 = vperm.slane %v723, 2
    %v730 = vperm.slane %v723, 3
    %v731 = vperm.slane %v723, 4
    %v732 = vperm.slane %v723, 5
    %v733 = vperm.slane %v723, 6
    %v734 = vperm.slane %v723, 7
    %v735 = vperm.slane %v724, 0
    %v736 = vperm.slane %v724, 1
    %v737 = vperm.slane %v724, 2
    %v738 = vperm.slane %v724, 3
    %v751 = vmul.f32 %v711, %v727
    %v752 = vmul.f32 %v712, %v728
    %v753 = vmul.f32 %v713, %v729
    %v754 = vmul.f32 %v714, %v730
    %v755 = vmul.f32 %v715, %v731
    %v756 = vmul.f32 %v716, %v732
    %v757 = vmul.f32 %v717, %v733
    %v758 = vmul.f32 %v718, %v734
    %v759 = vmul.f32 %v719, %v735
    %v760 = vmul.f32 %v720, %v736
    %v761 = vmul.f32 %v721, %v737
    %v762 = vmul.f32 %v722, %v738
    %v763 = vadd.f32 %v693, %v751
    %v764 = vadd.f32 %v694, %v752
    %v765 = vadd.f32 %v695, %v753
    %v766 = vadd.f32 %v696, %v754
    %v767 = vadd.f32 %v697, %v755
    %v768 = vadd.f32 %v698, %v756
    %v769 = vadd.f32 %v699, %v757
    %v770 = vadd.f32 %v700, %v758
    %v771 = vadd.f32 %v701, %v759
    %v772 = vadd.f32 %v702, %v760
    %v773 = vadd.f32 %v703, %v761
    %v774 = vadd.f32 %v704, %v762
    %v775 = vld [vmem:[%s319 + $0x30] sm:$0xff]
    %v776 = vld [vmem:[%s319 + $0x38] sm:$0xff]
    %v777 = vld [vmem:[%s319 + $0x40] sm:$0xff]
    %v778 = vld [vmem:[%s319 + $0x48] sm:$0xff]
    %v779 = vld [vmem:[%s319 + $0x50] sm:$0xff]
    %v780 = vld [vmem:[%s319 + $0x58] sm:$0xff]
    %v781 = vunpack.c.l.bf16 %v775
    %v782 = vunpack.c.h.bf16 %v775
    %v783 = vunpack.c.l.bf16 %v776
    %v784 = vunpack.c.h.bf16 %v776
    %v785 = vunpack.c.l.bf16 %v777
    %v786 = vunpack.c.h.bf16 %v777
    %v787 = vunpack.c.l.bf16 %v778
    %v788 = vunpack.c.h.bf16 %v778
    %v789 = vunpack.c.l.bf16 %v779
    %v790 = vunpack.c.h.bf16 %v779
    %v791 = vunpack.c.l.bf16 %v780
    %v792 = vunpack.c.h.bf16 %v780
    %v793 = vld [vmem:[%s338 + $0xc] sm:$0xff]
    %v794 = vld [vmem:[%s338 + $0x14] sm:$0xf]
    %v797 = vperm.slane %v793, 0
    %v798 = vperm.slane %v793, 1
    %v799 = vperm.slane %v793, 2
    %v800 = vperm.slane %v793, 3
    %v801 = vperm.slane %v793, 4
    %v802 = vperm.slane %v793, 5
    %v803 = vperm.slane %v793, 6
    %v804 = vperm.slane %v793, 7
    %v805 = vperm.slane %v794, 0
    %v806 = vperm.slane %v794, 1
    %v807 = vperm.slane %v794, 2
    %v808 = vperm.slane %v794, 3
    %v821 = vmul.f32 %v781, %v797
    %v822 = vmul.f32 %v782, %v798
    %v823 = vmul.f32 %v783, %v799
    %v824 = vmul.f32 %v784, %v800
    %v825 = vmul.f32 %v785, %v801
    %v826 = vmul.f32 %v786, %v802
    %v827 = vmul.f32 %v787, %v803
    %v828 = vmul.f32 %v788, %v804
    %v829 = vmul.f32 %v789, %v805
    %v830 = vmul.f32 %v790, %v806
    %v831 = vmul.f32 %v791, %v807
    %v832 = vmul.f32 %v792, %v808
    %v833 = vadd.f32 %v763, %v821
    %v834 = vadd.f32 %v764, %v822
    %v835 = vadd.f32 %v765, %v823
    %v836 = vadd.f32 %v766, %v824
    %v837 = vadd.f32 %v767, %v825
    %v838 = vadd.f32 %v768, %v826
    %v839 = vadd.f32 %v769, %v827
    %v840 = vadd.f32 %v770, %v828
    %v841 = vadd.f32 %v771, %v829
    %v842 = vadd.f32 %v772, %v830
    %v843 = vadd.f32 %v773, %v831
    %v844 = vadd.f32 %v774, %v832
    %v845 = vmax.f32 %v833, 0.0
    %v846 = vmax.f32 %v834, 0.0
    %v847 = vmax.f32 %v835, 0.0
    %v848 = vmax.f32 %v836, 0.0
    %v849 = vmax.f32 %v837, 0.0
    %v850 = vmax.f32 %v838, 0.0
    %v851 = vmax.f32 %v839, 0.0
    %v852 = vmax.f32 %v840, 0.0
    %v853 = vmax.f32 %v841, 0.0
    %v854 = vmax.f32 %v842, 0.0
    %v855 = vmax.f32 %v843, 0.0
    %v856 = vmax.f32 %v844, 0.0
    %v857 = vpack.c.bf16 %v845, %v845
    %v858 = vpack.c.bf16 %v846, %v846
    %v859 = vpack.c.bf16 %v847, %v847
    %v860 = vpack.c.bf16 %v848, %v848
    %v861 = vpack.c.bf16 %v849, %v849
    %v862 = vpack.c.bf16 %v850, %v850
    %v863 = vpack.c.bf16 %v851, %v851
    %v864 = vpack.c.bf16 %v852, %v852
    %v865 = vpack.c.bf16 %v853, %v853
    %v866 = vpack.c.bf16 %v854, %v854
    %v867 = vpack.c.bf16 %v855, %v855
    %v868 = vpack.c.bf16 %v856, %v856
    %v869 = vld [vmem:[#allocation9 + $0x300] sm:$0xf]
    %v870 = vld [vmem:[#allocation9 + $0x304] sm:$0xf]
    %v871 = vld [vmem:[#allocation9 + $0x308] sm:$0xf]
    %v872 = vld [vmem:[#allocation9 + $0x30c] sm:$0xf]
    %v873 = vld [vmem:[#allocation9 + $0x310] sm:$0xf]
    %v874 = vld [vmem:[#allocation9 + $0x314] sm:$0xf]
    %v875 = vld [vmem:[#allocation9 + $0x318] sm:$0xf]
    %v876 = vld [vmem:[#allocation9 + $0x31c] sm:$0xf]
    %v877 = vld [vmem:[#allocation9 + $0x320] sm:$0xf]
    %v878 = vld [vmem:[#allocation9 + $0x324] sm:$0xf]
    %v879 = vld [vmem:[#allocation9 + $0x328] sm:$0xf]
    %v880 = vld [vmem:[#allocation9 + $0x32c] sm:$0xf]
    %v881 = vld [vmem:[#allocation9 + $0x330] sm:$0xf]
    %v882 = vld [vmem:[#allocation9 + $0x334] sm:$0xf]
    %v883 = vld [vmem:[#allocation9 + $0x338] sm:$0xf]
    %v884 = vld [vmem:[#allocation9 + $0x33c] sm:$0xf]
    %v885 = vld [vmem:[#allocation9 + $0x340] sm:$0xf]
    %v886 = vld [vmem:[#allocation9 + $0x344] sm:$0xf]
    %v887 = vld [vmem:[#allocation9 + $0x348] sm:$0xf]
    %v888 = vld [vmem:[#allocation9 + $0x34c] sm:$0xf]
    %v889 = vld [vmem:[#allocation9 + $0x350] sm:$0xf]
    %v890 = vld [vmem:[#allocation9 + $0x354] sm:$0xf]
    %v891 = vld [vmem:[#allocation9 + $0x358] sm:$0xf]
    %v892 = vld [vmem:[#allocation9 + $0x35c] sm:$0xf]
    %v893 = vld [vmem:[#allocation9 + $0x360] sm:$0xf]
    %v894 = vld [vmem:[#allocation9 + $0x364] sm:$0xf]
    %v895 = vld [vmem:[#allocation9 + $0x368] sm:$0xf]
    %v896 = vld [vmem:[#allocation9 + $0x36c] sm:$0xf]
    %v897 = vld [vmem:[#allocation9 + $0x370] sm:$0xf]
    %v898 = vld [vmem:[#allocation9 + $0x374] sm:$0xf]
    %v899 = vld [vmem:[#allocation9 + $0x378] sm:$0xf]
    %v900 = vld [vmem:[#allocation9 + $0x37c] sm:$0xf]
    %v901 = vld [vmem:[#allocation9 + $0x380] sm:$0xf]
    %v902 = vld [vmem:[#allocation9 + $0x384] sm:$0xf]
    %v903 = vld [vmem:[#allocation9 + $0x388] sm:$0xf]
    %v904 = vld [vmem:[#allocation9 + $0x38c] sm:$0xf]
    %v905 = vld [vmem:[#allocation9 + $0x390] sm:$0xf]
    %v906 = vld [vmem:[#allocation9 + $0x394] sm:$0xf]
    %v907 = vld [vmem:[#allocation9 + $0x398] sm:$0xf]
    %v908 = vld [vmem:[#allocation9 + $0x39c] sm:$0xf]
    %v909 = vld [vmem:[#allocation9 + $0x3a0] sm:$0xf]
    %v910 = vld [vmem:[#allocation9 + $0x3a4] sm:$0xf]
    %v911 = vld [vmem:[#allocation9 + $0x3a8] sm:$0xf]
    %v912 = vld [vmem:[#allocation9 + $0x3ac] sm:$0xf]
    %v913 = vld [vmem:[#allocation9 + $0x3b0] sm:$0xf]
    %v914 = vld [vmem:[#allocation9 + $0x3b4] sm:$0xf]
    %v915 = vld [vmem:[#allocation9 + $0x3b8] sm:$0xf]
    %v916 = vld [vmem:[#allocation9 + $0x3bc] sm:$0xf]
    %v917 = vld [vmem:[#allocation9 + $0x3c0] sm:$0xf]
    %v918 = vld [vmem:[#allocation9 + $0x3c4] sm:$0xf]
    %v919 = vld [vmem:[#allocation9 + $0x3c8] sm:$0xf]
    %v920 = vld [vmem:[#allocation9 + $0x3cc] sm:$0xf]
    %v921 = vld [vmem:[#allocation9 + $0x3d0] sm:$0xf]
    %v922 = vld [vmem:[#allocation9 + $0x3d4] sm:$0xf]
    %v923 = vld [vmem:[#allocation9 + $0x3d8] sm:$0xf]
    %v924 = vld [vmem:[#allocation9 + $0x3dc] sm:$0xf]
    %v925 = vld [vmem:[#allocation9 + $0x3e0] sm:$0xf]
    %v926 = vld [vmem:[#allocation9 + $0x3e4] sm:$0xf]
    %v927 = vld [vmem:[#allocation9 + $0x3e8] sm:$0xf]
    %v928 = vld [vmem:[#allocation9 + $0x3ec] sm:$0xf]
    %v929 = vld [vmem:[#allocation9 + $0x3f0] sm:$0xf]
    %v930 = vld [vmem:[#allocation9 + $0x3f4] sm:$0xf]
    %v931 = vld [vmem:[#allocation9 + $0x3f8] sm:$0xf]
    %v932 = vld [vmem:[#allocation9 + $0x3fc] sm:$0xf]
    %v933 = vld [vmem:[#allocation9 + $0x400] sm:$0xf]
    %v934 = vld [vmem:[#allocation9 + $0x404] sm:$0xf]
    %v935 = vld [vmem:[#allocation9 + $0x408] sm:$0xf]
    %v936 = vld [vmem:[#allocation9 + $0x40c] sm:$0xf]
    %v937 = vld [vmem:[#allocation9 + $0x410] sm:$0xf]
    %v938 = vld [vmem:[#allocation9 + $0x414] sm:$0xf]
    %v939 = vld [vmem:[#allocation9 + $0x418] sm:$0xf]
    %v940 = vld [vmem:[#allocation9 + $0x41c] sm:$0xf]
    %v941 = vld [vmem:[#allocation9 + $0x420] sm:$0xf]
    %v942 = vld [vmem:[#allocation9 + $0x424] sm:$0xf]
    %v943 = vld [vmem:[#allocation9 + $0x428] sm:$0xf]
    %v944 = vld [vmem:[#allocation9 + $0x42c] sm:$0xf]
    %v945 = vld [vmem:[#allocation9 + $0x430] sm:$0xf]
    %v946 = vld [vmem:[#allocation9 + $0x434] sm:$0xf]
    %v947 = vld [vmem:[#allocation9 + $0x438] sm:$0xf]
    %v948 = vld [vmem:[#allocation9 + $0x43c] sm:$0xf]
    %v949 = vld [vmem:[#allocation9 + $0x440] sm:$0xf]
    %v950 = vld [vmem:[#allocation9 + $0x444] sm:$0xf]
    %v951 = vld [vmem:[#allocation9 + $0x448] sm:$0xf]
    %v952 = vld [vmem:[#allocation9 + $0x44c] sm:$0xf]
    %v953 = vld [vmem:[#allocation9 + $0x450] sm:$0xf]
    %v954 = vld [vmem:[#allocation9 + $0x454] sm:$0xf]
    %v955 = vld [vmem:[#allocation9 + $0x458] sm:$0xf]
    %v956 = vld [vmem:[#allocation9 + $0x45c] sm:$0xf]
    %v957 = vld [vmem:[#allocation9 + $0x460] sm:$0xf]
    %v958 = vld [vmem:[#allocation9 + $0x464] sm:$0xf]
    %v959 = vld [vmem:[#allocation9 + $0x468] sm:$0xf]
    %v960 = vld [vmem:[#allocation9 + $0x46c] sm:$0xf]
    %v961 = vld [vmem:[#allocation9 + $0x470] sm:$0xf]
    %v962 = vld [vmem:[#allocation9 + $0x474] sm:$0xf]
    %v963 = vld [vmem:[#allocation9 + $0x478] sm:$0xf]
    %v964 = vld [vmem:[#allocation9 + $0x47c] sm:$0xf]
    %v965 = vld [vmem:[#allocation9 + $0x480] sm:$0xf]
    %v966 = vld [vmem:[#allocation9 + $0x484] sm:$0xf]
    %v967 = vld [vmem:[#allocation9 + $0x488] sm:$0xf]
    %v968 = vld [vmem:[#allocation9 + $0x48c] sm:$0xf]
    %v969 = vld [vmem:[#allocation9 + $0x490] sm:$0xf]
    %v970 = vld [vmem:[#allocation9 + $0x494] sm:$0xf]
    %v971 = vld [vmem:[#allocation9 + $0x498] sm:$0xf]
    %v972 = vld [vmem:[#allocation9 + $0x49c] sm:$0xf]
    %v973 = vld [vmem:[#allocation9 + $0x4a0] sm:$0xf]
    %v974 = vld [vmem:[#allocation9 + $0x4a4] sm:$0xf]
    %v975 = vld [vmem:[#allocation9 + $0x4a8] sm:$0xf]
    %v976 = vld [vmem:[#allocation9 + $0x4ac] sm:$0xf]
    %v977 = vld [vmem:[#allocation9 + $0x4b0] sm:$0xf]
    %v978 = vld [vmem:[#allocation9 + $0x4b4] sm:$0xf]
    %v979 = vld [vmem:[#allocation9 + $0x4b8] sm:$0xf]
    %v980 = vld [vmem:[#allocation9 + $0x4bc] sm:$0xf]
    %v981 = vld [vmem:[#allocation9 + $0x4c0] sm:$0xf]
    %v982 = vld [vmem:[#allocation9 + $0x4c4] sm:$0xf]
    %v983 = vld [vmem:[#allocation9 + $0x4c8] sm:$0xf]
    %v984 = vld [vmem:[#allocation9 + $0x4cc] sm:$0xf]
    %v985 = vld [vmem:[#allocation9 + $0x4d0] sm:$0xf]
    %v986 = vld [vmem:[#allocation9 + $0x4d4] sm:$0xf]
    %v987 = vld [vmem:[#allocation9 + $0x4d8] sm:$0xf]
    %v988 = vld [vmem:[#allocation9 + $0x4dc] sm:$0xf]
    %v989 = vld [vmem:[#allocation9 + $0x4e0] sm:$0xf]
    %v990 = vld [vmem:[#allocation9 + $0x4e4] sm:$0xf]
    %v991 = vld [vmem:[#allocation9 + $0x4e8] sm:$0xf]
    %v992 = vld [vmem:[#allocation9 + $0x4ec] sm:$0xf]
    %v993 = vld [vmem:[#allocation9 + $0x4f0] sm:$0xf]
    %v994 = vld [vmem:[#allocation9 + $0x4f4] sm:$0xf]
    %v995 = vld [vmem:[#allocation9 + $0x4f8] sm:$0xf]
    %v996 = vld [vmem:[#allocation9 + $0x4fc] sm:$0xf]
    %v997 = vld [vmem:[#allocation9 + $0x500] sm:$0xf]
    %v998 = vld [vmem:[#allocation9 + $0x504] sm:$0xf]
    %v999 = vld [vmem:[#allocation9 + $0x508] sm:$0xf]
    %v1000 = vld [vmem:[#allocation9 + $0x50c] sm:$0xf]
    %v1001 = vld [vmem:[#allocation9 + $0x510] sm:$0xf]
    %v1002 = vld [vmem:[#allocation9 + $0x514] sm:$0xf]
    %v1003 = vld [vmem:[#allocation9 + $0x518] sm:$0xf]
    %v1004 = vld [vmem:[#allocation9 + $0x51c] sm:$0xf]
    %v1005 = vld [vmem:[#allocation9 + $0x520] sm:$0xf]
    %v1006 = vld [vmem:[#allocation9 + $0x524] sm:$0xf]
    %v1007 = vld [vmem:[#allocation9 + $0x528] sm:$0xf]
    %v1008 = vld [vmem:[#allocation9 + $0x52c] sm:$0xf]
    %v1009 = vld [vmem:[#allocation9 + $0x530] sm:$0xf]
    %v1010 = vld [vmem:[#allocation9 + $0x534] sm:$0xf]
    %v1011 = vld [vmem:[#allocation9 + $0x538] sm:$0xf]
    %v1012 = vld [vmem:[#allocation9 + $0x53c] sm:$0xf]
    %v1013 = vld [vmem:[#allocation9 + $0x540] sm:$0xf]
    %v1014 = vld [vmem:[#allocation9 + $0x544] sm:$0xf]
    %v1015 = vld [vmem:[#allocation9 + $0x548] sm:$0xf]
    %v1016 = vld [vmem:[#allocation9 + $0x54c] sm:$0xf]
    %v1017 = vld [vmem:[#allocation9 + $0x550] sm:$0xf]
    %v1018 = vld [vmem:[#allocation9 + $0x554] sm:$0xf]
    %v1019 = vld [vmem:[#allocation9 + $0x558] sm:$0xf]
    %v1020 = vld [vmem:[#allocation9 + $0x55c] sm:$0xf]
    %v1021 = vld [vmem:[#allocation9 + $0x560] sm:$0xf]
    %v1022 = vld [vmem:[#allocation9 + $0x564] sm:$0xf]
    %v1023 = vld [vmem:[#allocation9 + $0x568] sm:$0xf]
    %v1024 = vld [vmem:[#allocation9 + $0x56c] sm:$0xf]
    %v1025 = vld [vmem:[#allocation9 + $0x570] sm:$0xf]
    %v1026 = vld [vmem:[#allocation9 + $0x574] sm:$0xf]
    %v1027 = vld [vmem:[#allocation9 + $0x578] sm:$0xf]
    %v1028 = vld [vmem:[#allocation9 + $0x57c] sm:$0xf]
    %v1029 = vld [vmem:[#allocation9 + $0x580] sm:$0xf]
    %v1030 = vld [vmem:[#allocation9 + $0x584] sm:$0xf]
    %v1031 = vld [vmem:[#allocation9 + $0x588] sm:$0xf]
    %v1032 = vld [vmem:[#allocation9 + $0x58c] sm:$0xf]
    %v1033 = vld [vmem:[#allocation9 + $0x590] sm:$0xf]
    %v1034 = vld [vmem:[#allocation9 + $0x594] sm:$0xf]
    %v1035 = vld [vmem:[#allocation9 + $0x598] sm:$0xf]
    %v1036 = vld [vmem:[#allocation9 + $0x59c] sm:$0xf]
    %v1037 = vld [vmem:[#allocation9 + $0x5a0] sm:$0xf]
    %v1038 = vld [vmem:[#allocation9 + $0x5a4] sm:$0xf]
    %v1039 = vld [vmem:[#allocation9 + $0x5a8] sm:$0xf]
    %v1040 = vld [vmem:[#allocation9 + $0x5ac] sm:$0xf]
    %v1041 = vld [vmem:[#allocation9 + $0x5b0] sm:$0xf]
    %v1042 = vld [vmem:[#allocation9 + $0x5b4] sm:$0xf]
    %v1043 = vld [vmem:[#allocation9 + $0x5b8] sm:$0xf]
    %v1044 = vld [vmem:[#allocation9 + $0x5bc] sm:$0xf]
    %v1045 = vld [vmem:[#allocation9 + $0x5c0] sm:$0xf]
    %v1046 = vld [vmem:[#allocation9 + $0x5c4] sm:$0xf]
    %v1047 = vld [vmem:[#allocation9 + $0x5c8] sm:$0xf]
    %v1048 = vld [vmem:[#allocation9 + $0x5cc] sm:$0xf]
    %v1049 = vld [vmem:[#allocation9 + $0x5d0] sm:$0xf]
    %v1050 = vld [vmem:[#allocation9 + $0x5d4] sm:$0xf]
    %v1051 = vld [vmem:[#allocation9 + $0x5d8] sm:$0xf]
    %v1052 = vld [vmem:[#allocation9 + $0x5dc] sm:$0xf]
    %v1053 = vld [vmem:[#allocation9 + $0x5e0] sm:$0xf]
    %v1054 = vld [vmem:[#allocation9 + $0x5e4] sm:$0xf]
    %v1055 = vld [vmem:[#allocation9 + $0x5e8] sm:$0xf]
    %v1056 = vld [vmem:[#allocation9 + $0x5ec] sm:$0xf]
    %v1057 = vld [vmem:[#allocation9 + $0x5f0] sm:$0xf]
    %v1058 = vld [vmem:[#allocation9 + $0x5f4] sm:$0xf]
    %v1059 = vld [vmem:[#allocation9 + $0x5f8] sm:$0xf]
    %v1060 = vld [vmem:[#allocation9 + $0x5fc] sm:$0xf]
    %v1253 = vunpack.c.l.b16 %v869
    %v1254 = vunpack.c.l.b16 %v870
    %v1255 = vunpack.c.l.b16 %v871
    %v1256 = vunpack.c.l.b16 %v872
    %v1257 = vunpack.c.l.b16 %v873
    %v1258 = vunpack.c.l.b16 %v874
    %v1259 = vunpack.c.l.b16 %v875
    %v1260 = vunpack.c.l.b16 %v876
    %v1261 = vunpack.c.l.b16 %v877
    %v1262 = vunpack.c.l.b16 %v878
    %v1263 = vunpack.c.l.b16 %v879
    %v1264 = vunpack.c.l.b16 %v880
    %v1265 = vunpack.c.l.b16 %v881
    %v1266 = vunpack.c.l.b16 %v882
    %v1267 = vunpack.c.l.b16 %v883
    %v1268 = vunpack.c.l.b16 %v884
    %v1269 = vunpack.c.l.b16 %v885
    %v1270 = vunpack.c.l.b16 %v886
    %v1271 = vunpack.c.l.b16 %v887
    %v1272 = vunpack.c.l.b16 %v888
    %v1273 = vunpack.c.l.b16 %v889
    %v1274 = vunpack.c.l.b16 %v890
    %v1275 = vunpack.c.l.b16 %v891
    %v1276 = vunpack.c.l.b16 %v892
    %v1277 = vunpack.c.l.b16 %v893
    %v1278 = vunpack.c.l.b16 %v894
    %v1279 = vunpack.c.l.b16 %v895
    %v1280 = vunpack.c.l.b16 %v896
    %v1281 = vunpack.c.l.b16 %v897
    %v1282 = vunpack.c.l.b16 %v898
    %v1283 = vunpack.c.l.b16 %v899
    %v1284 = vunpack.c.l.b16 %v900
    %v1285 = vunpack.c.l.b16 %v901
    %v1286 = vunpack.c.l.b16 %v902
    %v1287 = vunpack.c.l.b16 %v903
    %v1288 = vunpack.c.l.b16 %v904
    %v1289 = vunpack.c.l.b16 %v905
    %v1290 = vunpack.c.l.b16 %v906
    %v1291 = vunpack.c.l.b16 %v907
    %v1292 = vunpack.c.l.b16 %v908
    %v1293 = vunpack.c.l.b16 %v909
    %v1294 = vunpack.c.l.b16 %v910
    %v1295 = vunpack.c.l.b16 %v911
    %v1296 = vunpack.c.l.b16 %v912
    %v1297 = vunpack.c.l.b16 %v913
    %v1298 = vunpack.c.l.b16 %v914
    %v1299 = vunpack.c.l.b16 %v915
    %v1300 = vunpack.c.l.b16 %v916
    %v1301 = vunpack.c.l.b16 %v917
    %v1302 = vunpack.c.l.b16 %v918
    %v1303 = vunpack.c.l.b16 %v919
    %v1304 = vunpack.c.l.b16 %v920
    %v1305 = vunpack.c.l.b16 %v921
    %v1306 = vunpack.c.l.b16 %v922
    %v1307 = vunpack.c.l.b16 %v923
    %v1308 = vunpack.c.l.b16 %v924
    %v1309 = vunpack.c.l.b16 %v925
    %v1310 = vunpack.c.l.b16 %v926
    %v1311 = vunpack.c.l.b16 %v927
    %v1312 = vunpack.c.l.b16 %v928
    %v1313 = vunpack.c.l.b16 %v929
    %v1314 = vunpack.c.l.b16 %v930
    %v1315 = vunpack.c.l.b16 %v931
    %v1316 = vunpack.c.l.b16 %v932
    %v1317 = vunpack.c.l.b16 %v933
    %v1318 = vunpack.c.l.b16 %v934
    %v1319 = vunpack.c.l.b16 %v935
    %v1320 = vunpack.c.l.b16 %v936
    %v1321 = vunpack.c.l.b16 %v937
    %v1322 = vunpack.c.l.b16 %v938
    %v1323 = vunpack.c.l.b16 %v939
    %v1324 = vunpack.c.l.b16 %v940
    %v1325 = vunpack.c.l.b16 %v941
    %v1326 = vunpack.c.l.b16 %v942
    %v1327 = vunpack.c.l.b16 %v943
    %v1328 = vunpack.c.l.b16 %v944
    %v1329 = vunpack.c.l.b16 %v945
    %v1330 = vunpack.c.l.b16 %v946
    %v1331 = vunpack.c.l.b16 %v947
    %v1332 = vunpack.c.l.b16 %v948
    %v1333 = vunpack.c.l.b16 %v949
    %v1334 = vunpack.c.l.b16 %v950
    %v1335 = vunpack.c.l.b16 %v951
    %v1336 = vunpack.c.l.b16 %v952
    %v1337 = vunpack.c.l.b16 %v953
    %v1338 = vunpack.c.l.b16 %v954
    %v1339 = vunpack.c.l.b16 %v955
    %v1340 = vunpack.c.l.b16 %v956
    %v1341 = vunpack.c.l.b16 %v957
    %v1342 = vunpack.c.l.b16 %v958
    %v1343 = vunpack.c.l.b16 %v959
    %v1344 = vunpack.c.l.b16 %v960
    %v1345 = vunpack.c.l.b16 %v961
    %v1346 = vunpack.c.l.b16 %v962
    %v1347 = vunpack.c.l.b16 %v963
    %v1348 = vunpack.c.l.b16 %v964
    %v1349 = vunpack.c.l.b16 %v965
    %v1350 = vunpack.c.l.b16 %v966
    %v1351 = vunpack.c.l.b16 %v967
    %v1352 = vunpack.c.l.b16 %v968
    %v1353 = vunpack.c.l.b16 %v969
    %v1354 = vunpack.c.l.b16 %v970
    %v1355 = vunpack.c.l.b16 %v971
    %v1356 = vunpack.c.l.b16 %v972
    %v1357 = vunpack.c.l.b16 %v973
    %v1358 = vunpack.c.l.b16 %v974
    %v1359 = vunpack.c.l.b16 %v975
    %v1360 = vunpack.c.l.b16 %v976
    %v1361 = vunpack.c.l.b16 %v977
    %v1362 = vunpack.c.l.b16 %v978
    %v1363 = vunpack.c.l.b16 %v979
    %v1364 = vunpack.c.l.b16 %v980
    %v1365 = vunpack.c.l.b16 %v981
    %v1366 = vunpack.c.l.b16 %v982
    %v1367 = vunpack.c.l.b16 %v983
    %v1368 = vunpack.c.l.b16 %v984
    %v1369 = vunpack.c.l.b16 %v985
    %v1370 = vunpack.c.l.b16 %v986
    %v1371 = vunpack.c.l.b16 %v987
    %v1372 = vunpack.c.l.b16 %v988
    %v1373 = vunpack.c.l.b16 %v989
    %v1374 = vunpack.c.l.b16 %v990
    %v1375 = vunpack.c.l.b16 %v991
    %v1376 = vunpack.c.l.b16 %v992
    %v1377 = vunpack.c.l.b16 %v993
    %v1378 = vunpack.c.l.b16 %v994
    %v1379 = vunpack.c.l.b16 %v995
    %v1380 = vunpack.c.l.b16 %v996
    %v1381 = vunpack.c.l.b16 %v997
    %v1382 = vunpack.c.l.b16 %v998
    %v1383 = vunpack.c.l.b16 %v999
    %v1384 = vunpack.c.l.b16 %v1000
    %v1385 = vunpack.c.l.b16 %v1001
    %v1386 = vunpack.c.l.b16 %v1002
    %v1387 = vunpack.c.l.b16 %v1003
    %v1388 = vunpack.c.l.b16 %v1004
    %v1389 = vunpack.c.l.b16 %v1005
    %v1390 = vunpack.c.l.b16 %v1006
    %v1391 = vunpack.c.l.b16 %v1007
    %v1392 = vunpack.c.l.b16 %v1008
    %v1393 = vunpack.c.l.b16 %v1009
    %v1394 = vunpack.c.l.b16 %v1010
    %v1395 = vunpack.c.l.b16 %v1011
    %v1396 = vunpack.c.l.b16 %v1012
    %v1397 = vunpack.c.l.b16 %v1013
    %v1398 = vunpack.c.l.b16 %v1014
    %v1399 = vunpack.c.l.b16 %v1015
    %v1400 = vunpack.c.l.b16 %v1016
    %v1401 = vunpack.c.l.b16 %v1017
    %v1402 = vunpack.c.l.b16 %v1018
    %v1403 = vunpack.c.l.b16 %v1019
    %v1404 = vunpack.c.l.b16 %v1020
    %v1405 = vunpack.c.l.b16 %v1021
    %v1406 = vunpack.c.l.b16 %v1022
    %v1407 = vunpack.c.l.b16 %v1023
    %v1408 = vunpack.c.l.b16 %v1024
    %v1409 = vunpack.c.l.b16 %v1025
    %v1410 = vunpack.c.l.b16 %v1026
    %v1411 = vunpack.c.l.b16 %v1027
    %v1412 = vunpack.c.l.b16 %v1028
    %v1413 = vunpack.c.l.b16 %v1029
    %v1414 = vunpack.c.l.b16 %v1030
    %v1415 = vunpack.c.l.b16 %v1031
    %v1416 = vunpack.c.l.b16 %v1032
    %v1417 = vunpack.c.l.b16 %v1033
    %v1418 = vunpack.c.l.b16 %v1034
    %v1419 = vunpack.c.l.b16 %v1035
    %v1420 = vunpack.c.l.b16 %v1036
    %v1421 = vunpack.c.l.b16 %v1037
    %v1422 = vunpack.c.l.b16 %v1038
    %v1423 = vunpack.c.l.b16 %v1039
    %v1424 = vunpack.c.l.b16 %v1040
    %v1425 = vunpack.c.l.b16 %v1041
    %v1426 = vunpack.c.l.b16 %v1042
    %v1427 = vunpack.c.l.b16 %v1043
    %v1428 = vunpack.c.l.b16 %v1044
    %v1429 = vunpack.c.l.b16 %v1045
    %v1430 = vunpack.c.l.b16 %v1046
    %v1431 = vunpack.c.l.b16 %v1047
    %v1432 = vunpack.c.l.b16 %v1048
    %v1433 = vunpack.c.l.b16 %v1049
    %v1434 = vunpack.c.l.b16 %v1050
    %v1435 = vunpack.c.l.b16 %v1051
    %v1436 = vunpack.c.l.b16 %v1052
    %v1437 = vunpack.c.l.b16 %v1053
    %v1438 = vunpack.c.l.b16 %v1054
    %v1439 = vunpack.c.l.b16 %v1055
    %v1440 = vunpack.c.l.b16 %v1056
    %v1441 = vunpack.c.l.b16 %v1057
    %v1442 = vunpack.c.l.b16 %v1058
    %v1443 = vunpack.c.l.b16 %v1059
    %v1444 = vunpack.c.l.b16 %v1060
    %v1445 = vpack.c.b16 %v1254, %v1253
    %v1446 = vpack.c.b16 %v1256, %v1255
    %v1447 = vpack.c.b16 %v1258, %v1257
    %v1448 = vpack.c.b16 %v1260, %v1259
    %v1449 = vpack.c.b16 %v1262, %v1261
    %v1450 = vpack.c.b16 %v1264, %v1263
    %v1451 = vpack.c.b16 %v1266, %v1265
    %v1452 = vpack.c.b16 %v1268, %v1267
    %v1453 = vpack.c.b16 %v1270, %v1269
    %v1454 = vpack.c.b16 %v1272, %v1271
    %v1455 = vpack.c.b16 %v1274, %v1273
    %v1456 = vpack.c.b16 %v1276, %v1275
    %v1457 = vpack.c.b16 %v1278, %v1277
    %v1458 = vpack.c.b16 %v1280, %v1279
    %v1459 = vpack.c.b16 %v1282, %v1281
    %v1460 = vpack.c.b16 %v1284, %v1283
    %v1461 = vpack.c.b16 %v1286, %v1285
    %v1462 = vpack.c.b16 %v1288, %v1287
    %v1463 = vpack.c.b16 %v1290, %v1289
    %v1464 = vpack.c.b16 %v1292, %v1291
    %v1465 = vpack.c.b16 %v1294, %v1293
    %v1466 = vpack.c.b16 %v1296, %v1295
    %v1467 = vpack.c.b16 %v1298, %v1297
    %v1468 = vpack.c.b16 %v1300, %v1299
    %v1469 = vpack.c.b16 %v1302, %v1301
    %v1470 = vpack.c.b16 %v1304, %v1303
    %v1471 = vpack.c.b16 %v1306, %v1305
    %v1472 = vpack.c.b16 %v1308, %v1307
    %v1473 = vpack.c.b16 %v1310, %v1309
    %v1474 = vpack.c.b16 %v1312, %v1311
    %v1475 = vpack.c.b16 %v1314, %v1313
    %v1476 = vpack.c.b16 %v1316, %v1315
    %v1477 = vpack.c.b16 %v1318, %v1317
    %v1478 = vpack.c.b16 %v1320, %v1319
    %v1479 = vpack.c.b16 %v1322, %v1321
    %v1480 = vpack.c.b16 %v1324, %v1323
    %v1481 = vpack.c.b16 %v1326, %v1325
    %v1482 = vpack.c.b16 %v1328, %v1327
    %v1483 = vpack.c.b16 %v1330, %v1329
    %v1484 = vpack.c.b16 %v1332, %v1331
    %v1485 = vpack.c.b16 %v1334, %v1333
    %v1486 = vpack.c.b16 %v1336, %v1335
    %v1487 = vpack.c.b16 %v1338, %v1337
    %v1488 = vpack.c.b16 %v1340, %v1339
    %v1489 = vpack.c.b16 %v1342, %v1341
    %v1490 = vpack.c.b16 %v1344, %v1343
    %v1491 = vpack.c.b16 %v1346, %v1345
    %v1492 = vpack.c.b16 %v1348, %v1347
    %v1493 = vpack.c.b16 %v1350, %v1349
    %v1494 = vpack.c.b16 %v1352, %v1351
    %v1495 = vpack.c.b16 %v1354, %v1353
    %v1496 = vpack.c.b16 %v1356, %v1355
    %v1497 = vpack.c.b16 %v1358, %v1357
    %v1498 = vpack.c.b16 %v1360, %v1359
    %v1499 = vpack.c.b16 %v1362, %v1361
    %v1500 = vpack.c.b16 %v1364, %v1363
    %v1501 = vpack.c.b16 %v1366, %v1365
    %v1502 = vpack.c.b16 %v1368, %v1367
    %v1503 = vpack.c.b16 %v1370, %v1369
    %v1504 = vpack.c.b16 %v1372, %v1371
    %v1505 = vpack.c.b16 %v1374, %v1373
    %v1506 = vpack.c.b16 %v1376, %v1375
    %v1507 = vpack.c.b16 %v1378, %v1377
    %v1508 = vpack.c.b16 %v1380, %v1379
    %v1509 = vpack.c.b16 %v1382, %v1381
    %v1510 = vpack.c.b16 %v1384, %v1383
    %v1511 = vpack.c.b16 %v1386, %v1385
    %v1512 = vpack.c.b16 %v1388, %v1387
    %v1513 = vpack.c.b16 %v1390, %v1389
    %v1514 = vpack.c.b16 %v1392, %v1391
    %v1515 = vpack.c.b16 %v1394, %v1393
    %v1516 = vpack.c.b16 %v1396, %v1395
    %v1517 = vpack.c.b16 %v1398, %v1397
    %v1518 = vpack.c.b16 %v1400, %v1399
    %v1519 = vpack.c.b16 %v1402, %v1401
    %v1520 = vpack.c.b16 %v1404, %v1403
    %v1521 = vpack.c.b16 %v1406, %v1405
    %v1522 = vpack.c.b16 %v1408, %v1407
    %v1523 = vpack.c.b16 %v1410, %v1409
    %v1524 = vpack.c.b16 %v1412, %v1411
    %v1525 = vpack.c.b16 %v1414, %v1413
    %v1526 = vpack.c.b16 %v1416, %v1415
    %v1527 = vpack.c.b16 %v1418, %v1417
    %v1528 = vpack.c.b16 %v1420, %v1419
    %v1529 = vpack.c.b16 %v1422, %v1421
    %v1530 = vpack.c.b16 %v1424, %v1423
    %v1531 = vpack.c.b16 %v1426, %v1425
    %v1532 = vpack.c.b16 %v1428, %v1427
    %v1533 = vpack.c.b16 %v1430, %v1429
    %v1534 = vpack.c.b16 %v1432, %v1431
    %v1535 = vpack.c.b16 %v1434, %v1433
    %v1536 = vpack.c.b16 %v1436, %v1435
    %v1537 = vpack.c.b16 %v1438, %v1437
    %v1538 = vpack.c.b16 %v1440, %v1439
    %v1539 = vpack.c.b16 %v1442, %v1441
    %v1540 = vpack.c.b16 %v1444, %v1443
    %1637 = vmatpush.bf16.msra.mxu0 %v1452
    %1638 = vmatpush.bf16.msra.mxu0 %v1451
    %1639 = vmatpush.bf16.msra.mxu0 %v1450
    %1640 = vmatpush.bf16.msra.mxu0 %v1449
    %1641 = vmatpush.bf16.msra.mxu0 %v1448
    %1642 = vmatpush.bf16.msra.mxu0 %v1447
    %1643 = vmatpush.bf16.msra.mxu0 %v1446
    %1644 = vmatpush.bf16.msra.mxu0 %v1445
    %1645 = vmatmul.bf16.gmra.mxu0 %v857
    %v1646 = vpop.f32.mrf.mxu0
    %v1647 = vadd.f32 0.0, %v1646
    %v1648 = vpop.f32.mrf.mxu0
    %1649 = vdwg.mxu0
    %1650 = vmatpush.bf16.msra.mxu0 %v1460
    %1651 = vmatpush.bf16.msra.mxu0 %v1459
    %1652 = vmatpush.bf16.msra.mxu0 %v1458
    %1653 = vmatpush.bf16.msra.mxu0 %v1457
    %1654 = vmatpush.bf16.msra.mxu0 %v1456
    %1655 = vmatpush.bf16.msra.mxu0 %v1455
    %1656 = vmatpush.bf16.msra.mxu0 %v1454
    %1657 = vmatpush.bf16.msra.mxu0 %v1453
    %1658 = vmatmul.bf16.gmra.mxu0 %v858
    %v1659 = vpop.f32.mrf.mxu0
    %v1660 = vadd.f32 %v1647, %v1659
    %v1661 = vpop.f32.mrf.mxu0
    %1662 = vdwg.mxu0
    %1663 = vmatpush.bf16.msra.mxu0 %v1468
    %1664 = vmatpush.bf16.msra.mxu0 %v1467
    %1665 = vmatpush.bf16.msra.mxu0 %v1466
    %1666 = vmatpush.bf16.msra.mxu0 %v1465
    %1667 = vmatpush.bf16.msra.mxu0 %v1464
    %1668 = vmatpush.bf16.msra.mxu0 %v1463
    %1669 = vmatpush.bf16.msra.mxu0 %v1462
    %1670 = vmatpush.bf16.msra.mxu0 %v1461
    %1671 = vmatmul.bf16.gmra.mxu0 %v859
    %v1672 = vpop.f32.mrf.mxu0
    %v1673 = vadd.f32 %v1660, %v1672
    %v1674 = vpop.f32.mrf.mxu0
    %1675 = vdwg.mxu0
    %1676 = vmatpush.bf16.msra.mxu0 %v1476
    %1677 = vmatpush.bf16.msra.mxu0 %v1475
    %1678 = vmatpush.bf16.msra.mxu0 %v1474
    %1679 = vmatpush.bf16.msra.mxu0 %v1473
    %1680 = vmatpush.bf16.msra.mxu0 %v1472
    %1681 = vmatpush.bf16.msra.mxu0 %v1471
    %1682 = vmatpush.bf16.msra.mxu0 %v1470
    %1683 = vmatpush.bf16.msra.mxu0 %v1469
    %1684 = vmatmul.bf16.gmra.mxu0 %v860
    %v1685 = vpop.f32.mrf.mxu0
    %v1686 = vadd.f32 %v1673, %v1685
    %v1687 = vpop.f32.mrf.mxu0
    %1688 = vdwg.mxu0
    %1689 = vmatpush.bf16.msra.mxu0 %v1484
    %1690 = vmatpush.bf16.msra.mxu0 %v1483
    %1691 = vmatpush.bf16.msra.mxu0 %v1482
    %1692 = vmatpush.bf16.msra.mxu0 %v1481
    %1693 = vmatpush.bf16.msra.mxu0 %v1480
    %1694 = vmatpush.bf16.msra.mxu0 %v1479
    %1695 = vmatpush.bf16.msra.mxu0 %v1478
    %1696 = vmatpush.bf16.msra.mxu0 %v1477
    %1697 = vmatmul.bf16.gmra.mxu0 %v861
    %v1698 = vpop.f32.mrf.mxu0
    %v1699 = vadd.f32 %v1686, %v1698
    %v1700 = vpop.f32.mrf.mxu0
    %1701 = vdwg.mxu0
    %1702 = vmatpush.bf16.msra.mxu0 %v1492
    %1703 = vmatpush.bf16.msra.mxu0 %v1491
    %1704 = vmatpush.bf16.msra.mxu0 %v1490
    %1705 = vmatpush.bf16.msra.mxu0 %v1489
    %1706 = vmatpush.bf16.msra.mxu0 %v1488
    %1707 = vmatpush.bf16.msra.mxu0 %v1487
    %1708 = vmatpush.bf16.msra.mxu0 %v1486
    %1709 = vmatpush.bf16.msra.mxu0 %v1485
    %1710 = vmatmul.bf16.gmra.mxu0 %v862
    %v1711 = vpop.f32.mrf.mxu0
    %v1712 = vadd.f32 %v1699, %v1711
    %v1713 = vpop.f32.mrf.mxu0
    %1714 = vdwg.mxu0
    %1715 = vmatpush.bf16.msra.mxu0 %v1500
    %1716 = vmatpush.bf16.msra.mxu0 %v1499
    %1717 = vmatpush.bf16.msra.mxu0 %v1498
    %1718 = vmatpush.bf16.msra.mxu0 %v1497
    %1719 = vmatpush.bf16.msra.mxu0 %v1496
    %1720 = vmatpush.bf16.msra.mxu0 %v1495
    %1721 = vmatpush.bf16.msra.mxu0 %v1494
    %1722 = vmatpush.bf16.msra.mxu0 %v1493
    %1723 = vmatmul.bf16.gmra.mxu0 %v863
    %v1724 = vpop.f32.mrf.mxu0
    %v1725 = vadd.f32 %v1712, %v1724
    %v1726 = vpop.f32.mrf.mxu0
    %1727 = vdwg.mxu0
    %1728 = vmatpush.bf16.msra.mxu0 %v1508
    %1729 = vmatpush.bf16.msra.mxu0 %v1507
    %1730 = vmatpush.bf16.msra.mxu0 %v1506
    %1731 = vmatpush.bf16.msra.mxu0 %v1505
    %1732 = vmatpush.bf16.msra.mxu0 %v1504
    %1733 = vmatpush.bf16.msra.mxu0 %v1503
    %1734 = vmatpush.bf16.msra.mxu0 %v1502
    %1735 = vmatpush.bf16.msra.mxu0 %v1501
    %1736 = vmatmul.bf16.gmra.mxu0 %v864
    %v1737 = vpop.f32.mrf.mxu0
    %v1738 = vadd.f32 %v1725, %v1737
    %v1739 = vpop.f32.mrf.mxu0
    %1740 = vdwg.mxu0
    %1741 = vmatpush.bf16.msra.mxu0 %v1516
    %1742 = vmatpush.bf16.msra.mxu0 %v1515
    %1743 = vmatpush.bf16.msra.mxu0 %v1514
    %1744 = vmatpush.bf16.msra.mxu0 %v1513
    %1745 = vmatpush.bf16.msra.mxu0 %v1512
    %1746 = vmatpush.bf16.msra.mxu0 %v1511
    %1747 = vmatpush.bf16.msra.mxu0 %v1510
    %1748 = vmatpush.bf16.msra.mxu0 %v1509
    %1749 = vmatmul.bf16.gmra.mxu0 %v865
    %v1750 = vpop.f32.mrf.mxu0
    %v1751 = vadd.f32 %v1738, %v1750
    %v1752 = vpop.f32.mrf.mxu0
    %1753 = vdwg.mxu0
    %1754 = vmatpush.bf16.msra.mxu0 %v1524
    %1755 = vmatpush.bf16.msra.mxu0 %v1523
    %1756 = vmatpush.bf16.msra.mxu0 %v1522
    %1757 = vmatpush.bf16.msra.mxu0 %v1521
    %1758 = vmatpush.bf16.msra.mxu0 %v1520
    %1759 = vmatpush.bf16.msra.mxu0 %v1519
    %1760 = vmatpush.bf16.msra.mxu0 %v1518
    %1761 = vmatpush.bf16.msra.mxu0 %v1517
    %1762 = vmatmul.bf16.gmra.mxu0 %v866
    %v1763 = vpop.f32.mrf.mxu0
    %v1764 = vadd.f32 %v1751, %v1763
    %v1765 = vpop.f32.mrf.mxu0
    %1766 = vdwg.mxu0
    %1767 = vmatpush.bf16.msra.mxu0 %v1532
    %1768 = vmatpush.bf16.msra.mxu0 %v1531
    %1769 = vmatpush.bf16.msra.mxu0 %v1530
    %1770 = vmatpush.bf16.msra.mxu0 %v1529
    %1771 = vmatpush.bf16.msra.mxu0 %v1528
    %1772 = vmatpush.bf16.msra.mxu0 %v1527
    %1773 = vmatpush.bf16.msra.mxu0 %v1526
    %1774 = vmatpush.bf16.msra.mxu0 %v1525
    %1775 = vmatmul.bf16.gmra.mxu0 %v867
    %v1776 = vpop.f32.mrf.mxu0
    %v1777 = vadd.f32 %v1764, %v1776
    %v1778 = vpop.f32.mrf.mxu0
    %1779 = vdwg.mxu0
    %1780 = vmatpush.bf16.msra.mxu0 %v1540
    %1781 = vmatpush.bf16.msra.mxu0 %v1539
    %1782 = vmatpush.bf16.msra.mxu0 %v1538
    %1783 = vmatpush.bf16.msra.mxu0 %v1537
    %1784 = vmatpush.bf16.msra.mxu0 %v1536
    %1785 = vmatpush.bf16.msra.mxu0 %v1535
    %1786 = vmatpush.bf16.msra.mxu0 %v1534
    %1787 = vmatpush.bf16.msra.mxu0 %v1533
    %1788 = vmatmul.bf16.gmra.mxu0 %v868
    %v1789 = vpop.f32.mrf.mxu0
    %v1790 = vadd.f32 %v1777, %v1789
    %v1791 = vpop.f32.mrf.mxu0
    %1792 = vdwg.mxu0
    %v1985 = vunpack.c.l.b16 %v415
    %v1986 = vunpack.c.l.b16 %v416
    %v1987 = vunpack.c.l.b16 %v417
    %v1988 = vunpack.c.l.b16 %v418
    %v1989 = vunpack.c.l.b16 %v419
    %v1990 = vunpack.c.l.b16 %v420
    %v1991 = vunpack.c.l.b16 %v421
    %v1992 = vunpack.c.l.b16 %v422
    %v1993 = vunpack.c.l.b16 %v423
    %v1994 = vunpack.c.l.b16 %v424
    %v1995 = vunpack.c.l.b16 %v425
    %v1996 = vunpack.c.l.b16 %v426
    %v1997 = vunpack.c.l.b16 %v427
    %v1998 = vunpack.c.l.b16 %v428
    %v1999 = vunpack.c.l.b16 %v429
    %v2000 = vunpack.c.l.b16 %v430
    %v2001 = vunpack.c.l.b16 %v431
    %v2002 = vunpack.c.l.b16 %v432
    %v2003 = vunpack.c.l.b16 %v433
    %v2004 = vunpack.c.l.b16 %v434
    %v2005 = vunpack.c.l.b16 %v435
    %v2006 = vunpack.c.l.b16 %v436
    %v2007 = vunpack.c.l.b16 %v437
    %v2008 = vunpack.c.l.b16 %v438
    %v2009 = vunpack.c.l.b16 %v439
    %v2010 = vunpack.c.l.b16 %v440
    %v2011 = vunpack.c.l.b16 %v441
    %v2012 = vunpack.c.l.b16 %v442
    %v2013 = vunpack.c.l.b16 %v443
    %v2014 = vunpack.c.l.b16 %v444
    %v2015 = vunpack.c.l.b16 %v445
    %v2016 = vunpack.c.l.b16 %v446
    %v2017 = vunpack.c.l.b16 %v447
    %v2018 = vunpack.c.l.b16 %v448
    %v2019 = vunpack.c.l.b16 %v449
    %v2020 = vunpack.c.l.b16 %v450
    %v2021 = vunpack.c.l.b16 %v451
    %v2022 = vunpack.c.l.b16 %v452
    %v2023 = vunpack.c.l.b16 %v453
    %v2024 = vunpack.c.l.b16 %v454
    %v2025 = vunpack.c.l.b16 %v455
    %v2026 = vunpack.c.l.b16 %v456
    %v2027 = vunpack.c.l.b16 %v457
    %v2028 = vunpack.c.l.b16 %v458
    %v2029 = vunpack.c.l.b16 %v459
    %v2030 = vunpack.c.l.b16 %v460
    %v2031 = vunpack.c.l.b16 %v461
    %v2032 = vunpack.c.l.b16 %v462
    %v2033 = vunpack.c.l.b16 %v463
    %v2034 = vunpack.c.l.b16 %v464
    %v2035 = vunpack.c.l.b16 %v465
    %v2036 = vunpack.c.l.b16 %v466
    %v2037 = vunpack.c.l.b16 %v467
    %v2038 = vunpack.c.l.b16 %v468
    %v2039 = vunpack.c.l.b16 %v469
    %v2040 = vunpack.c.l.b16 %v470
    %v2041 = vunpack.c.l.b16 %v471
    %v2042 = vunpack.c.l.b16 %v472
    %v2043 = vunpack.c.l.b16 %v473
    %v2044 = vunpack.c.l.b16 %v474
    %v2045 = vunpack.c.l.b16 %v475
    %v2046 = vunpack.c.l.b16 %v476
    %v2047 = vunpack.c.l.b16 %v477
    %v2048 = vunpack.c.l.b16 %v478
    %v2049 = vunpack.c.l.b16 %v479
    %v2050 = vunpack.c.l.b16 %v480
    %v2051 = vunpack.c.l.b16 %v481
    %v2052 = vunpack.c.l.b16 %v482
    %v2053 = vunpack.c.l.b16 %v483
    %v2054 = vunpack.c.l.b16 %v484
    %v2055 = vunpack.c.l.b16 %v485
    %v2056 = vunpack.c.l.b16 %v486
    %v2057 = vunpack.c.l.b16 %v487
    %v2058 = vunpack.c.l.b16 %v488
    %v2059 = vunpack.c.l.b16 %v489
    %v2060 = vunpack.c.l.b16 %v490
    %v2061 = vunpack.c.l.b16 %v491
    %v2062 = vunpack.c.l.b16 %v492
    %v2063 = vunpack.c.l.b16 %v493
    %v2064 = vunpack.c.l.b16 %v494
    %v2065 = vunpack.c.l.b16 %v495
    %v2066 = vunpack.c.l.b16 %v496
    %v2067 = vunpack.c.l.b16 %v497
    %v2068 = vunpack.c.l.b16 %v498
    %v2069 = vunpack.c.l.b16 %v499
    %v2070 = vunpack.c.l.b16 %v500
    %v2071 = vunpack.c.l.b16 %v501
    %v2072 = vunpack.c.l.b16 %v502
    %v2073 = vunpack.c.l.b16 %v503
    %v2074 = vunpack.c.l.b16 %v504
    %v2075 = vunpack.c.l.b16 %v505
    %v2076 = vunpack.c.l.b16 %v506
    %v2077 = vunpack.c.l.b16 %v507
    %v2078 = vunpack.c.l.b16 %v508
    %v2079 = vunpack.c.l.b16 %v509
    %v2080 = vunpack.c.l.b16 %v510
    %v2081 = vunpack.c.l.b16 %v511
    %v2082 = vunpack.c.l.b16 %v512
    %v2083 = vunpack.c.l.b16 %v513
    %v2084 = vunpack.c.l.b16 %v514
    %v2085 = vunpack.c.l.b16 %v515
    %v2086 = vunpack.c.l.b16 %v516
    %v2087 = vunpack.c.l.b16 %v517
    %v2088 = vunpack.c.l.b16 %v518
    %v2089 = vunpack.c.l.b16 %v519
    %v2090 = vunpack.c.l.b16 %v520
    %v2091 = vunpack.c.l.b16 %v521
    %v2092 = vunpack.c.l.b16 %v522
    %v2093 = vunpack.c.l.b16 %v523
    %v2094 = vunpack.c.l.b16 %v524
    %v2095 = vunpack.c.l.b16 %v525
    %v2096 = vunpack.c.l.b16 %v526
    %v2097 = vunpack.c.l.b16 %v527
    %v2098 = vunpack.c.l.b16 %v528
    %v2099 = vunpack.c.l.b16 %v529
    %v2100 = vunpack.c.l.b16 %v530
    %v2101 = vunpack.c.l.b16 %v531
    %v2102 = vunpack.c.l.b16 %v532
    %v2103 = vunpack.c.l.b16 %v533
    %v2104 = vunpack.c.l.b16 %v534
    %v2105 = vunpack.c.l.b16 %v535
    %v2106 = vunpack.c.l.b16 %v536
    %v2107 = vunpack.c.l.b16 %v537
    %v2108 = vunpack.c.l.b16 %v538
    %v2109 = vunpack.c.l.b16 %v539
    %v2110 = vunpack.c.l.b16 %v540
    %v2111 = vunpack.c.l.b16 %v541
    %v2112 = vunpack.c.l.b16 %v542
    %v2113 = vunpack.c.l.b16 %v543
    %v2114 = vunpack.c.l.b16 %v544
    %v2115 = vunpack.c.l.b16 %v545
    %v2116 = vunpack.c.l.b16 %v546
    %v2117 = vunpack.c.l.b16 %v547
    %v2118 = vunpack.c.l.b16 %v548
    %v2119 = vunpack.c.l.b16 %v549
    %v2120 = vunpack.c.l.b16 %v550
    %v2121 = vunpack.c.l.b16 %v551
    %v2122 = vunpack.c.l.b16 %v552
    %v2123 = vunpack.c.l.b16 %v553
    %v2124 = vunpack.c.l.b16 %v554
    %v2125 = vunpack.c.l.b16 %v555
    %v2126 = vunpack.c.l.b16 %v556
    %v2127 = vunpack.c.l.b16 %v557
    %v2128 = vunpack.c.l.b16 %v558
    %v2129 = vunpack.c.l.b16 %v559
    %v2130 = vunpack.c.l.b16 %v560
    %v2131 = vunpack.c.l.b16 %v561
    %v2132 = vunpack.c.l.b16 %v562
    %v2133 = vunpack.c.l.b16 %v563
    %v2134 = vunpack.c.l.b16 %v564
    %v2135 = vunpack.c.l.b16 %v565
    %v2136 = vunpack.c.l.b16 %v566
    %v2137 = vunpack.c.l.b16 %v567
    %v2138 = vunpack.c.l.b16 %v568
    %v2139 = vunpack.c.l.b16 %v569
    %v2140 = vunpack.c.l.b16 %v570
    %v2141 = vunpack.c.l.b16 %v571
    %v2142 = vunpack.c.l.b16 %v572
    %v2143 = vunpack.c.l.b16 %v573
    %v2144 = vunpack.c.l.b16 %v574
    %v2145 = vunpack.c.l.b16 %v575
    %v2146 = vunpack.c.l.b16 %v576
    %v2147 = vunpack.c.l.b16 %v577
    %v2148 = vunpack.c.l.b16 %v578
    %v2149 = vunpack.c.l.b16 %v579
    %v2150 = vunpack.c.l.b16 %v580
    %v2151 = vunpack.c.l.b16 %v581
    %v2152 = vunpack.c.l.b16 %v582
    %v2153 = vunpack.c.l.b16 %v583
    %v2154 = vunpack.c.l.b16 %v584
    %v2155 = vunpack.c.l.b16 %v585
    %v2156 = vunpack.c.l.b16 %v586
    %v2157 = vunpack.c.l.b16 %v587
    %v2158 = vunpack.c.l.b16 %v588
    %v2159 = vunpack.c.l.b16 %v589
    %v2160 = vunpack.c.l.b16 %v590
    %v2161 = vunpack.c.l.b16 %v591
    %v2162 = vunpack.c.l.b16 %v592
    %v2163 = vunpack.c.l.b16 %v593
    %v2164 = vunpack.c.l.b16 %v594
    %v2165 = vunpack.c.l.b16 %v595
    %v2166 = vunpack.c.l.b16 %v596
    %v2167 = vunpack.c.l.b16 %v597
    %v2168 = vunpack.c.l.b16 %v598
    %v2169 = vunpack.c.l.b16 %v599
    %v2170 = vunpack.c.l.b16 %v600
    %v2171 = vunpack.c.l.b16 %v601
    %v2172 = vunpack.c.l.b16 %v602
    %v2173 = vunpack.c.l.b16 %v603
    %v2174 = vunpack.c.l.b16 %v604
    %v2175 = vunpack.c.l.b16 %v605
    %v2176 = vunpack.c.l.b16 %v606
    %v2177 = vpack.c.b16 %v1986, %v1985
    %v2178 = vpack.c.b16 %v1988, %v1987
    %v2179 = vpack.c.b16 %v1990, %v1989
    %v2180 = vpack.c.b16 %v1992, %v1991
    %v2181 = vpack.c.b16 %v1994, %v1993
    %v2182 = vpack.c.b16 %v1996, %v1995
    %v2183 = vpack.c.b16 %v1998, %v1997
    %v2184 = vpack.c.b16 %v2000, %v1999
    %v2185 = vpack.c.b16 %v2002, %v2001
    %v2186 = vpack.c.b16 %v2004, %v2003
    %v2187 = vpack.c.b16 %v2006, %v2005
    %v2188 = vpack.c.b16 %v2008, %v2007
    %v2189 = vpack.c.b16 %v2010, %v2009
    %v2190 = vpack.c.b16 %v2012, %v2011
    %v2191 = vpack.c.b16 %v2014, %v2013
    %v2192 = vpack.c.b16 %v2016, %v2015
    %v2193 = vpack.c.b16 %v2018, %v2017
    %v2194 = vpack.c.b16 %v2020, %v2019
    %v2195 = vpack.c.b16 %v2022, %v2021
    %v2196 = vpack.c.b16 %v2024, %v2023
    %v2197 = vpack.c.b16 %v2026, %v2025
    %v2198 = vpack.c.b16 %v2028, %v2027
    %v2199 = vpack.c.b16 %v2030, %v2029
    %v2200 = vpack.c.b16 %v2032, %v2031
    %v2201 = vpack.c.b16 %v2034, %v2033
    %v2202 = vpack.c.b16 %v2036, %v2035
    %v2203 = vpack.c.b16 %v2038, %v2037
    %v2204 = vpack.c.b16 %v2040, %v2039
    %v2205 = vpack.c.b16 %v2042, %v2041
    %v2206 = vpack.c.b16 %v2044, %v2043
    %v2207 = vpack.c.b16 %v2046, %v2045
    %v2208 = vpack.c.b16 %v2048, %v2047
    %v2209 = vpack.c.b16 %v2050, %v2049
    %v2210 = vpack.c.b16 %v2052, %v2051
    %v2211 = vpack.c.b16 %v2054, %v2053
    %v2212 = vpack.c.b16 %v2056, %v2055
    %v2213 = vpack.c.b16 %v2058, %v2057
    %v2214 = vpack.c.b16 %v2060, %v2059
    %v2215 = vpack.c.b16 %v2062, %v2061
    %v2216 = vpack.c.b16 %v2064, %v2063
    %v2217 = vpack.c.b16 %v2066, %v2065
    %v2218 = vpack.c.b16 %v2068, %v2067
    %v2219 = vpack.c.b16 %v2070, %v2069
    %v2220 = vpack.c.b16 %v2072, %v2071
    %v2221 = vpack.c.b16 %v2074, %v2073
    %v2222 = vpack.c.b16 %v2076, %v2075
    %v2223 = vpack.c.b16 %v2078, %v2077
    %v2224 = vpack.c.b16 %v2080, %v2079
    %v2225 = vpack.c.b16 %v2082, %v2081
    %v2226 = vpack.c.b16 %v2084, %v2083
    %v2227 = vpack.c.b16 %v2086, %v2085
    %v2228 = vpack.c.b16 %v2088, %v2087
    %v2229 = vpack.c.b16 %v2090, %v2089
    %v2230 = vpack.c.b16 %v2092, %v2091
    %v2231 = vpack.c.b16 %v2094, %v2093
    %v2232 = vpack.c.b16 %v2096, %v2095
    %v2233 = vpack.c.b16 %v2098, %v2097
    %v2234 = vpack.c.b16 %v2100, %v2099
    %v2235 = vpack.c.b16 %v2102, %v2101
    %v2236 = vpack.c.b16 %v2104, %v2103
    %v2237 = vpack.c.b16 %v2106, %v2105
    %v2238 = vpack.c.b16 %v2108, %v2107
    %v2239 = vpack.c.b16 %v2110, %v2109
    %v2240 = vpack.c.b16 %v2112, %v2111
    %v2241 = vpack.c.b16 %v2114, %v2113
    %v2242 = vpack.c.b16 %v2116, %v2115
    %v2243 = vpack.c.b16 %v2118, %v2117
    %v2244 = vpack.c.b16 %v2120, %v2119
    %v2245 = vpack.c.b16 %v2122, %v2121
    %v2246 = vpack.c.b16 %v2124, %v2123
    %v2247 = vpack.c.b16 %v2126, %v2125
    %v2248 = vpack.c.b16 %v2128, %v2127
    %v2249 = vpack.c.b16 %v2130, %v2129
    %v2250 = vpack.c.b16 %v2132, %v2131
    %v2251 = vpack.c.b16 %v2134, %v2133
    %v2252 = vpack.c.b16 %v2136, %v2135
    %v2253 = vpack.c.b16 %v2138, %v2137
    %v2254 = vpack.c.b16 %v2140, %v2139
    %v2255 = vpack.c.b16 %v2142, %v2141
    %v2256 = vpack.c.b16 %v2144, %v2143
    %v2257 = vpack.c.b16 %v2146, %v2145
    %v2258 = vpack.c.b16 %v2148, %v2147
    %v2259 = vpack.c.b16 %v2150, %v2149
    %v2260 = vpack.c.b16 %v2152, %v2151
    %v2261 = vpack.c.b16 %v2154, %v2153
    %v2262 = vpack.c.b16 %v2156, %v2155
    %v2263 = vpack.c.b16 %v2158, %v2157
    %v2264 = vpack.c.b16 %v2160, %v2159
    %v2265 = vpack.c.b16 %v2162, %v2161
    %v2266 = vpack.c.b16 %v2164, %v2163
    %v2267 = vpack.c.b16 %v2166, %v2165
    %v2268 = vpack.c.b16 %v2168, %v2167
    %v2269 = vpack.c.b16 %v2170, %v2169
    %v2270 = vpack.c.b16 %v2172, %v2171
    %v2271 = vpack.c.b16 %v2174, %v2173
    %v2272 = vpack.c.b16 %v2176, %v2175
    %2369 = vmatpush.bf16.msra.mxu0 %v2184
    %2370 = vmatpush.bf16.msra.mxu0 %v2183
    %2371 = vmatpush.bf16.msra.mxu0 %v2182
    %2372 = vmatpush.bf16.msra.mxu0 %v2181
    %2373 = vmatpush.bf16.msra.mxu0 %v2180
    %2374 = vmatpush.bf16.msra.mxu0 %v2179
    %2375 = vmatpush.bf16.msra.mxu0 %v2178
    %2376 = vmatpush.bf16.msra.mxu0 %v2177
    %2377 = vmatmul.bf16.gmra.mxu0 %v403
    %v2378 = vpop.f32.mrf.mxu0
    %v2379 = vadd.f32 %v1790, %v2378
    %v2380 = vpop.f32.mrf.mxu0
    %2381 = vdwg.mxu0
    %2382 = vmatpush.bf16.msra.mxu0 %v2192
    %2383 = vmatpush.bf16.msra.mxu0 %v2191
    %2384 = vmatpush.bf16.msra.mxu0 %v2190
    %2385 = vmatpush.bf16.msra.mxu0 %v2189
    %2386 = vmatpush.bf16.msra.mxu0 %v2188
    %2387 = vmatpush.bf16.msra.mxu0 %v2187
    %2388 = vmatpush.bf16.msra.mxu0 %v2186
    %2389 = vmatpush.bf16.msra.mxu0 %v2185
    %2390 = vmatmul.bf16.gmra.mxu0 %v404
    %v2391 = vpop.f32.mrf.mxu0
    %v2392 = vadd.f32 %v2379, %v2391
    %v2393 = vpop.f32.mrf.mxu0
    %2394 = vdwg.mxu0
    %2395 = vmatpush.bf16.msra.mxu0 %v2200
    %2396 = vmatpush.bf16.msra.mxu0 %v2199
    %2397 = vmatpush.bf16.msra.mxu0 %v2198
    %2398 = vmatpush.bf16.msra.mxu0 %v2197
    %2399 = vmatpush.bf16.msra.mxu0 %v2196
    %2400 = vmatpush.bf16.msra.mxu0 %v2195
    %2401 = vmatpush.bf16.msra.mxu0 %v2194
    %2402 = vmatpush.bf16.msra.mxu0 %v2193
    %2403 = vmatmul.bf16.gmra.mxu0 %v405
    %v2404 = vpop.f32.mrf.mxu0
    %v2405 = vadd.f32 %v2392, %v2404
    %v2406 = vpop.f32.mrf.mxu0
    %2407 = vdwg.mxu0
    %2408 = vmatpush.bf16.msra.mxu0 %v2208
    %2409 = vmatpush.bf16.msra.mxu0 %v2207
    %2410 = vmatpush.bf16.msra.mxu0 %v2206
    %2411 = vmatpush.bf16.msra.mxu0 %v2205
    %2412 = vmatpush.bf16.msra.mxu0 %v2204
    %2413 = vmatpush.bf16.msra.mxu0 %v2203
    %2414 = vmatpush.bf16.msra.mxu0 %v2202
    %2415 = vmatpush.bf16.msra.mxu0 %v2201
    %2416 = vmatmul.bf16.gmra.mxu0 %v406
    %v2417 = vpop.f32.mrf.mxu0
    %v2418 = vadd.f32 %v2405, %v2417
    %v2419 = vpop.f32.mrf.mxu0
    %2420 = vdwg.mxu0
    %2421 = vmatpush.bf16.msra.mxu0 %v2216
    %2422 = vmatpush.bf16.msra.mxu0 %v2215
    %2423 = vmatpush.bf16.msra.mxu0 %v2214
    %2424 = vmatpush.bf16.msra.mxu0 %v2213
    %2425 = vmatpush.bf16.msra.mxu0 %v2212
    %2426 = vmatpush.bf16.msra.mxu0 %v2211
    %2427 = vmatpush.bf16.msra.mxu0 %v2210
    %2428 = vmatpush.bf16.msra.mxu0 %v2209
    %2429 = vmatmul.bf16.gmra.mxu0 %v407
    %v2430 = vpop.f32.mrf.mxu0
    %v2431 = vadd.f32 %v2418, %v2430
    %v2432 = vpop.f32.mrf.mxu0
    %2433 = vdwg.mxu0
    %2434 = vmatpush.bf16.msra.mxu0 %v2224
    %2435 = vmatpush.bf16.msra.mxu0 %v2223
    %2436 = vmatpush.bf16.msra.mxu0 %v2222
    %2437 = vmatpush.bf16.msra.mxu0 %v2221
    %2438 = vmatpush.bf16.msra.mxu0 %v2220
    %2439 = vmatpush.bf16.msra.mxu0 %v2219
    %2440 = vmatpush.bf16.msra.mxu0 %v2218
    %2441 = vmatpush.bf16.msra.mxu0 %v2217
    %2442 = vmatmul.bf16.gmra.mxu0 %v408
    %v2443 = vpop.f32.mrf.mxu0
    %v2444 = vadd.f32 %v2431, %v2443
    %v2445 = vpop.f32.mrf.mxu0
    %2446 = vdwg.mxu0
    %2447 = vmatpush.bf16.msra.mxu0 %v2232
    %2448 = vmatpush.bf16.msra.mxu0 %v2231
    %2449 = vmatpush.bf16.msra.mxu0 %v2230
    %2450 = vmatpush.bf16.msra.mxu0 %v2229
    %2451 = vmatpush.bf16.msra.mxu0 %v2228
    %2452 = vmatpush.bf16.msra.mxu0 %v2227
    %2453 = vmatpush.bf16.msra.mxu0 %v2226
    %2454 = vmatpush.bf16.msra.mxu0 %v2225
    %2455 = vmatmul.bf16.gmra.mxu0 %v409
    %v2456 = vpop.f32.mrf.mxu0
    %v2457 = vadd.f32 %v2444, %v2456
    %v2458 = vpop.f32.mrf.mxu0
    %2459 = vdwg.mxu0
    %2460 = vmatpush.bf16.msra.mxu0 %v2240
    %2461 = vmatpush.bf16.msra.mxu0 %v2239
    %2462 = vmatpush.bf16.msra.mxu0 %v2238
    %2463 = vmatpush.bf16.msra.mxu0 %v2237
    %2464 = vmatpush.bf16.msra.mxu0 %v2236
    %2465 = vmatpush.bf16.msra.mxu0 %v2235
    %2466 = vmatpush.bf16.msra.mxu0 %v2234
    %2467 = vmatpush.bf16.msra.mxu0 %v2233
    %2468 = vmatmul.bf16.gmra.mxu0 %v410
    %v2469 = vpop.f32.mrf.mxu0
    %v2470 = vadd.f32 %v2457, %v2469
    %v2471 = vpop.f32.mrf.mxu0
    %2472 = vdwg.mxu0
    %2473 = vmatpush.bf16.msra.mxu0 %v2248
    %2474 = vmatpush.bf16.msra.mxu0 %v2247
    %2475 = vmatpush.bf16.msra.mxu0 %v2246
    %2476 = vmatpush.bf16.msra.mxu0 %v2245
    %2477 = vmatpush.bf16.msra.mxu0 %v2244
    %2478 = vmatpush.bf16.msra.mxu0 %v2243
    %2479 = vmatpush.bf16.msra.mxu0 %v2242
    %2480 = vmatpush.bf16.msra.mxu0 %v2241
    %2481 = vmatmul.bf16.gmra.mxu0 %v411
    %v2482 = vpop.f32.mrf.mxu0
    %v2483 = vadd.f32 %v2470, %v2482
    %v2484 = vpop.f32.mrf.mxu0
    %2485 = vdwg.mxu0
    %2486 = vmatpush.bf16.msra.mxu0 %v2256
    %2487 = vmatpush.bf16.msra.mxu0 %v2255
    %2488 = vmatpush.bf16.msra.mxu0 %v2254
    %2489 = vmatpush.bf16.msra.mxu0 %v2253
    %2490 = vmatpush.bf16.msra.mxu0 %v2252
    %2491 = vmatpush.bf16.msra.mxu0 %v2251
    %2492 = vmatpush.bf16.msra.mxu0 %v2250
    %2493 = vmatpush.bf16.msra.mxu0 %v2249
    %2494 = vmatmul.bf16.gmra.mxu0 %v412
    %v2495 = vpop.f32.mrf.mxu0
    %v2496 = vadd.f32 %v2483, %v2495
    %v2497 = vpop.f32.mrf.mxu0
    %2498 = vdwg.mxu0
    %2499 = vmatpush.bf16.msra.mxu0 %v2264
    %2500 = vmatpush.bf16.msra.mxu0 %v2263
    %2501 = vmatpush.bf16.msra.mxu0 %v2262
    %2502 = vmatpush.bf16.msra.mxu0 %v2261
    %2503 = vmatpush.bf16.msra.mxu0 %v2260
    %2504 = vmatpush.bf16.msra.mxu0 %v2259
    %2505 = vmatpush.bf16.msra.mxu0 %v2258
    %2506 = vmatpush.bf16.msra.mxu0 %v2257
    %2507 = vmatmul.bf16.gmra.mxu0 %v413
    %v2508 = vpop.f32.mrf.mxu0
    %v2509 = vadd.f32 %v2496, %v2508
    %v2510 = vpop.f32.mrf.mxu0
    %2511 = vdwg.mxu0
    %2512 = vmatpush.bf16.msra.mxu0 %v2272
    %2513 = vmatpush.bf16.msra.mxu0 %v2271
    %2514 = vmatpush.bf16.msra.mxu0 %v2270
    %2515 = vmatpush.bf16.msra.mxu0 %v2269
    %2516 = vmatpush.bf16.msra.mxu0 %v2268
    %2517 = vmatpush.bf16.msra.mxu0 %v2267
    %2518 = vmatpush.bf16.msra.mxu0 %v2266
    %2519 = vmatpush.bf16.msra.mxu0 %v2265
    %2520 = vmatmul.bf16.gmra.mxu0 %v414
    %v2521 = vpop.f32.mrf.mxu0
    %v2522 = vadd.f32 %v2509, %v2521
    %v2523 = vpop.f32.mrf.mxu0
    %2524 = vdwg.mxu0
    %v2525 = vld [vmem:[#allocation6 + $0x18] sm:$0xff]
    %v2526 = vld [vmem:[#allocation6 + $0x20] sm:$0xf]
    %v2527 = vld [vmem:[%s0 + $0x60] sm:$0xff]
    %v2528 = vld [vmem:[%s0 + $0x68] sm:$0xff]
    %v2529 = vld [vmem:[%s0 + $0x70] sm:$0xff]
    %v2530 = vld [vmem:[%s0 + $0x78] sm:$0xff]
    %v2531 = vld [vmem:[%s0 + $0x80] sm:$0xff]
    %v2532 = vld [vmem:[%s0 + $0x88] sm:$0xff]
    %v2533 = vunpack.c.l.bf16 %v2527
    %v2534 = vunpack.c.h.bf16 %v2527
    %v2535 = vunpack.c.l.bf16 %v2528
    %v2536 = vunpack.c.h.bf16 %v2528
    %v2537 = vunpack.c.l.bf16 %v2529
    %v2538 = vunpack.c.h.bf16 %v2529
    %v2539 = vunpack.c.l.bf16 %v2530
    %v2540 = vunpack.c.h.bf16 %v2530
    %v2541 = vunpack.c.l.bf16 %v2531
    %v2542 = vunpack.c.h.bf16 %v2531
    %v2543 = vunpack.c.l.bf16 %v2532
    %v2544 = vunpack.c.h.bf16 %v2532
    %v2545 = vld [vmem:[#allocation2 + $0x18] sm:$0xff]
    %v2546 = vld [vmem:[#allocation2 + $0x20] sm:$0xf]
    %v2549 = vperm.slane %v2545, 0
    %v2550 = vperm.slane %v2545, 1
    %v2551 = vperm.slane %v2545, 2
    %v2552 = vperm.slane %v2545, 3
    %v2553 = vperm.slane %v2545, 4
    %v2554 = vperm.slane %v2545, 5
    %v2555 = vperm.slane %v2545, 6
    %v2556 = vperm.slane %v2545, 7
    %v2557 = vperm.slane %v2546, 0
    %v2558 = vperm.slane %v2546, 1
    %v2559 = vperm.slane %v2546, 2
    %v2560 = vperm.slane %v2546, 3
    %v2573 = vmul.f32 %v2533, %v2549
    %v2574 = vmul.f32 %v2534, %v2550
    %v2575 = vmul.f32 %v2535, %v2551
    %v2576 = vmul.f32 %v2536, %v2552
    %v2577 = vmul.f32 %v2537, %v2553
    %v2578 = vmul.f32 %v2538, %v2554
    %v2579 = vmul.f32 %v2539, %v2555
    %v2580 = vmul.f32 %v2540, %v2556
    %v2581 = vmul.f32 %v2541, %v2557
    %v2582 = vmul.f32 %v2542, %v2558
    %v2583 = vmul.f32 %v2543, %v2559
    %v2584 = vmul.f32 %v2544, %v2560
    %v2587 = vperm.slane %v2525, 0
    %v2588 = vperm.slane %v2525, 1
    %v2589 = vperm.slane %v2525, 2
    %v2590 = vperm.slane %v2525, 3
    %v2591 = vperm.slane %v2525, 4
    %v2592 = vperm.slane %v2525, 5
    %v2593 = vperm.slane %v2525, 6
    %v2594 = vperm.slane %v2525, 7
    %v2595 = vperm.slane %v2526, 0
    %v2596 = vperm.slane %v2526, 1
    %v2597 = vperm.slane %v2526, 2
    %v2598 = vperm.slane %v2526, 3
    %v2611 = vadd.f32 %v2587, %v2573
    %v2612 = vadd.f32 %v2588, %v2574
    %v2613 = vadd.f32 %v2589, %v2575
    %v2614 = vadd.f32 %v2590, %v2576
    %v2615 = vadd.f32 %v2591, %v2577
    %v2616 = vadd.f32 %v2592, %v2578
    %v2617 = vadd.f32 %v2593, %v2579
    %v2618 = vadd.f32 %v2594, %v2580
    %v2619 = vadd.f32 %v2595, %v2581
    %v2620 = vadd.f32 %v2596, %v2582
    %v2621 = vadd.f32 %v2597, %v2583
    %v2622 = vadd.f32 %v2598, %v2584
    %v2623 = vld [vmem:[%s247 + $0x60] sm:$0xff]
    %v2624 = vld [vmem:[%s247 + $0x68] sm:$0xff]
    %v2625 = vld [vmem:[%s247 + $0x70] sm:$0xff]
    %v2626 = vld [vmem:[%s247 + $0x78] sm:$0xff]
    %v2627 = vld [vmem:[%s247 + $0x80] sm:$0xff]
    %v2628 = vld [vmem:[%s247 + $0x88] sm:$0xff]
    %v2629 = vunpack.c.l.bf16 %v2623
    %v2630 = vunpack.c.h.bf16 %v2623
    %v2631 = vunpack.c.l.bf16 %v2624
    %v2632 = vunpack.c.h.bf16 %v2624
    %v2633 = vunpack.c.l.bf16 %v2625
    %v2634 = vunpack.c.h.bf16 %v2625
    %v2635 = vunpack.c.l.bf16 %v2626
    %v2636 = vunpack.c.h.bf16 %v2626
    %v2637 = vunpack.c.l.bf16 %v2627
    %v2638 = vunpack.c.h.bf16 %v2627
    %v2639 = vunpack.c.l.bf16 %v2628
    %v2640 = vunpack.c.h.bf16 %v2628
    %v2641 = vld [vmem:[%s266 + $0x18] sm:$0xff]
    %v2642 = vld [vmem:[%s266 + $0x20] sm:$0xf]
    %v2645 = vperm.slane %v2641, 0
    %v2646 = vperm.slane %v2641, 1
    %v2647 = vperm.slane %v2641, 2
    %v2648 = vperm.slane %v2641, 3
    %v2649 = vperm.slane %v2641, 4
    %v2650 = vperm.slane %v2641, 5
    %v2651 = vperm.slane %v2641, 6
    %v2652 = vperm.slane %v2641, 7
    %v2653 = vperm.slane %v2642, 0
    %v2654 = vperm.slane %v2642, 1
    %v2655 = vperm.slane %v2642, 2
    %v2656 = vperm.slane %v2642, 3
    %v2669 = vmul.f32 %v2629, %v2645
    %v2670 = vmul.f32 %v2630, %v2646
    %v2671 = vmul.f32 %v2631, %v2647
    %v2672 = vmul.f32 %v2632, %v2648
    %v2673 = vmul.f32 %v2633, %v2649
    %v2674 = vmul.f32 %v2634, %v2650
    %v2675 = vmul.f32 %v2635, %v2651
    %v2676 = vmul.f32 %v2636, %v2652
    %v2677 = vmul.f32 %v2637, %v2653
    %v2678 = vmul.f32 %v2638, %v2654
    %v2679 = vmul.f32 %v2639, %v2655
    %v2680 = vmul.f32 %v2640, %v2656
    %v2681 = vadd.f32 %v2611, %v2669
    %v2682 = vadd.f32 %v2612, %v2670
    %v2683 = vadd.f32 %v2613, %v2671
    %v2684 = vadd.f32 %v2614, %v2672
    %v2685 = vadd.f32 %v2615, %v2673
    %v2686 = vadd.f32 %v2616, %v2674
    %v2687 = vadd.f32 %v2617, %v2675
    %v2688 = vadd.f32 %v2618, %v2676
    %v2689 = vadd.f32 %v2619, %v2677
    %v2690 = vadd.f32 %v2620, %v2678
    %v2691 = vadd.f32 %v2621, %v2679
    %v2692 = vadd.f32 %v2622, %v2680
    %v2693 = vld [vmem:[%s319 + $0x60] sm:$0xff]
    %v2694 = vld [vmem:[%s319 + $0x68] sm:$0xff]
    %v2695 = vld [vmem:[%s319 + $0x70] sm:$0xff]
    %v2696 = vld [vmem:[%s319 + $0x78] sm:$0xff]
    %v2697 = vld [vmem:[%s319 + $0x80] sm:$0xff]
    %v2698 = vld [vmem:[%s319 + $0x88] sm:$0xff]
    %v2699 = vunpack.c.l.bf16 %v2693
    %v2700 = vunpack.c.h.bf16 %v2693
    %v2701 = vunpack.c.l.bf16 %v2694
    %v2702 = vunpack.c.h.bf16 %v2694
    %v2703 = vunpack.c.l.bf16 %v2695
    %v2704 = vunpack.c.h.bf16 %v2695
    %v2705 = vunpack.c.l.bf16 %v2696
    %v2706 = vunpack.c.h.bf16 %v2696
    %v2707 = vunpack.c.l.bf16 %v2697
    %v2708 = vunpack.c.h.bf16 %v2697
    %v2709 = vunpack.c.l.bf16 %v2698
    %v2710 = vunpack.c.h.bf16 %v2698
    %v2711 = vld [vmem:[%s338 + $0x18] sm:$0xff]
    %v2712 = vld [vmem:[%s338 + $0x20] sm:$0xf]
    %v2715 = vperm.slane %v2711, 0
    %v2716 = vperm.slane %v2711, 1
    %v2717 = vperm.slane %v2711, 2
    %v2718 = vperm.slane %v2711, 3
    %v2719 = vperm.slane %v2711, 4
    %v2720 = vperm.slane %v2711, 5
    %v2721 = vperm.slane %v2711, 6
    %v2722 = vperm.slane %v2711, 7
    %v2723 = vperm.slane %v2712, 0
    %v2724 = vperm.slane %v2712, 1
    %v2725 = vperm.slane %v2712, 2
    %v2726 = vperm.slane %v2712, 3
    %v2739 = vmul.f32 %v2699, %v2715
    %v2740 = vmul.f32 %v2700, %v2716
    %v2741 = vmul.f32 %v2701, %v2717
    %v2742 = vmul.f32 %v2702, %v2718
    %v2743 = vmul.f32 %v2703, %v2719
    %v2744 = vmul.f32 %v2704, %v2720
    %v2745 = vmul.f32 %v2705, %v2721
    %v2746 = vmul.f32 %v2706, %v2722
    %v2747 = vmul.f32 %v2707, %v2723
    %v2748 = vmul.f32 %v2708, %v2724
    %v2749 = vmul.f32 %v2709, %v2725
    %v2750 = vmul.f32 %v2710, %v2726
    %v2751 = vadd.f32 %v2681, %v2739
    %v2752 = vadd.f32 %v2682, %v2740
    %v2753 = vadd.f32 %v2683, %v2741
    %v2754 = vadd.f32 %v2684, %v2742
    %v2755 = vadd.f32 %v2685, %v2743
    %v2756 = vadd.f32 %v2686, %v2744
    %v2757 = vadd.f32 %v2687, %v2745
    %v2758 = vadd.f32 %v2688, %v2746
    %v2759 = vadd.f32 %v2689, %v2747
    %v2760 = vadd.f32 %v2690, %v2748
    %v2761 = vadd.f32 %v2691, %v2749
    %v2762 = vadd.f32 %v2692, %v2750
    %v2763 = vmax.f32 %v2751, 0.0
    %v2764 = vmax.f32 %v2752, 0.0
    %v2765 = vmax.f32 %v2753, 0.0
    %v2766 = vmax.f32 %v2754, 0.0
    %v2767 = vmax.f32 %v2755, 0.0
    %v2768 = vmax.f32 %v2756, 0.0
    %v2769 = vmax.f32 %v2757, 0.0
    %v2770 = vmax.f32 %v2758, 0.0
    %v2771 = vmax.f32 %v2759, 0.0
    %v2772 = vmax.f32 %v2760, 0.0
    %v2773 = vmax.f32 %v2761, 0.0
    %v2774 = vmax.f32 %v2762, 0.0
    %v2775 = vpack.c.bf16 %v2763, %v2763
    %v2776 = vpack.c.bf16 %v2764, %v2764
    %v2777 = vpack.c.bf16 %v2765, %v2765
    %v2778 = vpack.c.bf16 %v2766, %v2766
    %v2779 = vpack.c.bf16 %v2767, %v2767
    %v2780 = vpack.c.bf16 %v2768, %v2768
    %v2781 = vpack.c.bf16 %v2769, %v2769
    %v2782 = vpack.c.bf16 %v2770, %v2770
    %v2783 = vpack.c.bf16 %v2771, %v2771
    %v2784 = vpack.c.bf16 %v2772, %v2772
    %v2785 = vpack.c.bf16 %v2773, %v2773
    %v2786 = vpack.c.bf16 %v2774, %v2774
    %v2787 = vld [vmem:[#allocation9 + $0x600] sm:$0xf]
    %v2788 = vld [vmem:[#allocation9 + $0x604] sm:$0xf]
    %v2789 = vld [vmem:[#allocation9 + $0x608] sm:$0xf]
    %v2790 = vld [vmem:[#allocation9 + $0x60c] sm:$0xf]
    %v2791 = vld [vmem:[#allocation9 + $0x610] sm:$0xf]
    %v2792 = vld [vmem:[#allocation9 + $0x614] sm:$0xf]
    %v2793 = vld [vmem:[#allocation9 + $0x618] sm:$0xf]
    %v2794 = vld [vmem:[#allocation9 + $0x61c] sm:$0xf]
    %v2795 = vld [vmem:[#allocation9 + $0x620] sm:$0xf]
    %v2796 = vld [vmem:[#allocation9 + $0x624] sm:$0xf]
    %v2797 = vld [vmem:[#allocation9 + $0x628] sm:$0xf]
    %v2798 = vld [vmem:[#allocation9 + $0x62c] sm:$0xf]
    %v2799 = vld [vmem:[#allocation9 + $0x630] sm:$0xf]
    %v2800 = vld [vmem:[#allocation9 + $0x634] sm:$0xf]
    %v2801 = vld [vmem:[#allocation9 + $0x638] sm:$0xf]
    %v2802 = vld [vmem:[#allocation9 + $0x63c] sm:$0xf]
    %v2803 = vld [vmem:[#allocation9 + $0x640] sm:$0xf]
    %v2804 = vld [vmem:[#allocation9 + $0x644] sm:$0xf]
    %v2805 = vld [vmem:[#allocation9 + $0x648] sm:$0xf]
    %v2806 = vld [vmem:[#allocation9 + $0x64c] sm:$0xf]
    %v2807 = vld [vmem:[#allocation9 + $0x650] sm:$0xf]
    %v2808 = vld [vmem:[#allocation9 + $0x654] sm:$0xf]
    %v2809 = vld [vmem:[#allocation9 + $0x658] sm:$0xf]
    %v2810 = vld [vmem:[#allocation9 + $0x65c] sm:$0xf]
    %v2811 = vld [vmem:[#allocation9 + $0x660] sm:$0xf]
    %v2812 = vld [vmem:[#allocation9 + $0x664] sm:$0xf]
    %v2813 = vld [vmem:[#allocation9 + $0x668] sm:$0xf]
    %v2814 = vld [vmem:[#allocation9 + $0x66c] sm:$0xf]
    %v2815 = vld [vmem:[#allocation9 + $0x670] sm:$0xf]
    %v2816 = vld [vmem:[#allocation9 + $0x674] sm:$0xf]
    %v2817 = vld [vmem:[#allocation9 + $0x678] sm:$0xf]
    %v2818 = vld [vmem:[#allocation9 + $0x67c] sm:$0xf]
    %v2819 = vld [vmem:[#allocation9 + $0x680] sm:$0xf]
    %v2820 = vld [vmem:[#allocation9 + $0x684] sm:$0xf]
    %v2821 = vld [vmem:[#allocation9 + $0x688] sm:$0xf]
    %v2822 = vld [vmem:[#allocation9 + $0x68c] sm:$0xf]
    %v2823 = vld [vmem:[#allocation9 + $0x690] sm:$0xf]
    %v2824 = vld [vmem:[#allocation9 + $0x694] sm:$0xf]
    %v2825 = vld [vmem:[#allocation9 + $0x698] sm:$0xf]
    %v2826 = vld [vmem:[#allocation9 + $0x69c] sm:$0xf]
    %v2827 = vld [vmem:[#allocation9 + $0x6a0] sm:$0xf]
    %v2828 = vld [vmem:[#allocation9 + $0x6a4] sm:$0xf]
    %v2829 = vld [vmem:[#allocation9 + $0x6a8] sm:$0xf]
    %v2830 = vld [vmem:[#allocation9 + $0x6ac] sm:$0xf]
    %v2831 = vld [vmem:[#allocation9 + $0x6b0] sm:$0xf]
    %v2832 = vld [vmem:[#allocation9 + $0x6b4] sm:$0xf]
    %v2833 = vld [vmem:[#allocation9 + $0x6b8] sm:$0xf]
    %v2834 = vld [vmem:[#allocation9 + $0x6bc] sm:$0xf]
    %v2835 = vld [vmem:[#allocation9 + $0x6c0] sm:$0xf]
    %v2836 = vld [vmem:[#allocation9 + $0x6c4] sm:$0xf]
    %v2837 = vld [vmem:[#allocation9 + $0x6c8] sm:$0xf]
    %v2838 = vld [vmem:[#allocation9 + $0x6cc] sm:$0xf]
    %v2839 = vld [vmem:[#allocation9 + $0x6d0] sm:$0xf]
    %v2840 = vld [vmem:[#allocation9 + $0x6d4] sm:$0xf]
    %v2841 = vld [vmem:[#allocation9 + $0x6d8] sm:$0xf]
    %v2842 = vld [vmem:[#allocation9 + $0x6dc] sm:$0xf]
    %v2843 = vld [vmem:[#allocation9 + $0x6e0] sm:$0xf]
    %v2844 = vld [vmem:[#allocation9 + $0x6e4] sm:$0xf]
    %v2845 = vld [vmem:[#allocation9 + $0x6e8] sm:$0xf]
    %v2846 = vld [vmem:[#allocation9 + $0x6ec] sm:$0xf]
    %v2847 = vld [vmem:[#allocation9 + $0x6f0] sm:$0xf]
    %v2848 = vld [vmem:[#allocation9 + $0x6f4] sm:$0xf]
    %v2849 = vld [vmem:[#allocation9 + $0x6f8] sm:$0xf]
    %v2850 = vld [vmem:[#allocation9 + $0x6fc] sm:$0xf]
    %v2851 = vld [vmem:[#allocation9 + $0x700] sm:$0xf]
    %v2852 = vld [vmem:[#allocation9 + $0x704] sm:$0xf]
    %v2853 = vld [vmem:[#allocation9 + $0x708] sm:$0xf]
    %v2854 = vld [vmem:[#allocation9 + $0x70c] sm:$0xf]
    %v2855 = vld [vmem:[#allocation9 + $0x710] sm:$0xf]
    %v2856 = vld [vmem:[#allocation9 + $0x714] sm:$0xf]
    %v2857 = vld [vmem:[#allocation9 + $0x718] sm:$0xf]
    %v2858 = vld [vmem:[#allocation9 + $0x71c] sm:$0xf]
    %v2859 = vld [vmem:[#allocation9 + $0x720] sm:$0xf]
    %v2860 = vld [vmem:[#allocation9 + $0x724] sm:$0xf]
    %v2861 = vld [vmem:[#allocation9 + $0x728] sm:$0xf]
    %v2862 = vld [vmem:[#allocation9 + $0x72c] sm:$0xf]
    %v2863 = vld [vmem:[#allocation9 + $0x730] sm:$0xf]
    %v2864 = vld [vmem:[#allocation9 + $0x734] sm:$0xf]
    %v2865 = vld [vmem:[#allocation9 + $0x738] sm:$0xf]
    %v2866 = vld [vmem:[#allocation9 + $0x73c] sm:$0xf]
    %v2867 = vld [vmem:[#allocation9 + $0x740] sm:$0xf]
    %v2868 = vld [vmem:[#allocation9 + $0x744] sm:$0xf]
    %v2869 = vld [vmem:[#allocation9 + $0x748] sm:$0xf]
    %v2870 = vld [vmem:[#allocation9 + $0x74c] sm:$0xf]
    %v2871 = vld [vmem:[#allocation9 + $0x750] sm:$0xf]
    %v2872 = vld [vmem:[#allocation9 + $0x754] sm:$0xf]
    %v2873 = vld [vmem:[#allocation9 + $0x758] sm:$0xf]
    %v2874 = vld [vmem:[#allocation9 + $0x75c] sm:$0xf]
    %v2875 = vld [vmem:[#allocation9 + $0x760] sm:$0xf]
    %v2876 = vld [vmem:[#allocation9 + $0x764] sm:$0xf]
    %v2877 = vld [vmem:[#allocation9 + $0x768] sm:$0xf]
    %v2878 = vld [vmem:[#allocation9 + $0x76c] sm:$0xf]
    %v2879 = vld [vmem:[#allocation9 + $0x770] sm:$0xf]
    %v2880 = vld [vmem:[#allocation9 + $0x774] sm:$0xf]
    %v2881 = vld [vmem:[#allocation9 + $0x778] sm:$0xf]
    %v2882 = vld [vmem:[#allocation9 + $0x77c] sm:$0xf]
    %v2883 = vld [vmem:[#allocation9 + $0x780] sm:$0xf]
    %v2884 = vld [vmem:[#allocation9 + $0x784] sm:$0xf]
    %v2885 = vld [vmem:[#allocation9 + $0x788] sm:$0xf]
    %v2886 = vld [vmem:[#allocation9 + $0x78c] sm:$0xf]
    %v2887 = vld [vmem:[#allocation9 + $0x790] sm:$0xf]
    %v2888 = vld [vmem:[#allocation9 + $0x794] sm:$0xf]
    %v2889 = vld [vmem:[#allocation9 + $0x798] sm:$0xf]
    %v2890 = vld [vmem:[#allocation9 + $0x79c] sm:$0xf]
    %v2891 = vld [vmem:[#allocation9 + $0x7a0] sm:$0xf]
    %v2892 = vld [vmem:[#allocation9 + $0x7a4] sm:$0xf]
    %v2893 = vld [vmem:[#allocation9 + $0x7a8] sm:$0xf]
    %v2894 = vld [vmem:[#allocation9 + $0x7ac] sm:$0xf]
    %v2895 = vld [vmem:[#allocation9 + $0x7b0] sm:$0xf]
    %v2896 = vld [vmem:[#allocation9 + $0x7b4] sm:$0xf]
    %v2897 = vld [vmem:[#allocation9 + $0x7b8] sm:$0xf]
    %v2898 = vld [vmem:[#allocation9 + $0x7bc] sm:$0xf]
    %v2899 = vld [vmem:[#allocation9 + $0x7c0] sm:$0xf]
    %v2900 = vld [vmem:[#allocation9 + $0x7c4] sm:$0xf]
    %v2901 = vld [vmem:[#allocation9 + $0x7c8] sm:$0xf]
    %v2902 = vld [vmem:[#allocation9 + $0x7cc] sm:$0xf]
    %v2903 = vld [vmem:[#allocation9 + $0x7d0] sm:$0xf]
    %v2904 = vld [vmem:[#allocation9 + $0x7d4] sm:$0xf]
    %v2905 = vld [vmem:[#allocation9 + $0x7d8] sm:$0xf]
    %v2906 = vld [vmem:[#allocation9 + $0x7dc] sm:$0xf]
    %v2907 = vld [vmem:[#allocation9 + $0x7e0] sm:$0xf]
    %v2908 = vld [vmem:[#allocation9 + $0x7e4] sm:$0xf]
    %v2909 = vld [vmem:[#allocation9 + $0x7e8] sm:$0xf]
    %v2910 = vld [vmem:[#allocation9 + $0x7ec] sm:$0xf]
    %v2911 = vld [vmem:[#allocation9 + $0x7f0] sm:$0xf]
    %v2912 = vld [vmem:[#allocation9 + $0x7f4] sm:$0xf]
    %v2913 = vld [vmem:[#allocation9 + $0x7f8] sm:$0xf]
    %v2914 = vld [vmem:[#allocation9 + $0x7fc] sm:$0xf]
    %v2915 = vld [vmem:[#allocation9 + $0x800] sm:$0xf]
    %v2916 = vld [vmem:[#allocation9 + $0x804] sm:$0xf]
    %v2917 = vld [vmem:[#allocation9 + $0x808] sm:$0xf]
    %v2918 = vld [vmem:[#allocation9 + $0x80c] sm:$0xf]
    %v2919 = vld [vmem:[#allocation9 + $0x810] sm:$0xf]
    %v2920 = vld [vmem:[#allocation9 + $0x814] sm:$0xf]
    %v2921 = vld [vmem:[#allocation9 + $0x818] sm:$0xf]
    %v2922 = vld [vmem:[#allocation9 + $0x81c] sm:$0xf]
    %v2923 = vld [vmem:[#allocation9 + $0x820] sm:$0xf]
    %v2924 = vld [vmem:[#allocation9 + $0x824] sm:$0xf]
    %v2925 = vld [vmem:[#allocation9 + $0x828] sm:$0xf]
    %v2926 = vld [vmem:[#allocation9 + $0x82c] sm:$0xf]
    %v2927 = vld [vmem:[#allocation9 + $0x830] sm:$0xf]
    %v2928 = vld [vmem:[#allocation9 + $0x834] sm:$0xf]
    %v2929 = vld [vmem:[#allocation9 + $0x838] sm:$0xf]
    %v2930 = vld [vmem:[#allocation9 + $0x83c] sm:$0xf]
    %v2931 = vld [vmem:[#allocation9 + $0x840] sm:$0xf]
    %v2932 = vld [vmem:[#allocation9 + $0x844] sm:$0xf]
    %v2933 = vld [vmem:[#allocation9 + $0x848] sm:$0xf]
    %v2934 = vld [vmem:[#allocation9 + $0x84c] sm:$0xf]
    %v2935 = vld [vmem:[#allocation9 + $0x850] sm:$0xf]
    %v2936 = vld [vmem:[#allocation9 + $0x854] sm:$0xf]
    %v2937 = vld [vmem:[#allocation9 + $0x858] sm:$0xf]
    %v2938 = vld [vmem:[#allocation9 + $0x85c] sm:$0xf]
    %v2939 = vld [vmem:[#allocation9 + $0x860] sm:$0xf]
    %v2940 = vld [vmem:[#allocation9 + $0x864] sm:$0xf]
    %v2941 = vld [vmem:[#allocation9 + $0x868] sm:$0xf]
    %v2942 = vld [vmem:[#allocation9 + $0x86c] sm:$0xf]
    %v2943 = vld [vmem:[#allocation9 + $0x870] sm:$0xf]
    %v2944 = vld [vmem:[#allocation9 + $0x874] sm:$0xf]
    %v2945 = vld [vmem:[#allocation9 + $0x878] sm:$0xf]
    %v2946 = vld [vmem:[#allocation9 + $0x87c] sm:$0xf]
    %v2947 = vld [vmem:[#allocation9 + $0x880] sm:$0xf]
    %v2948 = vld [vmem:[#allocation9 + $0x884] sm:$0xf]
    %v2949 = vld [vmem:[#allocation9 + $0x888] sm:$0xf]
    %v2950 = vld [vmem:[#allocation9 + $0x88c] sm:$0xf]
    %v2951 = vld [vmem:[#allocation9 + $0x890] sm:$0xf]
    %v2952 = vld [vmem:[#allocation9 + $0x894] sm:$0xf]
    %v2953 = vld [vmem:[#allocation9 + $0x898] sm:$0xf]
    %v2954 = vld [vmem:[#allocation9 + $0x89c] sm:$0xf]
    %v2955 = vld [vmem:[#allocation9 + $0x8a0] sm:$0xf]
    %v2956 = vld [vmem:[#allocation9 + $0x8a4] sm:$0xf]
    %v2957 = vld [vmem:[#allocation9 + $0x8a8] sm:$0xf]
    %v2958 = vld [vmem:[#allocation9 + $0x8ac] sm:$0xf]
    %v2959 = vld [vmem:[#allocation9 + $0x8b0] sm:$0xf]
    %v2960 = vld [vmem:[#allocation9 + $0x8b4] sm:$0xf]
    %v2961 = vld [vmem:[#allocation9 + $0x8b8] sm:$0xf]
    %v2962 = vld [vmem:[#allocation9 + $0x8bc] sm:$0xf]
    %v2963 = vld [vmem:[#allocation9 + $0x8c0] sm:$0xf]
    %v2964 = vld [vmem:[#allocation9 + $0x8c4] sm:$0xf]
    %v2965 = vld [vmem:[#allocation9 + $0x8c8] sm:$0xf]
    %v2966 = vld [vmem:[#allocation9 + $0x8cc] sm:$0xf]
    %v2967 = vld [vmem:[#allocation9 + $0x8d0] sm:$0xf]
    %v2968 = vld [vmem:[#allocation9 + $0x8d4] sm:$0xf]
    %v2969 = vld [vmem:[#allocation9 + $0x8d8] sm:$0xf]
    %v2970 = vld [vmem:[#allocation9 + $0x8dc] sm:$0xf]
    %v2971 = vld [vmem:[#allocation9 + $0x8e0] sm:$0xf]
    %v2972 = vld [vmem:[#allocation9 + $0x8e4] sm:$0xf]
    %v2973 = vld [vmem:[#allocation9 + $0x8e8] sm:$0xf]
    %v2974 = vld [vmem:[#allocation9 + $0x8ec] sm:$0xf]
    %v2975 = vld [vmem:[#allocation9 + $0x8f0] sm:$0xf]
    %v2976 = vld [vmem:[#allocation9 + $0x8f4] sm:$0xf]
    %v2977 = vld [vmem:[#allocation9 + $0x8f8] sm:$0xf]
    %v2978 = vld [vmem:[#allocation9 + $0x8fc] sm:$0xf]
    %v3171 = vunpack.c.l.b16 %v2787
    %v3172 = vunpack.c.l.b16 %v2788
    %v3173 = vunpack.c.l.b16 %v2789
    %v3174 = vunpack.c.l.b16 %v2790
    %v3175 = vunpack.c.l.b16 %v2791
    %v3176 = vunpack.c.l.b16 %v2792
    %v3177 = vunpack.c.l.b16 %v2793
    %v3178 = vunpack.c.l.b16 %v2794
    %v3179 = vunpack.c.l.b16 %v2795
    %v3180 = vunpack.c.l.b16 %v2796
    %v3181 = vunpack.c.l.b16 %v2797
    %v3182 = vunpack.c.l.b16 %v2798
    %v3183 = vunpack.c.l.b16 %v2799
    %v3184 = vunpack.c.l.b16 %v2800
    %v3185 = vunpack.c.l.b16 %v2801
    %v3186 = vunpack.c.l.b16 %v2802
    %v3187 = vunpack.c.l.b16 %v2803
    %v3188 = vunpack.c.l.b16 %v2804
    %v3189 = vunpack.c.l.b16 %v2805
    %v3190 = vunpack.c.l.b16 %v2806
    %v3191 = vunpack.c.l.b16 %v2807
    %v3192 = vunpack.c.l.b16 %v2808
    %v3193 = vunpack.c.l.b16 %v2809
    %v3194 = vunpack.c.l.b16 %v2810
    %v3195 = vunpack.c.l.b16 %v2811
    %v3196 = vunpack.c.l.b16 %v2812
    %v3197 = vunpack.c.l.b16 %v2813
    %v3198 = vunpack.c.l.b16 %v2814
    %v3199 = vunpack.c.l.b16 %v2815
    %v3200 = vunpack.c.l.b16 %v2816
    %v3201 = vunpack.c.l.b16 %v2817
    %v3202 = vunpack.c.l.b16 %v2818
    %v3203 = vunpack.c.l.b16 %v2819
    %v3204 = vunpack.c.l.b16 %v2820
    %v3205 = vunpack.c.l.b16 %v2821
    %v3206 = vunpack.c.l.b16 %v2822
    %v3207 = vunpack.c.l.b16 %v2823
    %v3208 = vunpack.c.l.b16 %v2824
    %v3209 = vunpack.c.l.b16 %v2825
    %v3210 = vunpack.c.l.b16 %v2826
    %v3211 = vunpack.c.l.b16 %v2827
    %v3212 = vunpack.c.l.b16 %v2828
    %v3213 = vunpack.c.l.b16 %v2829
    %v3214 = vunpack.c.l.b16 %v2830
    %v3215 = vunpack.c.l.b16 %v2831
    %v3216 = vunpack.c.l.b16 %v2832
    %v3217 = vunpack.c.l.b16 %v2833
    %v3218 = vunpack.c.l.b16 %v2834
    %v3219 = vunpack.c.l.b16 %v2835
    %v3220 = vunpack.c.l.b16 %v2836
    %v3221 = vunpack.c.l.b16 %v2837
    %v3222 = vunpack.c.l.b16 %v2838
    %v3223 = vunpack.c.l.b16 %v2839
    %v3224 = vunpack.c.l.b16 %v2840
    %v3225 = vunpack.c.l.b16 %v2841
    %v3226 = vunpack.c.l.b16 %v2842
    %v3227 = vunpack.c.l.b16 %v2843
    %v3228 = vunpack.c.l.b16 %v2844
    %v3229 = vunpack.c.l.b16 %v2845
    %v3230 = vunpack.c.l.b16 %v2846
    %v3231 = vunpack.c.l.b16 %v2847
    %v3232 = vunpack.c.l.b16 %v2848
    %v3233 = vunpack.c.l.b16 %v2849
    %v3234 = vunpack.c.l.b16 %v2850
    %v3235 = vunpack.c.l.b16 %v2851
    %v3236 = vunpack.c.l.b16 %v2852
    %v3237 = vunpack.c.l.b16 %v2853
    %v3238 = vunpack.c.l.b16 %v2854
    %v3239 = vunpack.c.l.b16 %v2855
    %v3240 = vunpack.c.l.b16 %v2856
    %v3241 = vunpack.c.l.b16 %v2857
    %v3242 = vunpack.c.l.b16 %v2858
    %v3243 = vunpack.c.l.b16 %v2859
    %v3244 = vunpack.c.l.b16 %v2860
    %v3245 = vunpack.c.l.b16 %v2861
    %v3246 = vunpack.c.l.b16 %v2862
    %v3247 = vunpack.c.l.b16 %v2863
    %v3248 = vunpack.c.l.b16 %v2864
    %v3249 = vunpack.c.l.b16 %v2865
    %v3250 = vunpack.c.l.b16 %v2866
    %v3251 = vunpack.c.l.b16 %v2867
    %v3252 = vunpack.c.l.b16 %v2868
    %v3253 = vunpack.c.l.b16 %v2869
    %v3254 = vunpack.c.l.b16 %v2870
    %v3255 = vunpack.c.l.b16 %v2871
    %v3256 = vunpack.c.l.b16 %v2872
    %v3257 = vunpack.c.l.b16 %v2873
    %v3258 = vunpack.c.l.b16 %v2874
    %v3259 = vunpack.c.l.b16 %v2875
    %v3260 = vunpack.c.l.b16 %v2876
    %v3261 = vunpack.c.l.b16 %v2877
    %v3262 = vunpack.c.l.b16 %v2878
    %v3263 = vunpack.c.l.b16 %v2879
    %v3264 = vunpack.c.l.b16 %v2880
    %v3265 = vunpack.c.l.b16 %v2881
    %v3266 = vunpack.c.l.b16 %v2882
    %v3267 = vunpack.c.l.b16 %v2883
    %v3268 = vunpack.c.l.b16 %v2884
    %v3269 = vunpack.c.l.b16 %v2885
    %v3270 = vunpack.c.l.b16 %v2886
    %v3271 = vunpack.c.l.b16 %v2887
    %v3272 = vunpack.c.l.b16 %v2888
    %v3273 = vunpack.c.l.b16 %v2889
    %v3274 = vunpack.c.l.b16 %v2890
    %v3275 = vunpack.c.l.b16 %v2891
    %v3276 = vunpack.c.l.b16 %v2892
    %v3277 = vunpack.c.l.b16 %v2893
    %v3278 = vunpack.c.l.b16 %v2894
    %v3279 = vunpack.c.l.b16 %v2895
    %v3280 = vunpack.c.l.b16 %v2896
    %v3281 = vunpack.c.l.b16 %v2897
    %v3282 = vunpack.c.l.b16 %v2898
    %v3283 = vunpack.c.l.b16 %v2899
    %v3284 = vunpack.c.l.b16 %v2900
    %v3285 = vunpack.c.l.b16 %v2901
    %v3286 = vunpack.c.l.b16 %v2902
    %v3287 = vunpack.c.l.b16 %v2903
    %v3288 = vunpack.c.l.b16 %v2904
    %v3289 = vunpack.c.l.b16 %v2905
    %v3290 = vunpack.c.l.b16 %v2906
    %v3291 = vunpack.c.l.b16 %v2907
    %v3292 = vunpack.c.l.b16 %v2908
    %v3293 = vunpack.c.l.b16 %v2909
    %v3294 = vunpack.c.l.b16 %v2910
    %v3295 = vunpack.c.l.b16 %v2911
    %v3296 = vunpack.c.l.b16 %v2912
    %v3297 = vunpack.c.l.b16 %v2913
    %v3298 = vunpack.c.l.b16 %v2914
    %v3299 = vunpack.c.l.b16 %v2915
    %v3300 = vunpack.c.l.b16 %v2916
    %v3301 = vunpack.c.l.b16 %v2917
    %v3302 = vunpack.c.l.b16 %v2918
    %v3303 = vunpack.c.l.b16 %v2919
    %v3304 = vunpack.c.l.b16 %v2920
    %v3305 = vunpack.c.l.b16 %v2921
    %v3306 = vunpack.c.l.b16 %v2922
    %v3307 = vunpack.c.l.b16 %v2923
    %v3308 = vunpack.c.l.b16 %v2924
    %v3309 = vunpack.c.l.b16 %v2925
    %v3310 = vunpack.c.l.b16 %v2926
    %v3311 = vunpack.c.l.b16 %v2927
    %v3312 = vunpack.c.l.b16 %v2928
    %v3313 = vunpack.c.l.b16 %v2929
    %v3314 = vunpack.c.l.b16 %v2930
    %v3315 = vunpack.c.l.b16 %v2931
    %v3316 = vunpack.c.l.b16 %v2932
    %v3317 = vunpack.c.l.b16 %v2933
    %v3318 = vunpack.c.l.b16 %v2934
    %v3319 = vunpack.c.l.b16 %v2935
    %v3320 = vunpack.c.l.b16 %v2936
    %v3321 = vunpack.c.l.b16 %v2937
    %v3322 = vunpack.c.l.b16 %v2938
    %v3323 = vunpack.c.l.b16 %v2939
    %v3324 = vunpack.c.l.b16 %v2940
    %v3325 = vunpack.c.l.b16 %v2941
    %v3326 = vunpack.c.l.b16 %v2942
    %v3327 = vunpack.c.l.b16 %v2943
    %v3328 = vunpack.c.l.b16 %v2944
    %v3329 = vunpack.c.l.b16 %v2945
    %v3330 = vunpack.c.l.b16 %v2946
    %v3331 = vunpack.c.l.b16 %v2947
    %v3332 = vunpack.c.l.b16 %v2948
    %v3333 = vunpack.c.l.b16 %v2949
    %v3334 = vunpack.c.l.b16 %v2950
    %v3335 = vunpack.c.l.b16 %v2951
    %v3336 = vunpack.c.l.b16 %v2952
    %v3337 = vunpack.c.l.b16 %v2953
    %v3338 = vunpack.c.l.b16 %v2954
    %v3339 = vunpack.c.l.b16 %v2955
    %v3340 = vunpack.c.l.b16 %v2956
    %v3341 = vunpack.c.l.b16 %v2957
    %v3342 = vunpack.c.l.b16 %v2958
    %v3343 = vunpack.c.l.b16 %v2959
    %v3344 = vunpack.c.l.b16 %v2960
    %v3345 = vunpack.c.l.b16 %v2961
    %v3346 = vunpack.c.l.b16 %v2962
    %v3347 = vunpack.c.l.b16 %v2963
    %v3348 = vunpack.c.l.b16 %v2964
    %v3349 = vunpack.c.l.b16 %v2965
    %v3350 = vunpack.c.l.b16 %v2966
    %v3351 = vunpack.c.l.b16 %v2967
    %v3352 = vunpack.c.l.b16 %v2968
    %v3353 = vunpack.c.l.b16 %v2969
    %v3354 = vunpack.c.l.b16 %v2970
    %v3355 = vunpack.c.l.b16 %v2971
    %v3356 = vunpack.c.l.b16 %v2972
    %v3357 = vunpack.c.l.b16 %v2973
    %v3358 = vunpack.c.l.b16 %v2974
    %v3359 = vunpack.c.l.b16 %v2975
    %v3360 = vunpack.c.l.b16 %v2976
    %v3361 = vunpack.c.l.b16 %v2977
    %v3362 = vunpack.c.l.b16 %v2978
    %v3363 = vpack.c.b16 %v3172, %v3171
    %v3364 = vpack.c.b16 %v3174, %v3173
    %v3365 = vpack.c.b16 %v3176, %v3175
    %v3366 = vpack.c.b16 %v3178, %v3177
    %v3367 = vpack.c.b16 %v3180, %v3179
    %v3368 = vpack.c.b16 %v3182, %v3181
    %v3369 = vpack.c.b16 %v3184, %v3183
    %v3370 = vpack.c.b16 %v3186, %v3185
    %v3371 = vpack.c.b16 %v3188, %v3187
    %v3372 = vpack.c.b16 %v3190, %v3189
    %v3373 = vpack.c.b16 %v3192, %v3191
    %v3374 = vpack.c.b16 %v3194, %v3193
    %v3375 = vpack.c.b16 %v3196, %v3195
    %v3376 = vpack.c.b16 %v3198, %v3197
    %v3377 = vpack.c.b16 %v3200, %v3199
    %v3378 = vpack.c.b16 %v3202, %v3201
    %v3379 = vpack.c.b16 %v3204, %v3203
    %v3380 = vpack.c.b16 %v3206, %v3205
    %v3381 = vpack.c.b16 %v3208, %v3207
    %v3382 = vpack.c.b16 %v3210, %v3209
    %v3383 = vpack.c.b16 %v3212, %v3211
    %v3384 = vpack.c.b16 %v3214, %v3213
    %v3385 = vpack.c.b16 %v3216, %v3215
    %v3386 = vpack.c.b16 %v3218, %v3217
    %v3387 = vpack.c.b16 %v3220, %v3219
    %v3388 = vpack.c.b16 %v3222, %v3221
    %v3389 = vpack.c.b16 %v3224, %v3223
    %v3390 = vpack.c.b16 %v3226, %v3225
    %v3391 = vpack.c.b16 %v3228, %v3227
    %v3392 = vpack.c.b16 %v3230, %v3229
    %v3393 = vpack.c.b16 %v3232, %v3231
    %v3394 = vpack.c.b16 %v3234, %v3233
    %v3395 = vpack.c.b16 %v3236, %v3235
    %v3396 = vpack.c.b16 %v3238, %v3237
    %v3397 = vpack.c.b16 %v3240, %v3239
    %v3398 = vpack.c.b16 %v3242, %v3241
    %v3399 = vpack.c.b16 %v3244, %v3243
    %v3400 = vpack.c.b16 %v3246, %v3245
    %v3401 = vpack.c.b16 %v3248, %v3247
    %v3402 = vpack.c.b16 %v3250, %v3249
    %v3403 = vpack.c.b16 %v3252, %v3251
    %v3404 = vpack.c.b16 %v3254, %v3253
    %v3405 = vpack.c.b16 %v3256, %v3255
    %v3406 = vpack.c.b16 %v3258, %v3257
    %v3407 = vpack.c.b16 %v3260, %v3259
    %v3408 = vpack.c.b16 %v3262, %v3261
    %v3409 = vpack.c.b16 %v3264, %v3263
    %v3410 = vpack.c.b16 %v3266, %v3265
    %v3411 = vpack.c.b16 %v3268, %v3267
    %v3412 = vpack.c.b16 %v3270, %v3269
    %v3413 = vpack.c.b16 %v3272, %v3271
    %v3414 = vpack.c.b16 %v3274, %v3273
    %v3415 = vpack.c.b16 %v3276, %v3275
    %v3416 = vpack.c.b16 %v3278, %v3277
    %v3417 = vpack.c.b16 %v3280, %v3279
    %v3418 = vpack.c.b16 %v3282, %v3281
    %v3419 = vpack.c.b16 %v3284, %v3283
    %v3420 = vpack.c.b16 %v3286, %v3285
    %v3421 = vpack.c.b16 %v3288, %v3287
    %v3422 = vpack.c.b16 %v3290, %v3289
    %v3423 = vpack.c.b16 %v3292, %v3291
    %v3424 = vpack.c.b16 %v3294, %v3293
    %v3425 = vpack.c.b16 %v3296, %v3295
    %v3426 = vpack.c.b16 %v3298, %v3297
    %v3427 = vpack.c.b16 %v3300, %v3299
    %v3428 = vpack.c.b16 %v3302, %v3301
    %v3429 = vpack.c.b16 %v3304, %v3303
    %v3430 = vpack.c.b16 %v3306, %v3305
    %v3431 = vpack.c.b16 %v3308, %v3307
    %v3432 = vpack.c.b16 %v3310, %v3309
    %v3433 = vpack.c.b16 %v3312, %v3311
    %v3434 = vpack.c.b16 %v3314, %v3313
    %v3435 = vpack.c.b16 %v3316, %v3315
    %v3436 = vpack.c.b16 %v3318, %v3317
    %v3437 = vpack.c.b16 %v3320, %v3319
    %v3438 = vpack.c.b16 %v3322, %v3321
    %v3439 = vpack.c.b16 %v3324, %v3323
    %v3440 = vpack.c.b16 %v3326, %v3325
    %v3441 = vpack.c.b16 %v3328, %v3327
    %v3442 = vpack.c.b16 %v3330, %v3329
    %v3443 = vpack.c.b16 %v3332, %v3331
    %v3444 = vpack.c.b16 %v3334, %v3333
    %v3445 = vpack.c.b16 %v3336, %v3335
    %v3446 = vpack.c.b16 %v3338, %v3337
    %v3447 = vpack.c.b16 %v3340, %v3339
    %v3448 = vpack.c.b16 %v3342, %v3341
    %v3449 = vpack.c.b16 %v3344, %v3343
    %v3450 = vpack.c.b16 %v3346, %v3345
    %v3451 = vpack.c.b16 %v3348, %v3347
    %v3452 = vpack.c.b16 %v3350, %v3349
    %v3453 = vpack.c.b16 %v3352, %v3351
    %v3454 = vpack.c.b16 %v3354, %v3353
    %v3455 = vpack.c.b16 %v3356, %v3355
    %v3456 = vpack.c.b16 %v3358, %v3357
    %v3457 = vpack.c.b16 %v3360, %v3359
    %v3458 = vpack.c.b16 %v3362, %v3361
    %3555 = vmatpush.bf16.msra.mxu0 %v3370
    %3556 = vmatpush.bf16.msra.mxu0 %v3369
    %3557 = vmatpush.bf16.msra.mxu0 %v3368
    %3558 = vmatpush.bf16.msra.mxu0 %v3367
    %3559 = vmatpush.bf16.msra.mxu0 %v3366
    %3560 = vmatpush.bf16.msra.mxu0 %v3365
    %3561 = vmatpush.bf16.msra.mxu0 %v3364
    %3562 = vmatpush.bf16.msra.mxu0 %v3363
    %3563 = vmatmul.bf16.gmra.mxu0 %v2775
    %v3564 = vpop.f32.mrf.mxu0
    %v3565 = vadd.f32 0.0, %v3564
    %v3566 = vpop.f32.mrf.mxu0
    %3567 = vdwg.mxu0
    %3568 = vmatpush.bf16.msra.mxu0 %v3378
    %3569 = vmatpush.bf16.msra.mxu0 %v3377
    %3570 = vmatpush.bf16.msra.mxu0 %v3376
    %3571 = vmatpush.bf16.msra.mxu0 %v3375
    %3572 = vmatpush.bf16.msra.mxu0 %v3374
    %3573 = vmatpush.bf16.msra.mxu0 %v3373
    %3574 = vmatpush.bf16.msra.mxu0 %v3372
    %3575 = vmatpush.bf16.msra.mxu0 %v3371
    %3576 = vmatmul.bf16.gmra.mxu0 %v2776
    %v3577 = vpop.f32.mrf.mxu0
    %v3578 = vadd.f32 %v3565, %v3577
    %v3579 = vpop.f32.mrf.mxu0
    %3580 = vdwg.mxu0
    %3581 = vmatpush.bf16.msra.mxu0 %v3386
    %3582 = vmatpush.bf16.msra.mxu0 %v3385
    %3583 = vmatpush.bf16.msra.mxu0 %v3384
    %3584 = vmatpush.bf16.msra.mxu0 %v3383
    %3585 = vmatpush.bf16.msra.mxu0 %v3382
    %3586 = vmatpush.bf16.msra.mxu0 %v3381
    %3587 = vmatpush.bf16.msra.mxu0 %v3380
    %3588 = vmatpush.bf16.msra.mxu0 %v3379
    %3589 = vmatmul.bf16.gmra.mxu0 %v2777
    %v3590 = vpop.f32.mrf.mxu0
    %v3591 = vadd.f32 %v3578, %v3590
    %v3592 = vpop.f32.mrf.mxu0
    %3593 = vdwg.mxu0
    %3594 = vmatpush.bf16.msra.mxu0 %v3394
    %3595 = vmatpush.bf16.msra.mxu0 %v3393
    %3596 = vmatpush.bf16.msra.mxu0 %v3392
    %3597 = vmatpush.bf16.msra.mxu0 %v3391
    %3598 = vmatpush.bf16.msra.mxu0 %v3390
    %3599 = vmatpush.bf16.msra.mxu0 %v3389
    %3600 = vmatpush.bf16.msra.mxu0 %v3388
    %3601 = vmatpush.bf16.msra.mxu0 %v3387
    %3602 = vmatmul.bf16.gmra.mxu0 %v2778
    %v3603 = vpop.f32.mrf.mxu0
    %v3604 = vadd.f32 %v3591, %v3603
    %v3605 = vpop.f32.mrf.mxu0
    %3606 = vdwg.mxu0
    %3607 = vmatpush.bf16.msra.mxu0 %v3402
    %3608 = vmatpush.bf16.msra.mxu0 %v3401
    %3609 = vmatpush.bf16.msra.mxu0 %v3400
    %3610 = vmatpush.bf16.msra.mxu0 %v3399
    %3611 = vmatpush.bf16.msra.mxu0 %v3398
    %3612 = vmatpush.bf16.msra.mxu0 %v3397
    %3613 = vmatpush.bf16.msra.mxu0 %v3396
    %3614 = vmatpush.bf16.msra.mxu0 %v3395
    %3615 = vmatmul.bf16.gmra.mxu0 %v2779
    %v3616 = vpop.f32.mrf.mxu0
    %v3617 = vadd.f32 %v3604, %v3616
    %v3618 = vpop.f32.mrf.mxu0
    %3619 = vdwg.mxu0
    %3620 = vmatpush.bf16.msra.mxu0 %v3410
    %3621 = vmatpush.bf16.msra.mxu0 %v3409
    %3622 = vmatpush.bf16.msra.mxu0 %v3408
    %3623 = vmatpush.bf16.msra.mxu0 %v3407
    %3624 = vmatpush.bf16.msra.mxu0 %v3406
    %3625 = vmatpush.bf16.msra.mxu0 %v3405
    %3626 = vmatpush.bf16.msra.mxu0 %v3404
    %3627 = vmatpush.bf16.msra.mxu0 %v3403
    %3628 = vmatmul.bf16.gmra.mxu0 %v2780
    %v3629 = vpop.f32.mrf.mxu0
    %v3630 = vadd.f32 %v3617, %v3629
    %v3631 = vpop.f32.mrf.mxu0
    %3632 = vdwg.mxu0
    %3633 = vmatpush.bf16.msra.mxu0 %v3418
    %3634 = vmatpush.bf16.msra.mxu0 %v3417
    %3635 = vmatpush.bf16.msra.mxu0 %v3416
    %3636 = vmatpush.bf16.msra.mxu0 %v3415
    %3637 = vmatpush.bf16.msra.mxu0 %v3414
    %3638 = vmatpush.bf16.msra.mxu0 %v3413
    %3639 = vmatpush.bf16.msra.mxu0 %v3412
    %3640 = vmatpush.bf16.msra.mxu0 %v3411
    %3641 = vmatmul.bf16.gmra.mxu0 %v2781
    %v3642 = vpop.f32.mrf.mxu0
    %v3643 = vadd.f32 %v3630, %v3642
    %v3644 = vpop.f32.mrf.mxu0
    %3645 = vdwg.mxu0
    %3646 = vmatpush.bf16.msra.mxu0 %v3426
    %3647 = vmatpush.bf16.msra.mxu0 %v3425
    %3648 = vmatpush.bf16.msra.mxu0 %v3424
    %3649 = vmatpush.bf16.msra.mxu0 %v3423
    %3650 = vmatpush.bf16.msra.mxu0 %v3422
    %3651 = vmatpush.bf16.msra.mxu0 %v3421
    %3652 = vmatpush.bf16.msra.mxu0 %v3420
    %3653 = vmatpush.bf16.msra.mxu0 %v3419
    %3654 = vmatmul.bf16.gmra.mxu0 %v2782
    %v3655 = vpop.f32.mrf.mxu0
    %v3656 = vadd.f32 %v3643, %v3655
    %v3657 = vpop.f32.mrf.mxu0
    %3658 = vdwg.mxu0
    %3659 = vmatpush.bf16.msra.mxu0 %v3434
    %3660 = vmatpush.bf16.msra.mxu0 %v3433
    %3661 = vmatpush.bf16.msra.mxu0 %v3432
    %3662 = vmatpush.bf16.msra.mxu0 %v3431
    %3663 = vmatpush.bf16.msra.mxu0 %v3430
    %3664 = vmatpush.bf16.msra.mxu0 %v3429
    %3665 = vmatpush.bf16.msra.mxu0 %v3428
    %3666 = vmatpush.bf16.msra.mxu0 %v3427
    %3667 = vmatmul.bf16.gmra.mxu0 %v2783
    %v3668 = vpop.f32.mrf.mxu0
    %v3669 = vadd.f32 %v3656, %v3668
    %v3670 = vpop.f32.mrf.mxu0
    %3671 = vdwg.mxu0
    %3672 = vmatpush.bf16.msra.mxu0 %v3442
    %3673 = vmatpush.bf16.msra.mxu0 %v3441
    %3674 = vmatpush.bf16.msra.mxu0 %v3440
    %3675 = vmatpush.bf16.msra.mxu0 %v3439
    %3676 = vmatpush.bf16.msra.mxu0 %v3438
    %3677 = vmatpush.bf16.msra.mxu0 %v3437
    %3678 = vmatpush.bf16.msra.mxu0 %v3436
    %3679 = vmatpush.bf16.msra.mxu0 %v3435
    %3680 = vmatmul.bf16.gmra.mxu0 %v2784
    %v3681 = vpop.f32.mrf.mxu0
    %v3682 = vadd.f32 %v3669, %v3681
    %v3683 = vpop.f32.mrf.mxu0
    %3684 = vdwg.mxu0
    %3685 = vmatpush.bf16.msra.mxu0 %v3450
    %3686 = vmatpush.bf16.msra.mxu0 %v3449
    %3687 = vmatpush.bf16.msra.mxu0 %v3448
    %3688 = vmatpush.bf16.msra.mxu0 %v3447
    %3689 = vmatpush.bf16.msra.mxu0 %v3446
    %3690 = vmatpush.bf16.msra.mxu0 %v3445
    %3691 = vmatpush.bf16.msra.mxu0 %v3444
    %3692 = vmatpush.bf16.msra.mxu0 %v3443
    %3693 = vmatmul.bf16.gmra.mxu0 %v2785
    %v3694 = vpop.f32.mrf.mxu0
    %v3695 = vadd.f32 %v3682, %v3694
    %v3696 = vpop.f32.mrf.mxu0
    %3697 = vdwg.mxu0
    %3698 = vmatpush.bf16.msra.mxu0 %v3458
    %3699 = vmatpush.bf16.msra.mxu0 %v3457
    %3700 = vmatpush.bf16.msra.mxu0 %v3456
    %3701 = vmatpush.bf16.msra.mxu0 %v3455
    %3702 = vmatpush.bf16.msra.mxu0 %v3454
    %3703 = vmatpush.bf16.msra.mxu0 %v3453
    %3704 = vmatpush.bf16.msra.mxu0 %v3452
    %3705 = vmatpush.bf16.msra.mxu0 %v3451
    %3706 = vmatmul.bf16.gmra.mxu0 %v2786
    %v3707 = vpop.f32.mrf.mxu0
    %v3708 = vadd.f32 %v3695, %v3707
    %v3709 = vpop.f32.mrf.mxu0
    %3710 = vdwg.mxu0
    %v3711 = vadd.f32 %v2522, %v3708
    %v3712 = vld [vmem:[#allocation6 + $0x24] sm:$0xff]
    %v3713 = vld [vmem:[#allocation6 + $0x2c] sm:$0xf]
    %v3714 = vld [vmem:[%s0 + $0x90] sm:$0xff]
    %v3715 = vld [vmem:[%s0 + $0x98] sm:$0xff]
    %v3716 = vld [vmem:[%s0 + $0xa0] sm:$0xff]
    %v3717 = vld [vmem:[%s0 + $0xa8] sm:$0xff]
    %v3718 = vld [vmem:[%s0 + $0xb0] sm:$0xff]
    %v3719 = vld [vmem:[%s0 + $0xb8] sm:$0xff]
    %v3720 = vunpack.c.l.bf16 %v3714
    %v3721 = vunpack.c.h.bf16 %v3714
    %v3722 = vunpack.c.l.bf16 %v3715
    %v3723 = vunpack.c.h.bf16 %v3715
    %v3724 = vunpack.c.l.bf16 %v3716
    %v3725 = vunpack.c.h.bf16 %v3716
    %v3726 = vunpack.c.l.bf16 %v3717
    %v3727 = vunpack.c.h.bf16 %v3717
    %v3728 = vunpack.c.l.bf16 %v3718
    %v3729 = vunpack.c.h.bf16 %v3718
    %v3730 = vunpack.c.l.bf16 %v3719
    %v3731 = vunpack.c.h.bf16 %v3719
    %v3732 = vld [vmem:[#allocation2 + $0x24] sm:$0xff]
    %v3733 = vld [vmem:[#allocation2 + $0x2c] sm:$0xf]
    %v3736 = vperm.slane %v3732, 0
    %v3737 = vperm.slane %v3732, 1
    %v3738 = vperm.slane %v3732, 2
    %v3739 = vperm.slane %v3732, 3
    %v3740 = vperm.slane %v3732, 4
    %v3741 = vperm.slane %v3732, 5
    %v3742 = vperm.slane %v3732, 6
    %v3743 = vperm.slane %v3732, 7
    %v3744 = vperm.slane %v3733, 0
    %v3745 = vperm.slane %v3733, 1
    %v3746 = vperm.slane %v3733, 2
    %v3747 = vperm.slane %v3733, 3
    %v3760 = vmul.f32 %v3720, %v3736
    %v3761 = vmul.f32 %v3721, %v3737
    %v3762 = vmul.f32 %v3722, %v3738
    %v3763 = vmul.f32 %v3723, %v3739
    %v3764 = vmul.f32 %v3724, %v3740
    %v3765 = vmul.f32 %v3725, %v3741
    %v3766 = vmul.f32 %v3726, %v3742
    %v3767 = vmul.f32 %v3727, %v3743
    %v3768 = vmul.f32 %v3728, %v3744
    %v3769 = vmul.f32 %v3729, %v3745
    %v3770 = vmul.f32 %v3730, %v3746
    %v3771 = vmul.f32 %v3731, %v3747
    %v3774 = vperm.slane %v3712, 0
    %v3775 = vperm.slane %v3712, 1
    %v3776 = vperm.slane %v3712, 2
    %v3777 = vperm.slane %v3712, 3
    %v3778 = vperm.slane %v3712, 4
    %v3779 = vperm.slane %v3712, 5
    %v3780 = vperm.slane %v3712, 6
    %v3781 = vperm.slane %v3712, 7
    %v3782 = vperm.slane %v3713, 0
    %v3783 = vperm.slane %v3713, 1
    %v3784 = vperm.slane %v3713, 2
    %v3785 = vperm.slane %v3713, 3
    %v3798 = vadd.f32 %v3774, %v3760
    %v3799 = vadd.f32 %v3775, %v3761
    %v3800 = vadd.f32 %v3776, %v3762
    %v3801 = vadd.f32 %v3777, %v3763
    %v3802 = vadd.f32 %v3778, %v3764
    %v3803 = vadd.f32 %v3779, %v3765
    %v3804 = vadd.f32 %v3780, %v3766
    %v3805 = vadd.f32 %v3781, %v3767
    %v3806 = vadd.f32 %v3782, %v3768
    %v3807 = vadd.f32 %v3783, %v3769
    %v3808 = vadd.f32 %v3784, %v3770
    %v3809 = vadd.f32 %v3785, %v3771
    %v3810 = vld [vmem:[%s247 + $0x90] sm:$0xff]
    %v3811 = vld [vmem:[%s247 + $0x98] sm:$0xff]
    %v3812 = vld [vmem:[%s247 + $0xa0] sm:$0xff]
    %v3813 = vld [vmem:[%s247 + $0xa8] sm:$0xff]
    %v3814 = vld [vmem:[%s247 + $0xb0] sm:$0xff]
    %v3815 = vld [vmem:[%s247 + $0xb8] sm:$0xff]
    %v3816 = vunpack.c.l.bf16 %v3810
    %v3817 = vunpack.c.h.bf16 %v3810
    %v3818 = vunpack.c.l.bf16 %v3811
    %v3819 = vunpack.c.h.bf16 %v3811
    %v3820 = vunpack.c.l.bf16 %v3812
    %v3821 = vunpack.c.h.bf16 %v3812
    %v3822 = vunpack.c.l.bf16 %v3813
    %v3823 = vunpack.c.h.bf16 %v3813
    %v3824 = vunpack.c.l.bf16 %v3814
    %v3825 = vunpack.c.h.bf16 %v3814
    %v3826 = vunpack.c.l.bf16 %v3815
    %v3827 = vunpack.c.h.bf16 %v3815
    %v3828 = vld [vmem:[%s266 + $0x24] sm:$0xff]
    %v3829 = vld [vmem:[%s266 + $0x2c] sm:$0xf]
    %v3832 = vperm.slane %v3828, 0
    %v3833 = vperm.slane %v3828, 1
    %v3834 = vperm.slane %v3828, 2
    %v3835 = vperm.slane %v3828, 3
    %v3836 = vperm.slane %v3828, 4
    %v3837 = vperm.slane %v3828, 5
    %v3838 = vperm.slane %v3828, 6
    %v3839 = vperm.slane %v3828, 7
    %v3840 = vperm.slane %v3829, 0
    %v3841 = vperm.slane %v3829, 1
    %v3842 = vperm.slane %v3829, 2
    %v3843 = vperm.slane %v3829, 3
    %v3856 = vmul.f32 %v3816, %v3832
    %v3857 = vmul.f32 %v3817, %v3833
    %v3858 = vmul.f32 %v3818, %v3834
    %v3859 = vmul.f32 %v3819, %v3835
    %v3860 = vmul.f32 %v3820, %v3836
    %v3861 = vmul.f32 %v3821, %v3837
    %v3862 = vmul.f32 %v3822, %v3838
    %v3863 = vmul.f32 %v3823, %v3839
    %v3864 = vmul.f32 %v3824, %v3840
    %v3865 = vmul.f32 %v3825, %v3841
    %v3866 = vmul.f32 %v3826, %v3842
    %v3867 = vmul.f32 %v3827, %v3843
    %v3868 = vadd.f32 %v3798, %v3856
    %v3869 = vadd.f32 %v3799, %v3857
    %v3870 = vadd.f32 %v3800, %v3858
    %v3871 = vadd.f32 %v3801, %v3859
    %v3872 = vadd.f32 %v3802, %v3860
    %v3873 = vadd.f32 %v3803, %v3861
    %v3874 = vadd.f32 %v3804, %v3862
    %v3875 = vadd.f32 %v3805, %v3863
    %v3876 = vadd.f32 %v3806, %v3864
    %v3877 = vadd.f32 %v3807, %v3865
    %v3878 = vadd.f32 %v3808, %v3866
    %v3879 = vadd.f32 %v3809, %v3867
    %v3880 = vld [vmem:[%s319 + $0x90] sm:$0xff]
    %v3881 = vld [vmem:[%s319 + $0x98] sm:$0xff]
    %v3882 = vld [vmem:[%s319 + $0xa0] sm:$0xff]
    %v3883 = vld [vmem:[%s319 + $0xa8] sm:$0xff]
    %v3884 = vld [vmem:[%s319 + $0xb0] sm:$0xff]
    %v3885 = vld [vmem:[%s319 + $0xb8] sm:$0xff]
    %v3886 = vunpack.c.l.bf16 %v3880
    %v3887 = vunpack.c.h.bf16 %v3880
    %v3888 = vunpack.c.l.bf16 %v3881
    %v3889 = vunpack.c.h.bf16 %v3881
    %v3890 = vunpack.c.l.bf16 %v3882
    %v3891 = vunpack.c.h.bf16 %v3882
    %v3892 = vunpack.c.l.bf16 %v3883
    %v3893 = vunpack.c.h.bf16 %v3883
    %v3894 = vunpack.c.l.bf16 %v3884
    %v3895 = vunpack.c.h.bf16 %v3884
    %v3896 = vunpack.c.l.bf16 %v3885
    %v3897 = vunpack.c.h.bf16 %v3885
    %v3898 = vld [vmem:[%s338 + $0x24] sm:$0xff]
    %v3899 = vld [vmem:[%s338 + $0x2c] sm:$0xf]
    %v3902 = vperm.slane %v3898, 0
    %v3903 = vperm.slane %v3898, 1
    %v3904 = vperm.slane %v3898, 2
    %v3905 = vperm.slane %v3898, 3
    %v3906 = vperm.slane %v3898, 4
    %v3907 = vperm.slane %v3898, 5
    %v3908 = vperm.slane %v3898, 6
    %v3909 = vperm.slane %v3898, 7
    %v3910 = vperm.slane %v3899, 0
    %v3911 = vperm.slane %v3899, 1
    %v3912 = vperm.slane %v3899, 2
    %v3913 = vperm.slane %v3899, 3
    %v3926 = vmul.f32 %v3886, %v3902
    %v3927 = vmul.f32 %v3887, %v3903
    %v3928 = vmul.f32 %v3888, %v3904
    %v3929 = vmul.f32 %v3889, %v3905
    %v3930 = vmul.f32 %v3890, %v3906
    %v3931 = vmul.f32 %v3891, %v3907
    %v3932 = vmul.f32 %v3892, %v3908
    %v3933 = vmul.f32 %v3893, %v3909
    %v3934 = vmul.f32 %v3894, %v3910
    %v3935 = vmul.f32 %v3895, %v3911
    %v3936 = vmul.f32 %v3896, %v3912
    %v3937 = vmul.f32 %v3897, %v3913
    %v3938 = vadd.f32 %v3868, %v3926
    %v3939 = vadd.f32 %v3869, %v3927
    %v3940 = vadd.f32 %v3870, %v3928
    %v3941 = vadd.f32 %v3871, %v3929
    %v3942 = vadd.f32 %v3872, %v3930
    %v3943 = vadd.f32 %v3873, %v3931
    %v3944 = vadd.f32 %v3874, %v3932
    %v3945 = vadd.f32 %v3875, %v3933
    %v3946 = vadd.f32 %v3876, %v3934
    %v3947 = vadd.f32 %v3877, %v3935
    %v3948 = vadd.f32 %v3878, %v3936
    %v3949 = vadd.f32 %v3879, %v3937
    %v3950 = vmax.f32 %v3938, 0.0
    %v3951 = vmax.f32 %v3939, 0.0
    %v3952 = vmax.f32 %v3940, 0.0
    %v3953 = vmax.f32 %v3941, 0.0
    %v3954 = vmax.f32 %v3942, 0.0
    %v3955 = vmax.f32 %v3943, 0.0
    %v3956 = vmax.f32 %v3944, 0.0
    %v3957 = vmax.f32 %v3945, 0.0
    %v3958 = vmax.f32 %v3946, 0.0
    %v3959 = vmax.f32 %v3947, 0.0
    %v3960 = vmax.f32 %v3948, 0.0
    %v3961 = vmax.f32 %v3949, 0.0
    %v3962 = vpack.c.bf16 %v3950, %v3950
    %v3963 = vpack.c.bf16 %v3951, %v3951
    %v3964 = vpack.c.bf16 %v3952, %v3952
    %v3965 = vpack.c.bf16 %v3953, %v3953
    %v3966 = vpack.c.bf16 %v3954, %v3954
    %v3967 = vpack.c.bf16 %v3955, %v3955
    %v3968 = vpack.c.bf16 %v3956, %v3956
    %v3969 = vpack.c.bf16 %v3957, %v3957
    %v3970 = vpack.c.bf16 %v3958, %v3958
    %v3971 = vpack.c.bf16 %v3959, %v3959
    %v3972 = vpack.c.bf16 %v3960, %v3960
    %v3973 = vpack.c.bf16 %v3961, %v3961
    %v3974 = vld [vmem:[#allocation9 + $0x900] sm:$0xf]
    %v3975 = vld [vmem:[#allocation9 + $0x904] sm:$0xf]
    %v3976 = vld [vmem:[#allocation9 + $0x908] sm:$0xf]
    %v3977 = vld [vmem:[#allocation9 + $0x90c] sm:$0xf]
    %v3978 = vld [vmem:[#allocation9 + $0x910] sm:$0xf]
    %v3979 = vld [vmem:[#allocation9 + $0x914] sm:$0xf]
    %v3980 = vld [vmem:[#allocation9 + $0x918] sm:$0xf]
    %v3981 = vld [vmem:[#allocation9 + $0x91c] sm:$0xf]
    %v3982 = vld [vmem:[#allocation9 + $0x920] sm:$0xf]
    %v3983 = vld [vmem:[#allocation9 + $0x924] sm:$0xf]
    %v3984 = vld [vmem:[#allocation9 + $0x928] sm:$0xf]
    %v3985 = vld [vmem:[#allocation9 + $0x92c] sm:$0xf]
    %v3986 = vld [vmem:[#allocation9 + $0x930] sm:$0xf]
    %v3987 = vld [vmem:[#allocation9 + $0x934] sm:$0xf]
    %v3988 = vld [vmem:[#allocation9 + $0x938] sm:$0xf]
    %v3989 = vld [vmem:[#allocation9 + $0x93c] sm:$0xf]
    %v3990 = vld [vmem:[#allocation9 + $0x940] sm:$0xf]
    %v3991 = vld [vmem:[#allocation9 + $0x944] sm:$0xf]
    %v3992 = vld [vmem:[#allocation9 + $0x948] sm:$0xf]
    %v3993 = vld [vmem:[#allocation9 + $0x94c] sm:$0xf]
    %v3994 = vld [vmem:[#allocation9 + $0x950] sm:$0xf]
    %v3995 = vld [vmem:[#allocation9 + $0x954] sm:$0xf]
    %v3996 = vld [vmem:[#allocation9 + $0x958] sm:$0xf]
    %v3997 = vld [vmem:[#allocation9 + $0x95c] sm:$0xf]
    %v3998 = vld [vmem:[#allocation9 + $0x960] sm:$0xf]
    %v3999 = vld [vmem:[#allocation9 + $0x964] sm:$0xf]
    %v4000 = vld [vmem:[#allocation9 + $0x968] sm:$0xf]
    %v4001 = vld [vmem:[#allocation9 + $0x96c] sm:$0xf]
    %v4002 = vld [vmem:[#allocation9 + $0x970] sm:$0xf]
    %v4003 = vld [vmem:[#allocation9 + $0x974] sm:$0xf]
    %v4004 = vld [vmem:[#allocation9 + $0x978] sm:$0xf]
    %v4005 = vld [vmem:[#allocation9 + $0x97c] sm:$0xf]
    %v4006 = vld [vmem:[#allocation9 + $0x980] sm:$0xf]
    %v4007 = vld [vmem:[#allocation9 + $0x984] sm:$0xf]
    %v4008 = vld [vmem:[#allocation9 + $0x988] sm:$0xf]
    %v4009 = vld [vmem:[#allocation9 + $0x98c] sm:$0xf]
    %v4010 = vld [vmem:[#allocation9 + $0x990] sm:$0xf]
    %v4011 = vld [vmem:[#allocation9 + $0x994] sm:$0xf]
    %v4012 = vld [vmem:[#allocation9 + $0x998] sm:$0xf]
    %v4013 = vld [vmem:[#allocation9 + $0x99c] sm:$0xf]
    %v4014 = vld [vmem:[#allocation9 + $0x9a0] sm:$0xf]
    %v4015 = vld [vmem:[#allocation9 + $0x9a4] sm:$0xf]
    %v4016 = vld [vmem:[#allocation9 + $0x9a8] sm:$0xf]
    %v4017 = vld [vmem:[#allocation9 + $0x9ac] sm:$0xf]
    %v4018 = vld [vmem:[#allocation9 + $0x9b0] sm:$0xf]
    %v4019 = vld [vmem:[#allocation9 + $0x9b4] sm:$0xf]
    %v4020 = vld [vmem:[#allocation9 + $0x9b8] sm:$0xf]
    %v4021 = vld [vmem:[#allocation9 + $0x9bc] sm:$0xf]
    %v4022 = vld [vmem:[#allocation9 + $0x9c0] sm:$0xf]
    %v4023 = vld [vmem:[#allocation9 + $0x9c4] sm:$0xf]
    %v4024 = vld [vmem:[#allocation9 + $0x9c8] sm:$0xf]
    %v4025 = vld [vmem:[#allocation9 + $0x9cc] sm:$0xf]
    %v4026 = vld [vmem:[#allocation9 + $0x9d0] sm:$0xf]
    %v4027 = vld [vmem:[#allocation9 + $0x9d4] sm:$0xf]
    %v4028 = vld [vmem:[#allocation9 + $0x9d8] sm:$0xf]
    %v4029 = vld [vmem:[#allocation9 + $0x9dc] sm:$0xf]
    %v4030 = vld [vmem:[#allocation9 + $0x9e0] sm:$0xf]
    %v4031 = vld [vmem:[#allocation9 + $0x9e4] sm:$0xf]
    %v4032 = vld [vmem:[#allocation9 + $0x9e8] sm:$0xf]
    %v4033 = vld [vmem:[#allocation9 + $0x9ec] sm:$0xf]
    %v4034 = vld [vmem:[#allocation9 + $0x9f0] sm:$0xf]
    %v4035 = vld [vmem:[#allocation9 + $0x9f4] sm:$0xf]
    %v4036 = vld [vmem:[#allocation9 + $0x9f8] sm:$0xf]
    %v4037 = vld [vmem:[#allocation9 + $0x9fc] sm:$0xf]
    %v4038 = vld [vmem:[#allocation9 + $0xa00] sm:$0xf]
    %v4039 = vld [vmem:[#allocation9 + $0xa04] sm:$0xf]
    %v4040 = vld [vmem:[#allocation9 + $0xa08] sm:$0xf]
    %v4041 = vld [vmem:[#allocation9 + $0xa0c] sm:$0xf]
    %v4042 = vld [vmem:[#allocation9 + $0xa10] sm:$0xf]
    %v4043 = vld [vmem:[#allocation9 + $0xa14] sm:$0xf]
    %v4044 = vld [vmem:[#allocation9 + $0xa18] sm:$0xf]
    %v4045 = vld [vmem:[#allocation9 + $0xa1c] sm:$0xf]
    %v4046 = vld [vmem:[#allocation9 + $0xa20] sm:$0xf]
    %v4047 = vld [vmem:[#allocation9 + $0xa24] sm:$0xf]
    %v4048 = vld [vmem:[#allocation9 + $0xa28] sm:$0xf]
    %v4049 = vld [vmem:[#allocation9 + $0xa2c] sm:$0xf]
    %v4050 = vld [vmem:[#allocation9 + $0xa30] sm:$0xf]
    %v4051 = vld [vmem:[#allocation9 + $0xa34] sm:$0xf]
    %v4052 = vld [vmem:[#allocation9 + $0xa38] sm:$0xf]
    %v4053 = vld [vmem:[#allocation9 + $0xa3c] sm:$0xf]
    %v4054 = vld [vmem:[#allocation9 + $0xa40] sm:$0xf]
    %v4055 = vld [vmem:[#allocation9 + $0xa44] sm:$0xf]
    %v4056 = vld [vmem:[#allocation9 + $0xa48] sm:$0xf]
    %v4057 = vld [vmem:[#allocation9 + $0xa4c] sm:$0xf]
    %v4058 = vld [vmem:[#allocation9 + $0xa50] sm:$0xf]
    %v4059 = vld [vmem:[#allocation9 + $0xa54] sm:$0xf]
    %v4060 = vld [vmem:[#allocation9 + $0xa58] sm:$0xf]
    %v4061 = vld [vmem:[#allocation9 + $0xa5c] sm:$0xf]
    %v4062 = vld [vmem:[#allocation9 + $0xa60] sm:$0xf]
    %v4063 = vld [vmem:[#allocation9 + $0xa64] sm:$0xf]
    %v4064 = vld [vmem:[#allocation9 + $0xa68] sm:$0xf]
    %v4065 = vld [vmem:[#allocation9 + $0xa6c] sm:$0xf]
    %v4066 = vld [vmem:[#allocation9 + $0xa70] sm:$0xf]
    %v4067 = vld [vmem:[#allocation9 + $0xa74] sm:$0xf]
    %v4068 = vld [vmem:[#allocation9 + $0xa78] sm:$0xf]
    %v4069 = vld [vmem:[#allocation9 + $0xa7c] sm:$0xf]
    %v4070 = vld [vmem:[#allocation9 + $0xa80] sm:$0xf]
    %v4071 = vld [vmem:[#allocation9 + $0xa84] sm:$0xf]
    %v4072 = vld [vmem:[#allocation9 + $0xa88] sm:$0xf]
    %v4073 = vld [vmem:[#allocation9 + $0xa8c] sm:$0xf]
    %v4074 = vld [vmem:[#allocation9 + $0xa90] sm:$0xf]
    %v4075 = vld [vmem:[#allocation9 + $0xa94] sm:$0xf]
    %v4076 = vld [vmem:[#allocation9 + $0xa98] sm:$0xf]
    %v4077 = vld [vmem:[#allocation9 + $0xa9c] sm:$0xf]
    %v4078 = vld [vmem:[#allocation9 + $0xaa0] sm:$0xf]
    %v4079 = vld [vmem:[#allocation9 + $0xaa4] sm:$0xf]
    %v4080 = vld [vmem:[#allocation9 + $0xaa8] sm:$0xf]
    %v4081 = vld [vmem:[#allocation9 + $0xaac] sm:$0xf]
    %v4082 = vld [vmem:[#allocation9 + $0xab0] sm:$0xf]
    %v4083 = vld [vmem:[#allocation9 + $0xab4] sm:$0xf]
    %v4084 = vld [vmem:[#allocation9 + $0xab8] sm:$0xf]
    %v4085 = vld [vmem:[#allocation9 + $0xabc] sm:$0xf]
    %v4086 = vld [vmem:[#allocation9 + $0xac0] sm:$0xf]
    %v4087 = vld [vmem:[#allocation9 + $0xac4] sm:$0xf]
    %v4088 = vld [vmem:[#allocation9 + $0xac8] sm:$0xf]
    %v4089 = vld [vmem:[#allocation9 + $0xacc] sm:$0xf]
    %v4090 = vld [vmem:[#allocation9 + $0xad0] sm:$0xf]
    %v4091 = vld [vmem:[#allocation9 + $0xad4] sm:$0xf]
    %v4092 = vld [vmem:[#allocation9 + $0xad8] sm:$0xf]
    %v4093 = vld [vmem:[#allocation9 + $0xadc] sm:$0xf]
    %v4094 = vld [vmem:[#allocation9 + $0xae0] sm:$0xf]
    %v4095 = vld [vmem:[#allocation9 + $0xae4] sm:$0xf]
    %v4096 = vld [vmem:[#allocation9 + $0xae8] sm:$0xf]
    %v4097 = vld [vmem:[#allocation9 + $0xaec] sm:$0xf]
    %v4098 = vld [vmem:[#allocation9 + $0xaf0] sm:$0xf]
    %v4099 = vld [vmem:[#allocation9 + $0xaf4] sm:$0xf]
    %v4100 = vld [vmem:[#allocation9 + $0xaf8] sm:$0xf]
    %v4101 = vld [vmem:[#allocation9 + $0xafc] sm:$0xf]
    %v4102 = vld [vmem:[#allocation9 + $0xb00] sm:$0xf]
    %v4103 = vld [vmem:[#allocation9 + $0xb04] sm:$0xf]
    %v4104 = vld [vmem:[#allocation9 + $0xb08] sm:$0xf]
    %v4105 = vld [vmem:[#allocation9 + $0xb0c] sm:$0xf]
    %v4106 = vld [vmem:[#allocation9 + $0xb10] sm:$0xf]
    %v4107 = vld [vmem:[#allocation9 + $0xb14] sm:$0xf]
    %v4108 = vld [vmem:[#allocation9 + $0xb18] sm:$0xf]
    %v4109 = vld [vmem:[#allocation9 + $0xb1c] sm:$0xf]
    %v4110 = vld [vmem:[#allocation9 + $0xb20] sm:$0xf]
    %v4111 = vld [vmem:[#allocation9 + $0xb24] sm:$0xf]
    %v4112 = vld [vmem:[#allocation9 + $0xb28] sm:$0xf]
    %v4113 = vld [vmem:[#allocation9 + $0xb2c] sm:$0xf]
    %v4114 = vld [vmem:[#allocation9 + $0xb30] sm:$0xf]
    %v4115 = vld [vmem:[#allocation9 + $0xb34] sm:$0xf]
    %v4116 = vld [vmem:[#allocation9 + $0xb38] sm:$0xf]
    %v4117 = vld [vmem:[#allocation9 + $0xb3c] sm:$0xf]
    %v4118 = vld [vmem:[#allocation9 + $0xb40] sm:$0xf]
    %v4119 = vld [vmem:[#allocation9 + $0xb44] sm:$0xf]
    %v4120 = vld [vmem:[#allocation9 + $0xb48] sm:$0xf]
    %v4121 = vld [vmem:[#allocation9 + $0xb4c] sm:$0xf]
    %v4122 = vld [vmem:[#allocation9 + $0xb50] sm:$0xf]
    %v4123 = vld [vmem:[#allocation9 + $0xb54] sm:$0xf]
    %v4124 = vld [vmem:[#allocation9 + $0xb58] sm:$0xf]
    %v4125 = vld [vmem:[#allocation9 + $0xb5c] sm:$0xf]
    %v4126 = vld [vmem:[#allocation9 + $0xb60] sm:$0xf]
    %v4127 = vld [vmem:[#allocation9 + $0xb64] sm:$0xf]
    %v4128 = vld [vmem:[#allocation9 + $0xb68] sm:$0xf]
    %v4129 = vld [vmem:[#allocation9 + $0xb6c] sm:$0xf]
    %v4130 = vld [vmem:[#allocation9 + $0xb70] sm:$0xf]
    %v4131 = vld [vmem:[#allocation9 + $0xb74] sm:$0xf]
    %v4132 = vld [vmem:[#allocation9 + $0xb78] sm:$0xf]
    %v4133 = vld [vmem:[#allocation9 + $0xb7c] sm:$0xf]
    %v4134 = vld [vmem:[#allocation9 + $0xb80] sm:$0xf]
    %v4135 = vld [vmem:[#allocation9 + $0xb84] sm:$0xf]
    %v4136 = vld [vmem:[#allocation9 + $0xb88] sm:$0xf]
    %v4137 = vld [vmem:[#allocation9 + $0xb8c] sm:$0xf]
    %v4138 = vld [vmem:[#allocation9 + $0xb90] sm:$0xf]
    %v4139 = vld [vmem:[#allocation9 + $0xb94] sm:$0xf]
    %v4140 = vld [vmem:[#allocation9 + $0xb98] sm:$0xf]
    %v4141 = vld [vmem:[#allocation9 + $0xb9c] sm:$0xf]
    %v4142 = vld [vmem:[#allocation9 + $0xba0] sm:$0xf]
    %v4143 = vld [vmem:[#allocation9 + $0xba4] sm:$0xf]
    %v4144 = vld [vmem:[#allocation9 + $0xba8] sm:$0xf]
    %v4145 = vld [vmem:[#allocation9 + $0xbac] sm:$0xf]
    %v4146 = vld [vmem:[#allocation9 + $0xbb0] sm:$0xf]
    %v4147 = vld [vmem:[#allocation9 + $0xbb4] sm:$0xf]
    %v4148 = vld [vmem:[#allocation9 + $0xbb8] sm:$0xf]
    %v4149 = vld [vmem:[#allocation9 + $0xbbc] sm:$0xf]
    %v4150 = vld [vmem:[#allocation9 + $0xbc0] sm:$0xf]
    %v4151 = vld [vmem:[#allocation9 + $0xbc4] sm:$0xf]
    %v4152 = vld [vmem:[#allocation9 + $0xbc8] sm:$0xf]
    %v4153 = vld [vmem:[#allocation9 + $0xbcc] sm:$0xf]
    %v4154 = vld [vmem:[#allocation9 + $0xbd0] sm:$0xf]
    %v4155 = vld [vmem:[#allocation9 + $0xbd4] sm:$0xf]
    %v4156 = vld [vmem:[#allocation9 + $0xbd8] sm:$0xf]
    %v4157 = vld [vmem:[#allocation9 + $0xbdc] sm:$0xf]
    %v4158 = vld [vmem:[#allocation9 + $0xbe0] sm:$0xf]
    %v4159 = vld [vmem:[#allocation9 + $0xbe4] sm:$0xf]
    %v4160 = vld [vmem:[#allocation9 + $0xbe8] sm:$0xf]
    %v4161 = vld [vmem:[#allocation9 + $0xbec] sm:$0xf]
    %v4162 = vld [vmem:[#allocation9 + $0xbf0] sm:$0xf]
    %v4163 = vld [vmem:[#allocation9 + $0xbf4] sm:$0xf]
    %v4164 = vld [vmem:[#allocation9 + $0xbf8] sm:$0xf]
    %v4165 = vld [vmem:[#allocation9 + $0xbfc] sm:$0xf]
    %v4358 = vunpack.c.l.b16 %v3974
    %v4359 = vunpack.c.l.b16 %v3975
    %v4360 = vunpack.c.l.b16 %v3976
    %v4361 = vunpack.c.l.b16 %v3977
    %v4362 = vunpack.c.l.b16 %v3978
    %v4363 = vunpack.c.l.b16 %v3979
    %v4364 = vunpack.c.l.b16 %v3980
    %v4365 = vunpack.c.l.b16 %v3981
    %v4366 = vunpack.c.l.b16 %v3982
    %v4367 = vunpack.c.l.b16 %v3983
    %v4368 = vunpack.c.l.b16 %v3984
    %v4369 = vunpack.c.l.b16 %v3985
    %v4370 = vunpack.c.l.b16 %v3986
    %v4371 = vunpack.c.l.b16 %v3987
    %v4372 = vunpack.c.l.b16 %v3988
    %v4373 = vunpack.c.l.b16 %v3989
    %v4374 = vunpack.c.l.b16 %v3990
    %v4375 = vunpack.c.l.b16 %v3991
    %v4376 = vunpack.c.l.b16 %v3992
    %v4377 = vunpack.c.l.b16 %v3993
    %v4378 = vunpack.c.l.b16 %v3994
    %v4379 = vunpack.c.l.b16 %v3995
    %v4380 = vunpack.c.l.b16 %v3996
    %v4381 = vunpack.c.l.b16 %v3997
    %v4382 = vunpack.c.l.b16 %v3998
    %v4383 = vunpack.c.l.b16 %v3999
    %v4384 = vunpack.c.l.b16 %v4000
    %v4385 = vunpack.c.l.b16 %v4001
    %v4386 = vunpack.c.l.b16 %v4002
    %v4387 = vunpack.c.l.b16 %v4003
    %v4388 = vunpack.c.l.b16 %v4004
    %v4389 = vunpack.c.l.b16 %v4005
    %v4390 = vunpack.c.l.b16 %v4006
    %v4391 = vunpack.c.l.b16 %v4007
    %v4392 = vunpack.c.l.b16 %v4008
    %v4393 = vunpack.c.l.b16 %v4009
    %v4394 = vunpack.c.l.b16 %v4010
    %v4395 = vunpack.c.l.b16 %v4011
    %v4396 = vunpack.c.l.b16 %v4012
    %v4397 = vunpack.c.l.b16 %v4013
    %v4398 = vunpack.c.l.b16 %v4014
    %v4399 = vunpack.c.l.b16 %v4015
    %v4400 = vunpack.c.l.b16 %v4016
    %v4401 = vunpack.c.l.b16 %v4017
    %v4402 = vunpack.c.l.b16 %v4018
    %v4403 = vunpack.c.l.b16 %v4019
    %v4404 = vunpack.c.l.b16 %v4020
    %v4405 = vunpack.c.l.b16 %v4021
    %v4406 = vunpack.c.l.b16 %v4022
    %v4407 = vunpack.c.l.b16 %v4023
    %v4408 = vunpack.c.l.b16 %v4024
    %v4409 = vunpack.c.l.b16 %v4025
    %v4410 = vunpack.c.l.b16 %v4026
    %v4411 = vunpack.c.l.b16 %v4027
    %v4412 = vunpack.c.l.b16 %v4028
    %v4413 = vunpack.c.l.b16 %v4029
    %v4414 = vunpack.c.l.b16 %v4030
    %v4415 = vunpack.c.l.b16 %v4031
    %v4416 = vunpack.c.l.b16 %v4032
    %v4417 = vunpack.c.l.b16 %v4033
    %v4418 = vunpack.c.l.b16 %v4034
    %v4419 = vunpack.c.l.b16 %v4035
    %v4420 = vunpack.c.l.b16 %v4036
    %v4421 = vunpack.c.l.b16 %v4037
    %v4422 = vunpack.c.l.b16 %v4038
    %v4423 = vunpack.c.l.b16 %v4039
    %v4424 = vunpack.c.l.b16 %v4040
    %v4425 = vunpack.c.l.b16 %v4041
    %v4426 = vunpack.c.l.b16 %v4042
    %v4427 = vunpack.c.l.b16 %v4043
    %v4428 = vunpack.c.l.b16 %v4044
    %v4429 = vunpack.c.l.b16 %v4045
    %v4430 = vunpack.c.l.b16 %v4046
    %v4431 = vunpack.c.l.b16 %v4047
    %v4432 = vunpack.c.l.b16 %v4048
    %v4433 = vunpack.c.l.b16 %v4049
    %v4434 = vunpack.c.l.b16 %v4050
    %v4435 = vunpack.c.l.b16 %v4051
    %v4436 = vunpack.c.l.b16 %v4052
    %v4437 = vunpack.c.l.b16 %v4053
    %v4438 = vunpack.c.l.b16 %v4054
    %v4439 = vunpack.c.l.b16 %v4055
    %v4440 = vunpack.c.l.b16 %v4056
    %v4441 = vunpack.c.l.b16 %v4057
    %v4442 = vunpack.c.l.b16 %v4058
    %v4443 = vunpack.c.l.b16 %v4059
    %v4444 = vunpack.c.l.b16 %v4060
    %v4445 = vunpack.c.l.b16 %v4061
    %v4446 = vunpack.c.l.b16 %v4062
    %v4447 = vunpack.c.l.b16 %v4063
    %v4448 = vunpack.c.l.b16 %v4064
    %v4449 = vunpack.c.l.b16 %v4065
    %v4450 = vunpack.c.l.b16 %v4066
    %v4451 = vunpack.c.l.b16 %v4067
    %v4452 = vunpack.c.l.b16 %v4068
    %v4453 = vunpack.c.l.b16 %v4069
    %v4454 = vunpack.c.l.b16 %v4070
    %v4455 = vunpack.c.l.b16 %v4071
    %v4456 = vunpack.c.l.b16 %v4072
    %v4457 = vunpack.c.l.b16 %v4073
    %v4458 = vunpack.c.l.b16 %v4074
    %v4459 = vunpack.c.l.b16 %v4075
    %v4460 = vunpack.c.l.b16 %v4076
    %v4461 = vunpack.c.l.b16 %v4077
    %v4462 = vunpack.c.l.b16 %v4078
    %v4463 = vunpack.c.l.b16 %v4079
    %v4464 = vunpack.c.l.b16 %v4080
    %v4465 = vunpack.c.l.b16 %v4081
    %v4466 = vunpack.c.l.b16 %v4082
    %v4467 = vunpack.c.l.b16 %v4083
    %v4468 = vunpack.c.l.b16 %v4084
    %v4469 = vunpack.c.l.b16 %v4085
    %v4470 = vunpack.c.l.b16 %v4086
    %v4471 = vunpack.c.l.b16 %v4087
    %v4472 = vunpack.c.l.b16 %v4088
    %v4473 = vunpack.c.l.b16 %v4089
    %v4474 = vunpack.c.l.b16 %v4090
    %v4475 = vunpack.c.l.b16 %v4091
    %v4476 = vunpack.c.l.b16 %v4092
    %v4477 = vunpack.c.l.b16 %v4093
    %v4478 = vunpack.c.l.b16 %v4094
    %v4479 = vunpack.c.l.b16 %v4095
    %v4480 = vunpack.c.l.b16 %v4096
    %v4481 = vunpack.c.l.b16 %v4097
    %v4482 = vunpack.c.l.b16 %v4098
    %v4483 = vunpack.c.l.b16 %v4099
    %v4484 = vunpack.c.l.b16 %v4100
    %v4485 = vunpack.c.l.b16 %v4101
    %v4486 = vunpack.c.l.b16 %v4102
    %v4487 = vunpack.c.l.b16 %v4103
    %v4488 = vunpack.c.l.b16 %v4104
    %v4489 = vunpack.c.l.b16 %v4105
    %v4490 = vunpack.c.l.b16 %v4106
    %v4491 = vunpack.c.l.b16 %v4107
    %v4492 = vunpack.c.l.b16 %v4108
    %v4493 = vunpack.c.l.b16 %v4109
    %v4494 = vunpack.c.l.b16 %v4110
    %v4495 = vunpack.c.l.b16 %v4111
    %v4496 = vunpack.c.l.b16 %v4112
    %v4497 = vunpack.c.l.b16 %v4113
    %v4498 = vunpack.c.l.b16 %v4114
    %v4499 = vunpack.c.l.b16 %v4115
    %v4500 = vunpack.c.l.b16 %v4116
    %v4501 = vunpack.c.l.b16 %v4117
    %v4502 = vunpack.c.l.b16 %v4118
    %v4503 = vunpack.c.l.b16 %v4119
    %v4504 = vunpack.c.l.b16 %v4120
    %v4505 = vunpack.c.l.b16 %v4121
    %v4506 = vunpack.c.l.b16 %v4122
    %v4507 = vunpack.c.l.b16 %v4123
    %v4508 = vunpack.c.l.b16 %v4124
    %v4509 = vunpack.c.l.b16 %v4125
    %v4510 = vunpack.c.l.b16 %v4126
    %v4511 = vunpack.c.l.b16 %v4127
    %v4512 = vunpack.c.l.b16 %v4128
    %v4513 = vunpack.c.l.b16 %v4129
    %v4514 = vunpack.c.l.b16 %v4130
    %v4515 = vunpack.c.l.b16 %v4131
    %v4516 = vunpack.c.l.b16 %v4132
    %v4517 = vunpack.c.l.b16 %v4133
    %v4518 = vunpack.c.l.b16 %v4134
    %v4519 = vunpack.c.l.b16 %v4135
    %v4520 = vunpack.c.l.b16 %v4136
    %v4521 = vunpack.c.l.b16 %v4137
    %v4522 = vunpack.c.l.b16 %v4138
    %v4523 = vunpack.c.l.b16 %v4139
    %v4524 = vunpack.c.l.b16 %v4140
    %v4525 = vunpack.c.l.b16 %v4141
    %v4526 = vunpack.c.l.b16 %v4142
    %v4527 = vunpack.c.l.b16 %v4143
    %v4528 = vunpack.c.l.b16 %v4144
    %v4529 = vunpack.c.l.b16 %v4145
    %v4530 = vunpack.c.l.b16 %v4146
    %v4531 = vunpack.c.l.b16 %v4147
    %v4532 = vunpack.c.l.b16 %v4148
    %v4533 = vunpack.c.l.b16 %v4149
    %v4534 = vunpack.c.l.b16 %v4150
    %v4535 = vunpack.c.l.b16 %v4151
    %v4536 = vunpack.c.l.b16 %v4152
    %v4537 = vunpack.c.l.b16 %v4153
    %v4538 = vunpack.c.l.b16 %v4154
    %v4539 = vunpack.c.l.b16 %v4155
    %v4540 = vunpack.c.l.b16 %v4156
    %v4541 = vunpack.c.l.b16 %v4157
    %v4542 = vunpack.c.l.b16 %v4158
    %v4543 = vunpack.c.l.b16 %v4159
    %v4544 = vunpack.c.l.b16 %v4160
    %v4545 = vunpack.c.l.b16 %v4161
    %v4546 = vunpack.c.l.b16 %v4162
    %v4547 = vunpack.c.l.b16 %v4163
    %v4548 = vunpack.c.l.b16 %v4164
    %v4549 = vunpack.c.l.b16 %v4165
    %v4550 = vpack.c.b16 %v4359, %v4358
    %v4551 = vpack.c.b16 %v4361, %v4360
    %v4552 = vpack.c.b16 %v4363, %v4362
    %v4553 = vpack.c.b16 %v4365, %v4364
    %v4554 = vpack.c.b16 %v4367, %v4366
    %v4555 = vpack.c.b16 %v4369, %v4368
    %v4556 = vpack.c.b16 %v4371, %v4370
    %v4557 = vpack.c.b16 %v4373, %v4372
    %v4558 = vpack.c.b16 %v4375, %v4374
    %v4559 = vpack.c.b16 %v4377, %v4376
    %v4560 = vpack.c.b16 %v4379, %v4378
    %v4561 = vpack.c.b16 %v4381, %v4380
    %v4562 = vpack.c.b16 %v4383, %v4382
    %v4563 = vpack.c.b16 %v4385, %v4384
    %v4564 = vpack.c.b16 %v4387, %v4386
    %v4565 = vpack.c.b16 %v4389, %v4388
    %v4566 = vpack.c.b16 %v4391, %v4390
    %v4567 = vpack.c.b16 %v4393, %v4392
    %v4568 = vpack.c.b16 %v4395, %v4394
    %v4569 = vpack.c.b16 %v4397, %v4396
    %v4570 = vpack.c.b16 %v4399, %v4398
    %v4571 = vpack.c.b16 %v4401, %v4400
    %v4572 = vpack.c.b16 %v4403, %v4402
    %v4573 = vpack.c.b16 %v4405, %v4404
    %v4574 = vpack.c.b16 %v4407, %v4406
    %v4575 = vpack.c.b16 %v4409, %v4408
    %v4576 = vpack.c.b16 %v4411, %v4410
    %v4577 = vpack.c.b16 %v4413, %v4412
    %v4578 = vpack.c.b16 %v4415, %v4414
    %v4579 = vpack.c.b16 %v4417, %v4416
    %v4580 = vpack.c.b16 %v4419, %v4418
    %v4581 = vpack.c.b16 %v4421, %v4420
    %v4582 = vpack.c.b16 %v4423, %v4422
    %v4583 = vpack.c.b16 %v4425, %v4424
    %v4584 = vpack.c.b16 %v4427, %v4426
    %v4585 = vpack.c.b16 %v4429, %v4428
    %v4586 = vpack.c.b16 %v4431, %v4430
    %v4587 = vpack.c.b16 %v4433, %v4432
    %v4588 = vpack.c.b16 %v4435, %v4434
    %v4589 = vpack.c.b16 %v4437, %v4436
    %v4590 = vpack.c.b16 %v4439, %v4438
    %v4591 = vpack.c.b16 %v4441, %v4440
    %v4592 = vpack.c.b16 %v4443, %v4442
    %v4593 = vpack.c.b16 %v4445, %v4444
    %v4594 = vpack.c.b16 %v4447, %v4446
    %v4595 = vpack.c.b16 %v4449, %v4448
    %v4596 = vpack.c.b16 %v4451, %v4450
    %v4597 = vpack.c.b16 %v4453, %v4452
    %v4598 = vpack.c.b16 %v4455, %v4454
    %v4599 = vpack.c.b16 %v4457, %v4456
    %v4600 = vpack.c.b16 %v4459, %v4458
    %v4601 = vpack.c.b16 %v4461, %v4460
    %v4602 = vpack.c.b16 %v4463, %v4462
    %v4603 = vpack.c.b16 %v4465, %v4464
    %v4604 = vpack.c.b16 %v4467, %v4466
    %v4605 = vpack.c.b16 %v4469, %v4468
    %v4606 = vpack.c.b16 %v4471, %v4470
    %v4607 = vpack.c.b16 %v4473, %v4472
    %v4608 = vpack.c.b16 %v4475, %v4474
    %v4609 = vpack.c.b16 %v4477, %v4476
    %v4610 = vpack.c.b16 %v4479, %v4478
    %v4611 = vpack.c.b16 %v4481, %v4480
    %v4612 = vpack.c.b16 %v4483, %v4482
    %v4613 = vpack.c.b16 %v4485, %v4484
    %v4614 = vpack.c.b16 %v4487, %v4486
    %v4615 = vpack.c.b16 %v4489, %v4488
    %v4616 = vpack.c.b16 %v4491, %v4490
    %v4617 = vpack.c.b16 %v4493, %v4492
    %v4618 = vpack.c.b16 %v4495, %v4494
    %v4619 = vpack.c.b16 %v4497, %v4496
    %v4620 = vpack.c.b16 %v4499, %v4498
    %v4621 = vpack.c.b16 %v4501, %v4500
    %v4622 = vpack.c.b16 %v4503, %v4502
    %v4623 = vpack.c.b16 %v4505, %v4504
    %v4624 = vpack.c.b16 %v4507, %v4506
    %v4625 = vpack.c.b16 %v4509, %v4508
    %v4626 = vpack.c.b16 %v4511, %v4510
    %v4627 = vpack.c.b16 %v4513, %v4512
    %v4628 = vpack.c.b16 %v4515, %v4514
    %v4629 = vpack.c.b16 %v4517, %v4516
    %v4630 = vpack.c.b16 %v4519, %v4518
    %v4631 = vpack.c.b16 %v4521, %v4520
    %v4632 = vpack.c.b16 %v4523, %v4522
    %v4633 = vpack.c.b16 %v4525, %v4524
    %v4634 = vpack.c.b16 %v4527, %v4526
    %v4635 = vpack.c.b16 %v4529, %v4528
    %v4636 = vpack.c.b16 %v4531, %v4530
    %v4637 = vpack.c.b16 %v4533, %v4532
    %v4638 = vpack.c.b16 %v4535, %v4534
    %v4639 = vpack.c.b16 %v4537, %v4536
    %v4640 = vpack.c.b16 %v4539, %v4538
    %v4641 = vpack.c.b16 %v4541, %v4540
    %v4642 = vpack.c.b16 %v4543, %v4542
    %v4643 = vpack.c.b16 %v4545, %v4544
    %v4644 = vpack.c.b16 %v4547, %v4546
    %v4645 = vpack.c.b16 %v4549, %v4548
    %4742 = vmatpush.bf16.msra.mxu0 %v4557
    %4743 = vmatpush.bf16.msra.mxu0 %v4556
    %4744 = vmatpush.bf16.msra.mxu0 %v4555
    %4745 = vmatpush.bf16.msra.mxu0 %v4554
    %4746 = vmatpush.bf16.msra.mxu0 %v4553
    %4747 = vmatpush.bf16.msra.mxu0 %v4552
    %4748 = vmatpush.bf16.msra.mxu0 %v4551
    %4749 = vmatpush.bf16.msra.mxu0 %v4550
    %4750 = vmatmul.bf16.gmra.mxu0 %v3962
    %v4751 = vpop.f32.mrf.mxu0
    %v4752 = vadd.f32 0.0, %v4751
    %v4753 = vpop.f32.mrf.mxu0
    %4754 = vdwg.mxu0
    %4755 = vmatpush.bf16.msra.mxu0 %v4565
    %4756 = vmatpush.bf16.msra.mxu0 %v4564
    %4757 = vmatpush.bf16.msra.mxu0 %v4563
    %4758 = vmatpush.bf16.msra.mxu0 %v4562
    %4759 = vmatpush.bf16.msra.mxu0 %v4561
    %4760 = vmatpush.bf16.msra.mxu0 %v4560
    %4761 = vmatpush.bf16.msra.mxu0 %v4559
    %4762 = vmatpush.bf16.msra.mxu0 %v4558
    %4763 = vmatmul.bf16.gmra.mxu0 %v3963
    %v4764 = vpop.f32.mrf.mxu0
    %v4765 = vadd.f32 %v4752, %v4764
    %v4766 = vpop.f32.mrf.mxu0
    %4767 = vdwg.mxu0
    %4768 = vmatpush.bf16.msra.mxu0 %v4573
    %4769 = vmatpush.bf16.msra.mxu0 %v4572
    %4770 = vmatpush.bf16.msra.mxu0 %v4571
    %4771 = vmatpush.bf16.msra.mxu0 %v4570
    %4772 = vmatpush.bf16.msra.mxu0 %v4569
    %4773 = vmatpush.bf16.msra.mxu0 %v4568
    %4774 = vmatpush.bf16.msra.mxu0 %v4567
    %4775 = vmatpush.bf16.msra.mxu0 %v4566
    %4776 = vmatmul.bf16.gmra.mxu0 %v3964
    %v4777 = vpop.f32.mrf.mxu0
    %v4778 = vadd.f32 %v4765, %v4777
    %v4779 = vpop.f32.mrf.mxu0
    %4780 = vdwg.mxu0
    %4781 = vmatpush.bf16.msra.mxu0 %v4581
    %4782 = vmatpush.bf16.msra.mxu0 %v4580
    %4783 = vmatpush.bf16.msra.mxu0 %v4579
    %4784 = vmatpush.bf16.msra.mxu0 %v4578
    %4785 = vmatpush.bf16.msra.mxu0 %v4577
    %4786 = vmatpush.bf16.msra.mxu0 %v4576
    %4787 = vmatpush.bf16.msra.mxu0 %v4575
    %4788 = vmatpush.bf16.msra.mxu0 %v4574
    %4789 = vmatmul.bf16.gmra.mxu0 %v3965
    %v4790 = vpop.f32.mrf.mxu0
    %v4791 = vadd.f32 %v4778, %v4790
    %v4792 = vpop.f32.mrf.mxu0
    %4793 = vdwg.mxu0
    %4794 = vmatpush.bf16.msra.mxu0 %v4589
    %4795 = vmatpush.bf16.msra.mxu0 %v4588
    %4796 = vmatpush.bf16.msra.mxu0 %v4587
    %4797 = vmatpush.bf16.msra.mxu0 %v4586
    %4798 = vmatpush.bf16.msra.mxu0 %v4585
    %4799 = vmatpush.bf16.msra.mxu0 %v4584
    %4800 = vmatpush.bf16.msra.mxu0 %v4583
    %4801 = vmatpush.bf16.msra.mxu0 %v4582
    %4802 = vmatmul.bf16.gmra.mxu0 %v3966
    %v4803 = vpop.f32.mrf.mxu0
    %v4804 = vadd.f32 %v4791, %v4803
    %v4805 = vpop.f32.mrf.mxu0
    %4806 = vdwg.mxu0
    %4807 = vmatpush.bf16.msra.mxu0 %v4597
    %4808 = vmatpush.bf16.msra.mxu0 %v4596
    %4809 = vmatpush.bf16.msra.mxu0 %v4595
    %4810 = vmatpush.bf16.msra.mxu0 %v4594
    %4811 = vmatpush.bf16.msra.mxu0 %v4593
    %4812 = vmatpush.bf16.msra.mxu0 %v4592
    %4813 = vmatpush.bf16.msra.mxu0 %v4591
    %4814 = vmatpush.bf16.msra.mxu0 %v4590
    %4815 = vmatmul.bf16.gmra.mxu0 %v3967
    %v4816 = vpop.f32.mrf.mxu0
    %v4817 = vadd.f32 %v4804, %v4816
    %v4818 = vpop.f32.mrf.mxu0
    %4819 = vdwg.mxu0
    %4820 = vmatpush.bf16.msra.mxu0 %v4605
    %4821 = vmatpush.bf16.msra.mxu0 %v4604
    %4822 = vmatpush.bf16.msra.mxu0 %v4603
    %4823 = vmatpush.bf16.msra.mxu0 %v4602
    %4824 = vmatpush.bf16.msra.mxu0 %v4601
    %4825 = vmatpush.bf16.msra.mxu0 %v4600
    %4826 = vmatpush.bf16.msra.mxu0 %v4599
    %4827 = vmatpush.bf16.msra.mxu0 %v4598
    %4828 = vmatmul.bf16.gmra.mxu0 %v3968
    %v4829 = vpop.f32.mrf.mxu0
    %v4830 = vadd.f32 %v4817, %v4829
    %v4831 = vpop.f32.mrf.mxu0
    %4832 = vdwg.mxu0
    %4833 = vmatpush.bf16.msra.mxu0 %v4613
    %4834 = vmatpush.bf16.msra.mxu0 %v4612
    %4835 = vmatpush.bf16.msra.mxu0 %v4611
    %4836 = vmatpush.bf16.msra.mxu0 %v4610
    %4837 = vmatpush.bf16.msra.mxu0 %v4609
    %4838 = vmatpush.bf16.msra.mxu0 %v4608
    %4839 = vmatpush.bf16.msra.mxu0 %v4607
    %4840 = vmatpush.bf16.msra.mxu0 %v4606
    %4841 = vmatmul.bf16.gmra.mxu0 %v3969
    %v4842 = vpop.f32.mrf.mxu0
    %v4843 = vadd.f32 %v4830, %v4842
    %v4844 = vpop.f32.mrf.mxu0
    %4845 = vdwg.mxu0
    %4846 = vmatpush.bf16.msra.mxu0 %v4621
    %4847 = vmatpush.bf16.msra.mxu0 %v4620
    %4848 = vmatpush.bf16.msra.mxu0 %v4619
    %4849 = vmatpush.bf16.msra.mxu0 %v4618
    %4850 = vmatpush.bf16.msra.mxu0 %v4617
    %4851 = vmatpush.bf16.msra.mxu0 %v4616
    %4852 = vmatpush.bf16.msra.mxu0 %v4615
    %4853 = vmatpush.bf16.msra.mxu0 %v4614
    %4854 = vmatmul.bf16.gmra.mxu0 %v3970
    %v4855 = vpop.f32.mrf.mxu0
    %v4856 = vadd.f32 %v4843, %v4855
    %v4857 = vpop.f32.mrf.mxu0
    %4858 = vdwg.mxu0
    %4859 = vmatpush.bf16.msra.mxu0 %v4629
    %4860 = vmatpush.bf16.msra.mxu0 %v4628
    %4861 = vmatpush.bf16.msra.mxu0 %v4627
    %4862 = vmatpush.bf16.msra.mxu0 %v4626
    %4863 = vmatpush.bf16.msra.mxu0 %v4625
    %4864 = vmatpush.bf16.msra.mxu0 %v4624
    %4865 = vmatpush.bf16.msra.mxu0 %v4623
    %4866 = vmatpush.bf16.msra.mxu0 %v4622
    %4867 = vmatmul.bf16.gmra.mxu0 %v3971
    %v4868 = vpop.f32.mrf.mxu0
    %v4869 = vadd.f32 %v4856, %v4868
    %v4870 = vpop.f32.mrf.mxu0
    %4871 = vdwg.mxu0
    %4872 = vmatpush.bf16.msra.mxu0 %v4637
    %4873 = vmatpush.bf16.msra.mxu0 %v4636
    %4874 = vmatpush.bf16.msra.mxu0 %v4635
    %4875 = vmatpush.bf16.msra.mxu0 %v4634
    %4876 = vmatpush.bf16.msra.mxu0 %v4633
    %4877 = vmatpush.bf16.msra.mxu0 %v4632
    %4878 = vmatpush.bf16.msra.mxu0 %v4631
    %4879 = vmatpush.bf16.msra.mxu0 %v4630
    %4880 = vmatmul.bf16.gmra.mxu0 %v3972
    %v4881 = vpop.f32.mrf.mxu0
    %v4882 = vadd.f32 %v4869, %v4881
    %v4883 = vpop.f32.mrf.mxu0
    %4884 = vdwg.mxu0
    %4885 = vmatpush.bf16.msra.mxu0 %v4645
    %4886 = vmatpush.bf16.msra.mxu0 %v4644
    %4887 = vmatpush.bf16.msra.mxu0 %v4643
    %4888 = vmatpush.bf16.msra.mxu0 %v4642
    %4889 = vmatpush.bf16.msra.mxu0 %v4641
    %4890 = vmatpush.bf16.msra.mxu0 %v4640
    %4891 = vmatpush.bf16.msra.mxu0 %v4639
    %4892 = vmatpush.bf16.msra.mxu0 %v4638
    %4893 = vmatmul.bf16.gmra.mxu0 %v3973
    %v4894 = vpop.f32.mrf.mxu0
    %v4895 = vadd.f32 %v4882, %v4894
    %v4896 = vpop.f32.mrf.mxu0
    %4897 = vdwg.mxu0
    %v4898 = vadd.f32 %v3711, %v4895
    %v4899 = vld [vmem:[#allocation10] sm:$0x1]
    %v4901 = vperm.slane %v4899, 0
    %v4903 = vadd.f32 %v4898, %v4901
    %v4904 = vmax.f32 %v4903, 0.0
    %v4905 = vld [vmem:[#allocation7] sm:$0xff]
    %v4906 = vld [vmem:[#allocation7 + $0x8] sm:$0xf]
    %v4907 = vld [vmem:[#allocation4] sm:$0xff]
    %v4908 = vld [vmem:[#allocation4 + $0x8] sm:$0xf]
    %v4911 = vperm.slane %v4907, 0
    %v4912 = vperm.slane %v4907, 1
    %v4913 = vperm.slane %v4907, 2
    %v4914 = vperm.slane %v4907, 3
    %v4915 = vperm.slane %v4907, 4
    %v4916 = vperm.slane %v4907, 5
    %v4917 = vperm.slane %v4907, 6
    %v4918 = vperm.slane %v4907, 7
    %v4919 = vperm.slane %v4908, 0
    %v4920 = vperm.slane %v4908, 1
    %v4921 = vperm.slane %v4908, 2
    %v4922 = vperm.slane %v4908, 3
    %v4935 = vmul.f32 %v157, %v4911
    %v4936 = vmul.f32 %v158, %v4912
    %v4937 = vmul.f32 %v159, %v4913
    %v4938 = vmul.f32 %v160, %v4914
    %v4939 = vmul.f32 %v161, %v4915
    %v4940 = vmul.f32 %v162, %v4916
    %v4941 = vmul.f32 %v163, %v4917
    %v4942 = vmul.f32 %v164, %v4918
    %v4943 = vmul.f32 %v165, %v4919
    %v4944 = vmul.f32 %v166, %v4920
    %v4945 = vmul.f32 %v167, %v4921
    %v4946 = vmul.f32 %v168, %v4922
    %v4949 = vperm.slane %v4905, 0
    %v4950 = vperm.slane %v4905, 1
    %v4951 = vperm.slane %v4905, 2
    %v4952 = vperm.slane %v4905, 3
    %v4953 = vperm.slane %v4905, 4
    %v4954 = vperm.slane %v4905, 5
    %v4955 = vperm.slane %v4905, 6
    %v4956 = vperm.slane %v4905, 7
    %v4957 = vperm.slane %v4906, 0
    %v4958 = vperm.slane %v4906, 1
    %v4959 = vperm.slane %v4906, 2
    %v4960 = vperm.slane %v4906, 3
    %v4973 = vadd.f32 %v4949, %v4935
    %v4974 = vadd.f32 %v4950, %v4936
    %v4975 = vadd.f32 %v4951, %v4937
    %v4976 = vadd.f32 %v4952, %v4938
    %v4977 = vadd.f32 %v4953, %v4939
    %v4978 = vadd.f32 %v4954, %v4940
    %v4979 = vadd.f32 %v4955, %v4941
    %v4980 = vadd.f32 %v4956, %v4942
    %v4981 = vadd.f32 %v4957, %v4943
    %v4982 = vadd.f32 %v4958, %v4944
    %v4983 = vadd.f32 %v4959, %v4945
    %v4984 = vadd.f32 %v4960, %v4946
    %s4985 = scalar_lea.vmem [#allocation4], 48
    %v4986 = vld [vmem:[%s4985] sm:$0xff]
    %v4987 = vld [vmem:[%s4985 + $0x8] sm:$0xf]
    %v4990 = vperm.slane %v4986, 0
    %v4991 = vperm.slane %v4986, 1
    %v4992 = vperm.slane %v4986, 2
    %v4993 = vperm.slane %v4986, 3
    %v4994 = vperm.slane %v4986, 4
    %v4995 = vperm.slane %v4986, 5
    %v4996 = vperm.slane %v4986, 6
    %v4997 = vperm.slane %v4986, 7
    %v4998 = vperm.slane %v4987, 0
    %v4999 = vperm.slane %v4987, 1
    %v5000 = vperm.slane %v4987, 2
    %v5001 = vperm.slane %v4987, 3
    %v5014 = vmul.f32 %v254, %v4990
    %v5015 = vmul.f32 %v255, %v4991
    %v5016 = vmul.f32 %v256, %v4992
    %v5017 = vmul.f32 %v257, %v4993
    %v5018 = vmul.f32 %v258, %v4994
    %v5019 = vmul.f32 %v259, %v4995
    %v5020 = vmul.f32 %v260, %v4996
    %v5021 = vmul.f32 %v261, %v4997
    %v5022 = vmul.f32 %v262, %v4998
    %v5023 = vmul.f32 %v263, %v4999
    %v5024 = vmul.f32 %v264, %v5000
    %v5025 = vmul.f32 %v265, %v5001
    %v5026 = vadd.f32 %v4973, %v5014
    %v5027 = vadd.f32 %v4974, %v5015
    %v5028 = vadd.f32 %v4975, %v5016
    %v5029 = vadd.f32 %v4976, %v5017
    %v5030 = vadd.f32 %v4977, %v5018
    %v5031 = vadd.f32 %v4978, %v5019
    %v5032 = vadd.f32 %v4979, %v5020
    %v5033 = vadd.f32 %v4980, %v5021
    %v5034 = vadd.f32 %v4981, %v5022
    %v5035 = vadd.f32 %v4982, %v5023
    %v5036 = vadd.f32 %v4983, %v5024
    %v5037 = vadd.f32 %v4984, %v5025
    %s5038 = scalar_lea.vmem [#allocation4], 96
    %v5039 = vld [vmem:[%s5038] sm:$0xff]
    %v5040 = vld [vmem:[%s5038 + $0x8] sm:$0xf]
    %v5043 = vperm.slane %v5039, 0
    %v5044 = vperm.slane %v5039, 1
    %v5045 = vperm.slane %v5039, 2
    %v5046 = vperm.slane %v5039, 3
    %v5047 = vperm.slane %v5039, 4
    %v5048 = vperm.slane %v5039, 5
    %v5049 = vperm.slane %v5039, 6
    %v5050 = vperm.slane %v5039, 7
    %v5051 = vperm.slane %v5040, 0
    %v5052 = vperm.slane %v5040, 1
    %v5053 = vperm.slane %v5040, 2
    %v5054 = vperm.slane %v5040, 3
    %v5067 = vmul.f32 %v326, %v5043
    %v5068 = vmul.f32 %v327, %v5044
    %v5069 = vmul.f32 %v328, %v5045
    %v5070 = vmul.f32 %v329, %v5046
    %v5071 = vmul.f32 %v330, %v5047
    %v5072 = vmul.f32 %v331, %v5048
    %v5073 = vmul.f32 %v332, %v5049
    %v5074 = vmul.f32 %v333, %v5050
    %v5075 = vmul.f32 %v334, %v5051
    %v5076 = vmul.f32 %v335, %v5052
    %v5077 = vmul.f32 %v336, %v5053
    %v5078 = vmul.f32 %v337, %v5054
    %v5079 = vadd.f32 %v5026, %v5067
    %v5080 = vadd.f32 %v5027, %v5068
    %v5081 = vadd.f32 %v5028, %v5069
    %v5082 = vadd.f32 %v5029, %v5070
    %v5083 = vadd.f32 %v5030, %v5071
    %v5084 = vadd.f32 %v5031, %v5072
    %v5085 = vadd.f32 %v5032, %v5073
    %v5086 = vadd.f32 %v5033, %v5074
    %v5087 = vadd.f32 %v5034, %v5075
    %v5088 = vadd.f32 %v5035, %v5076
    %v5089 = vadd.f32 %v5036, %v5077
    %v5090 = vadd.f32 %v5037, %v5078
    %v5091 = vmax.f32 %v5079, 0.0
    %v5092 = vmax.f32 %v5080, 0.0
    %v5093 = vmax.f32 %v5081, 0.0
    %v5094 = vmax.f32 %v5082, 0.0
    %v5095 = vmax.f32 %v5083, 0.0
    %v5096 = vmax.f32 %v5084, 0.0
    %v5097 = vmax.f32 %v5085, 0.0
    %v5098 = vmax.f32 %v5086, 0.0
    %v5099 = vmax.f32 %v5087, 0.0
    %v5100 = vmax.f32 %v5088, 0.0
    %v5101 = vmax.f32 %v5089, 0.0
    %v5102 = vmax.f32 %v5090, 0.0
    %v5103 = vpack.c.bf16 %v5091, %v5091
    %v5104 = vpack.c.bf16 %v5092, %v5092
    %v5105 = vpack.c.bf16 %v5093, %v5093
    %v5106 = vpack.c.bf16 %v5094, %v5094
    %v5107 = vpack.c.bf16 %v5095, %v5095
    %v5108 = vpack.c.bf16 %v5096, %v5096
    %v5109 = vpack.c.bf16 %v5097, %v5097
    %v5110 = vpack.c.bf16 %v5098, %v5098
    %v5111 = vpack.c.bf16 %v5099, %v5099
    %v5112 = vpack.c.bf16 %v5100, %v5100
    %v5113 = vpack.c.bf16 %v5101, %v5101
    %v5114 = vpack.c.bf16 %v5102, %v5102
    %v5115 = vld [vmem:[#allocation7 + $0xc] sm:$0xff]
    %v5116 = vld [vmem:[#allocation7 + $0x14] sm:$0xf]
    %v5117 = vld [vmem:[#allocation4 + $0xc] sm:$0xff]
    %v5118 = vld [vmem:[#allocation4 + $0x14] sm:$0xf]
    %v5121 = vperm.slane %v5117, 0
    %v5122 = vperm.slane %v5117, 1
    %v5123 = vperm.slane %v5117, 2
    %v5124 = vperm.slane %v5117, 3
    %v5125 = vperm.slane %v5117, 4
    %v5126 = vperm.slane %v5117, 5
    %v5127 = vperm.slane %v5117, 6
    %v5128 = vperm.slane %v5117, 7
    %v5129 = vperm.slane %v5118, 0
    %v5130 = vperm.slane %v5118, 1
    %v5131 = vperm.slane %v5118, 2
    %v5132 = vperm.slane %v5118, 3
    %v5145 = vmul.f32 %v615, %v5121
    %v5146 = vmul.f32 %v616, %v5122
    %v5147 = vmul.f32 %v617, %v5123
    %v5148 = vmul.f32 %v618, %v5124
    %v5149 = vmul.f32 %v619, %v5125
    %v5150 = vmul.f32 %v620, %v5126
    %v5151 = vmul.f32 %v621, %v5127
    %v5152 = vmul.f32 %v622, %v5128
    %v5153 = vmul.f32 %v623, %v5129
    %v5154 = vmul.f32 %v624, %v5130
    %v5155 = vmul.f32 %v625, %v5131
    %v5156 = vmul.f32 %v626, %v5132
    %v5159 = vperm.slane %v5115, 0
    %v5160 = vperm.slane %v5115, 1
    %v5161 = vperm.slane %v5115, 2
    %v5162 = vperm.slane %v5115, 3
    %v5163 = vperm.slane %v5115, 4
    %v5164 = vperm.slane %v5115, 5
    %v5165 = vperm.slane %v5115, 6
    %v5166 = vperm.slane %v5115, 7
    %v5167 = vperm.slane %v5116, 0
    %v5168 = vperm.slane %v5116, 1
    %v5169 = vperm.slane %v5116, 2
    %v5170 = vperm.slane %v5116, 3
    %v5183 = vadd.f32 %v5159, %v5145
    %v5184 = vadd.f32 %v5160, %v5146
    %v5185 = vadd.f32 %v5161, %v5147
    %v5186 = vadd.f32 %v5162, %v5148
    %v5187 = vadd.f32 %v5163, %v5149
    %v5188 = vadd.f32 %v5164, %v5150
    %v5189 = vadd.f32 %v5165, %v5151
    %v5190 = vadd.f32 %v5166, %v5152
    %v5191 = vadd.f32 %v5167, %v5153
    %v5192 = vadd.f32 %v5168, %v5154
    %v5193 = vadd.f32 %v5169, %v5155
    %v5194 = vadd.f32 %v5170, %v5156
    %v5195 = vld [vmem:[%s4985 + $0xc] sm:$0xff]
    %v5196 = vld [vmem:[%s4985 + $0x14] sm:$0xf]
    %v5199 = vperm.slane %v5195, 0
    %v5200 = vperm.slane %v5195, 1
    %v5201 = vperm.slane %v5195, 2
    %v5202 = vperm.slane %v5195, 3
    %v5203 = vperm.slane %v5195, 4
    %v5204 = vperm.slane %v5195, 5
    %v5205 = vperm.slane %v5195, 6
    %v5206 = vperm.slane %v5195, 7
    %v5207 = vperm.slane %v5196, 0
    %v5208 = vperm.slane %v5196, 1
    %v5209 = vperm.slane %v5196, 2
    %v5210 = vperm.slane %v5196, 3
    %v5223 = vmul.f32 %v711, %v5199
    %v5224 = vmul.f32 %v712, %v5200
    %v5225 = vmul.f32 %v713, %v5201
    %v5226 = vmul.f32 %v714, %v5202
    %v5227 = vmul.f32 %v715, %v5203
    %v5228 = vmul.f32 %v716, %v5204
    %v5229 = vmul.f32 %v717, %v5205
    %v5230 = vmul.f32 %v718, %v5206
    %v5231 = vmul.f32 %v719, %v5207
    %v5232 = vmul.f32 %v720, %v5208
    %v5233 = vmul.f32 %v721, %v5209
    %v5234 = vmul.f32 %v722, %v5210
    %v5235 = vadd.f32 %v5183, %v5223
    %v5236 = vadd.f32 %v5184, %v5224
    %v5237 = vadd.f32 %v5185, %v5225
    %v5238 = vadd.f32 %v5186, %v5226
    %v5239 = vadd.f32 %v5187, %v5227
    %v5240 = vadd.f32 %v5188, %v5228
    %v5241 = vadd.f32 %v5189, %v5229
    %v5242 = vadd.f32 %v5190, %v5230
    %v5243 = vadd.f32 %v5191, %v5231
    %v5244 = vadd.f32 %v5192, %v5232
    %v5245 = vadd.f32 %v5193, %v5233
    %v5246 = vadd.f32 %v5194, %v5234
    %v5247 = vld [vmem:[%s5038 + $0xc] sm:$0xff]
    %v5248 = vld [vmem:[%s5038 + $0x14] sm:$0xf]
    %v5251 = vperm.slane %v5247, 0
    %v5252 = vperm.slane %v5247, 1
    %v5253 = vperm.slane %v5247, 2
    %v5254 = vperm.slane %v5247, 3
    %v5255 = vperm.slane %v5247, 4
    %v5256 = vperm.slane %v5247, 5
    %v5257 = vperm.slane %v5247, 6
    %v5258 = vperm.slane %v5247, 7
    %v5259 = vperm.slane %v5248, 0
    %v5260 = vperm.slane %v5248, 1
    %v5261 = vperm.slane %v5248, 2
    %v5262 = vperm.slane %v5248, 3
    %v5275 = vmul.f32 %v781, %v5251
    %v5276 = vmul.f32 %v782, %v5252
    %v5277 = vmul.f32 %v783, %v5253
    %v5278 = vmul.f32 %v784, %v5254
    %v5279 = vmul.f32 %v785, %v5255
    %v5280 = vmul.f32 %v786, %v5256
    %v5281 = vmul.f32 %v787, %v5257
    %v5282 = vmul.f32 %v788, %v5258
    %v5283 = vmul.f32 %v789, %v5259
    %v5284 = vmul.f32 %v790, %v5260
    %v5285 = vmul.f32 %v791, %v5261
    %v5286 = vmul.f32 %v792, %v5262
    %v5287 = vadd.f32 %v5235, %v5275
    %v5288 = vadd.f32 %v5236, %v5276
    %v5289 = vadd.f32 %v5237, %v5277
    %v5290 = vadd.f32 %v5238, %v5278
    %v5291 = vadd.f32 %v5239, %v5279
    %v5292 = vadd.f32 %v5240, %v5280
    %v5293 = vadd.f32 %v5241, %v5281
    %v5294 = vadd.f32 %v5242, %v5282
    %v5295 = vadd.f32 %v5243, %v5283
    %v5296 = vadd.f32 %v5244, %v5284
    %v5297 = vadd.f32 %v5245, %v5285
    %v5298 = vadd.f32 %v5246, %v5286
    %v5299 = vmax.f32 %v5287, 0.0
    %v5300 = vmax.f32 %v5288, 0.0
    %v5301 = vmax.f32 %v5289, 0.0
    %v5302 = vmax.f32 %v5290, 0.0
    %v5303 = vmax.f32 %v5291, 0.0
    %v5304 = vmax.f32 %v5292, 0.0
    %v5305 = vmax.f32 %v5293, 0.0
    %v5306 = vmax.f32 %v5294, 0.0
    %v5307 = vmax.f32 %v5295, 0.0
    %v5308 = vmax.f32 %v5296, 0.0
    %v5309 = vmax.f32 %v5297, 0.0
    %v5310 = vmax.f32 %v5298, 0.0
    %v5311 = vpack.c.bf16 %v5299, %v5299
    %v5312 = vpack.c.bf16 %v5300, %v5300
    %v5313 = vpack.c.bf16 %v5301, %v5301
    %v5314 = vpack.c.bf16 %v5302, %v5302
    %v5315 = vpack.c.bf16 %v5303, %v5303
    %v5316 = vpack.c.bf16 %v5304, %v5304
    %v5317 = vpack.c.bf16 %v5305, %v5305
    %v5318 = vpack.c.bf16 %v5306, %v5306
    %v5319 = vpack.c.bf16 %v5307, %v5307
    %v5320 = vpack.c.bf16 %v5308, %v5308
    %v5321 = vpack.c.bf16 %v5309, %v5309
    %v5322 = vpack.c.bf16 %v5310, %v5310
    %5323 = vmatpush.bf16.msra.mxu0 %v1452
    %5324 = vmatpush.bf16.msra.mxu0 %v1451
    %5325 = vmatpush.bf16.msra.mxu0 %v1450
    %5326 = vmatpush.bf16.msra.mxu0 %v1449
    %5327 = vmatpush.bf16.msra.mxu0 %v1448
    %5328 = vmatpush.bf16.msra.mxu0 %v1447
    %5329 = vmatpush.bf16.msra.mxu0 %v1446
    %5330 = vmatpush.bf16.msra.mxu0 %v1445
    %5331 = vmatmul.bf16.gmra.mxu0 %v5311
    %v5332 = vpop.f32.mrf.mxu0
    %v5333 = vadd.f32 0.0, %v5332
    %v5334 = vpop.f32.mrf.mxu0
    %5335 = vdwg.mxu0
    %5336 = vmatpush.bf16.msra.mxu0 %v1460
    %5337 = vmatpush.bf16.msra.mxu0 %v1459
    %5338 = vmatpush.bf16.msra.mxu0 %v1458
    %5339 = vmatpush.bf16.msra.mxu0 %v1457
    %5340 = vmatpush.bf16.msra.mxu0 %v1456
    %5341 = vmatpush.bf16.msra.mxu0 %v1455
    %5342 = vmatpush.bf16.msra.mxu0 %v1454
    %5343 = vmatpush.bf16.msra.mxu0 %v1453
    %5344 = vmatmul.bf16.gmra.mxu0 %v5312
    %v5345 = vpop.f32.mrf.mxu0
    %v5346 = vadd.f32 %v5333, %v5345
    %v5347 = vpop.f32.mrf.mxu0
    %5348 = vdwg.mxu0
    %5349 = vmatpush.bf16.msra.mxu0 %v1468
    %5350 = vmatpush.bf16.msra.mxu0 %v1467
    %5351 = vmatpush.bf16.msra.mxu0 %v1466
    %5352 = vmatpush.bf16.msra.mxu0 %v1465
    %5353 = vmatpush.bf16.msra.mxu0 %v1464
    %5354 = vmatpush.bf16.msra.mxu0 %v1463
    %5355 = vmatpush.bf16.msra.mxu0 %v1462
    %5356 = vmatpush.bf16.msra.mxu0 %v1461
    %5357 = vmatmul.bf16.gmra.mxu0 %v5313
    %v5358 = vpop.f32.mrf.mxu0
    %v5359 = vadd.f32 %v5346, %v5358
    %v5360 = vpop.f32.mrf.mxu0
    %5361 = vdwg.mxu0
    %5362 = vmatpush.bf16.msra.mxu0 %v1476
    %5363 = vmatpush.bf16.msra.mxu0 %v1475
    %5364 = vmatpush.bf16.msra.mxu0 %v1474
    %5365 = vmatpush.bf16.msra.mxu0 %v1473
    %5366 = vmatpush.bf16.msra.mxu0 %v1472
    %5367 = vmatpush.bf16.msra.mxu0 %v1471
    %5368 = vmatpush.bf16.msra.mxu0 %v1470
    %5369 = vmatpush.bf16.msra.mxu0 %v1469
    %5370 = vmatmul.bf16.gmra.mxu0 %v5314
    %v5371 = vpop.f32.mrf.mxu0
    %v5372 = vadd.f32 %v5359, %v5371
    %v5373 = vpop.f32.mrf.mxu0
    %5374 = vdwg.mxu0
    %5375 = vmatpush.bf16.msra.mxu0 %v1484
    %5376 = vmatpush.bf16.msra.mxu0 %v1483
    %5377 = vmatpush.bf16.msra.mxu0 %v1482
    %5378 = vmatpush.bf16.msra.mxu0 %v1481
    %5379 = vmatpush.bf16.msra.mxu0 %v1480
    %5380 = vmatpush.bf16.msra.mxu0 %v1479
    %5381 = vmatpush.bf16.msra.mxu0 %v1478
    %5382 = vmatpush.bf16.msra.mxu0 %v1477
    %5383 = vmatmul.bf16.gmra.mxu0 %v5315
    %v5384 = vpop.f32.mrf.mxu0
    %v5385 = vadd.f32 %v5372, %v5384
    %v5386 = vpop.f32.mrf.mxu0
    %5387 = vdwg.mxu0
    %5388 = vmatpush.bf16.msra.mxu0 %v1492
    %5389 = vmatpush.bf16.msra.mxu0 %v1491
    %5390 = vmatpush.bf16.msra.mxu0 %v1490
    %5391 = vmatpush.bf16.msra.mxu0 %v1489
    %5392 = vmatpush.bf16.msra.mxu0 %v1488
    %5393 = vmatpush.bf16.msra.mxu0 %v1487
    %5394 = vmatpush.bf16.msra.mxu0 %v1486
    %5395 = vmatpush.bf16.msra.mxu0 %v1485
    %5396 = vmatmul.bf16.gmra.mxu0 %v5316
    %v5397 = vpop.f32.mrf.mxu0
    %v5398 = vadd.f32 %v5385, %v5397
    %v5399 = vpop.f32.mrf.mxu0
    %5400 = vdwg.mxu0
    %5401 = vmatpush.bf16.msra.mxu0 %v1500
    %5402 = vmatpush.bf16.msra.mxu0 %v1499
    %5403 = vmatpush.bf16.msra.mxu0 %v1498
    %5404 = vmatpush.bf16.msra.mxu0 %v1497
    %5405 = vmatpush.bf16.msra.mxu0 %v1496
    %5406 = vmatpush.bf16.msra.mxu0 %v1495
    %5407 = vmatpush.bf16.msra.mxu0 %v1494
    %5408 = vmatpush.bf16.msra.mxu0 %v1493
    %5409 = vmatmul.bf16.gmra.mxu0 %v5317
    %v5410 = vpop.f32.mrf.mxu0
    %v5411 = vadd.f32 %v5398, %v5410
    %v5412 = vpop.f32.mrf.mxu0
    %5413 = vdwg.mxu0
    %5414 = vmatpush.bf16.msra.mxu0 %v1508
    %5415 = vmatpush.bf16.msra.mxu0 %v1507
    %5416 = vmatpush.bf16.msra.mxu0 %v1506
    %5417 = vmatpush.bf16.msra.mxu0 %v1505
    %5418 = vmatpush.bf16.msra.mxu0 %v1504
    %5419 = vmatpush.bf16.msra.mxu0 %v1503
    %5420 = vmatpush.bf16.msra.mxu0 %v1502
    %5421 = vmatpush.bf16.msra.mxu0 %v1501
    %5422 = vmatmul.bf16.gmra.mxu0 %v5318
    %v5423 = vpop.f32.mrf.mxu0
    %v5424 = vadd.f32 %v5411, %v5423
    %v5425 = vpop.f32.mrf.mxu0
    %5426 = vdwg.mxu0
    %5427 = vmatpush.bf16.msra.mxu0 %v1516
    %5428 = vmatpush.bf16.msra.mxu0 %v1515
    %5429 = vmatpush.bf16.msra.mxu0 %v1514
    %5430 = vmatpush.bf16.msra.mxu0 %v1513
    %5431 = vmatpush.bf16.msra.mxu0 %v1512
    %5432 = vmatpush.bf16.msra.mxu0 %v1511
    %5433 = vmatpush.bf16.msra.mxu0 %v1510
    %5434 = vmatpush.bf16.msra.mxu0 %v1509
    %5435 = vmatmul.bf16.gmra.mxu0 %v5319
    %v5436 = vpop.f32.mrf.mxu0
    %v5437 = vadd.f32 %v5424, %v5436
    %v5438 = vpop.f32.mrf.mxu0
    %5439 = vdwg.mxu0
    %5440 = vmatpush.bf16.msra.mxu0 %v1524
    %5441 = vmatpush.bf16.msra.mxu0 %v1523
    %5442 = vmatpush.bf16.msra.mxu0 %v1522
    %5443 = vmatpush.bf16.msra.mxu0 %v1521
    %5444 = vmatpush.bf16.msra.mxu0 %v1520
    %5445 = vmatpush.bf16.msra.mxu0 %v1519
    %5446 = vmatpush.bf16.msra.mxu0 %v1518
    %5447 = vmatpush.bf16.msra.mxu0 %v1517
    %5448 = vmatmul.bf16.gmra.mxu0 %v5320
    %v5449 = vpop.f32.mrf.mxu0
    %v5450 = vadd.f32 %v5437, %v5449
    %v5451 = vpop.f32.mrf.mxu0
    %5452 = vdwg.mxu0
    %5453 = vmatpush.bf16.msra.mxu0 %v1532
    %5454 = vmatpush.bf16.msra.mxu0 %v1531
    %5455 = vmatpush.bf16.msra.mxu0 %v1530
    %5456 = vmatpush.bf16.msra.mxu0 %v1529
    %5457 = vmatpush.bf16.msra.mxu0 %v1528
    %5458 = vmatpush.bf16.msra.mxu0 %v1527
    %5459 = vmatpush.bf16.msra.mxu0 %v1526
    %5460 = vmatpush.bf16.msra.mxu0 %v1525
    %5461 = vmatmul.bf16.gmra.mxu0 %v5321
    %v5462 = vpop.f32.mrf.mxu0
    %v5463 = vadd.f32 %v5450, %v5462
    %v5464 = vpop.f32.mrf.mxu0
    %5465 = vdwg.mxu0
    %5466 = vmatpush.bf16.msra.mxu0 %v1540
    %5467 = vmatpush.bf16.msra.mxu0 %v1539
    %5468 = vmatpush.bf16.msra.mxu0 %v1538
    %5469 = vmatpush.bf16.msra.mxu0 %v1537
    %5470 = vmatpush.bf16.msra.mxu0 %v1536
    %5471 = vmatpush.bf16.msra.mxu0 %v1535
    %5472 = vmatpush.bf16.msra.mxu0 %v1534
    %5473 = vmatpush.bf16.msra.mxu0 %v1533
    %5474 = vmatmul.bf16.gmra.mxu0 %v5322
    %v5475 = vpop.f32.mrf.mxu0
    %v5476 = vadd.f32 %v5463, %v5475
    %v5477 = vpop.f32.mrf.mxu0
    %5478 = vdwg.mxu0
    %5479 = vmatpush.bf16.msra.mxu0 %v2184
    %5480 = vmatpush.bf16.msra.mxu0 %v2183
    %5481 = vmatpush.bf16.msra.mxu0 %v2182
    %5482 = vmatpush.bf16.msra.mxu0 %v2181
    %5483 = vmatpush.bf16.msra.mxu0 %v2180
    %5484 = vmatpush.bf16.msra.mxu0 %v2179
    %5485 = vmatpush.bf16.msra.mxu0 %v2178
    %5486 = vmatpush.bf16.msra.mxu0 %v2177
    %5487 = vmatmul.bf16.gmra.mxu0 %v5103
    %v5488 = vpop.f32.mrf.mxu0
    %v5489 = vadd.f32 %v5476, %v5488
    %v5490 = vpop.f32.mrf.mxu0
    %5491 = vdwg.mxu0
    %5492 = vmatpush.bf16.msra.mxu0 %v2192
    %5493 = vmatpush.bf16.msra.mxu0 %v2191
    %5494 = vmatpush.bf16.msra.mxu0 %v2190
    %5495 = vmatpush.bf16.msra.mxu0 %v2189
    %5496 = vmatpush.bf16.msra.mxu0 %v2188
    %5497 = vmatpush.bf16.msra.mxu0 %v2187
    %5498 = vmatpush.bf16.msra.mxu0 %v2186
    %5499 = vmatpush.bf16.msra.mxu0 %v2185
    %5500 = vmatmul.bf16.gmra.mxu0 %v5104
    %v5501 = vpop.f32.mrf.mxu0
    %v5502 = vadd.f32 %v5489, %v5501
    %v5503 = vpop.f32.mrf.mxu0
    %5504 = vdwg.mxu0
    %5505 = vmatpush.bf16.msra.mxu0 %v2200
    %5506 = vmatpush.bf16.msra.mxu0 %v2199
    %5507 = vmatpush.bf16.msra.mxu0 %v2198
    %5508 = vmatpush.bf16.msra.mxu0 %v2197
    %5509 = vmatpush.bf16.msra.mxu0 %v2196
    %5510 = vmatpush.bf16.msra.mxu0 %v2195
    %5511 = vmatpush.bf16.msra.mxu0 %v2194
    %5512 = vmatpush.bf16.msra.mxu0 %v2193
    %5513 = vmatmul.bf16.gmra.mxu0 %v5105
    %v5514 = vpop.f32.mrf.mxu0
    %v5515 = vadd.f32 %v5502, %v5514
    %v5516 = vpop.f32.mrf.mxu0
    %5517 = vdwg.mxu0
    %5518 = vmatpush.bf16.msra.mxu0 %v2208
    %5519 = vmatpush.bf16.msra.mxu0 %v2207
    %5520 = vmatpush.bf16.msra.mxu0 %v2206
    %5521 = vmatpush.bf16.msra.mxu0 %v2205
    %5522 = vmatpush.bf16.msra.mxu0 %v2204
    %5523 = vmatpush.bf16.msra.mxu0 %v2203
    %5524 = vmatpush.bf16.msra.mxu0 %v2202
    %5525 = vmatpush.bf16.msra.mxu0 %v2201
    %5526 = vmatmul.bf16.gmra.mxu0 %v5106
    %v5527 = vpop.f32.mrf.mxu0
    %v5528 = vadd.f32 %v5515, %v5527
    %v5529 = vpop.f32.mrf.mxu0
    %5530 = vdwg.mxu0
    %5531 = vmatpush.bf16.msra.mxu0 %v2216
    %5532 = vmatpush.bf16.msra.mxu0 %v2215
    %5533 = vmatpush.bf16.msra.mxu0 %v2214
    %5534 = vmatpush.bf16.msra.mxu0 %v2213
    %5535 = vmatpush.bf16.msra.mxu0 %v2212
    %5536 = vmatpush.bf16.msra.mxu0 %v2211
    %5537 = vmatpush.bf16.msra.mxu0 %v2210
    %5538 = vmatpush.bf16.msra.mxu0 %v2209
    %5539 = vmatmul.bf16.gmra.mxu0 %v5107
    %v5540 = vpop.f32.mrf.mxu0
    %v5541 = vadd.f32 %v5528, %v5540
    %v5542 = vpop.f32.mrf.mxu0
    %5543 = vdwg.mxu0
    %5544 = vmatpush.bf16.msra.mxu0 %v2224
    %5545 = vmatpush.bf16.msra.mxu0 %v2223
    %5546 = vmatpush.bf16.msra.mxu0 %v2222
    %5547 = vmatpush.bf16.msra.mxu0 %v2221
    %5548 = vmatpush.bf16.msra.mxu0 %v2220
    %5549 = vmatpush.bf16.msra.mxu0 %v2219
    %5550 = vmatpush.bf16.msra.mxu0 %v2218
    %5551 = vmatpush.bf16.msra.mxu0 %v2217
    %5552 = vmatmul.bf16.gmra.mxu0 %v5108
    %v5553 = vpop.f32.mrf.mxu0
    %v5554 = vadd.f32 %v5541, %v5553
    %v5555 = vpop.f32.mrf.mxu0
    %5556 = vdwg.mxu0
    %5557 = vmatpush.bf16.msra.mxu0 %v2232
    %5558 = vmatpush.bf16.msra.mxu0 %v2231
    %5559 = vmatpush.bf16.msra.mxu0 %v2230
    %5560 = vmatpush.bf16.msra.mxu0 %v2229
    %5561 = vmatpush.bf16.msra.mxu0 %v2228
    %5562 = vmatpush.bf16.msra.mxu0 %v2227
    %5563 = vmatpush.bf16.msra.mxu0 %v2226
    %5564 = vmatpush.bf16.msra.mxu0 %v2225
    %5565 = vmatmul.bf16.gmra.mxu0 %v5109
    %v5566 = vpop.f32.mrf.mxu0
    %v5567 = vadd.f32 %v5554, %v5566
    %v5568 = vpop.f32.mrf.mxu0
    %5569 = vdwg.mxu0
    %5570 = vmatpush.bf16.msra.mxu0 %v2240
    %5571 = vmatpush.bf16.msra.mxu0 %v2239
    %5572 = vmatpush.bf16.msra.mxu0 %v2238
    %5573 = vmatpush.bf16.msra.mxu0 %v2237
    %5574 = vmatpush.bf16.msra.mxu0 %v2236
    %5575 = vmatpush.bf16.msra.mxu0 %v2235
    %5576 = vmatpush.bf16.msra.mxu0 %v2234
    %5577 = vmatpush.bf16.msra.mxu0 %v2233
    %5578 = vmatmul.bf16.gmra.mxu0 %v5110
    %v5579 = vpop.f32.mrf.mxu0
    %v5580 = vadd.f32 %v5567, %v5579
    %v5581 = vpop.f32.mrf.mxu0
    %5582 = vdwg.mxu0
    %5583 = vmatpush.bf16.msra.mxu0 %v2248
    %5584 = vmatpush.bf16.msra.mxu0 %v2247
    %5585 = vmatpush.bf16.msra.mxu0 %v2246
    %5586 = vmatpush.bf16.msra.mxu0 %v2245
    %5587 = vmatpush.bf16.msra.mxu0 %v2244
    %5588 = vmatpush.bf16.msra.mxu0 %v2243
    %5589 = vmatpush.bf16.msra.mxu0 %v2242
    %5590 = vmatpush.bf16.msra.mxu0 %v2241
    %5591 = vmatmul.bf16.gmra.mxu0 %v5111
    %v5592 = vpop.f32.mrf.mxu0
    %v5593 = vadd.f32 %v5580, %v5592
    %v5594 = vpop.f32.mrf.mxu0
    %5595 = vdwg.mxu0
    %5596 = vmatpush.bf16.msra.mxu0 %v2256
    %5597 = vmatpush.bf16.msra.mxu0 %v2255
    %5598 = vmatpush.bf16.msra.mxu0 %v2254
    %5599 = vmatpush.bf16.msra.mxu0 %v2253
    %5600 = vmatpush.bf16.msra.mxu0 %v2252
    %5601 = vmatpush.bf16.msra.mxu0 %v2251
    %5602 = vmatpush.bf16.msra.mxu0 %v2250
    %5603 = vmatpush.bf16.msra.mxu0 %v2249
    %5604 = vmatmul.bf16.gmra.mxu0 %v5112
    %v5605 = vpop.f32.mrf.mxu0
    %v5606 = vadd.f32 %v5593, %v5605
    %v5607 = vpop.f32.mrf.mxu0
    %5608 = vdwg.mxu0
    %5609 = vmatpush.bf16.msra.mxu0 %v2264
    %5610 = vmatpush.bf16.msra.mxu0 %v2263
    %5611 = vmatpush.bf16.msra.mxu0 %v2262
    %5612 = vmatpush.bf16.msra.mxu0 %v2261
    %5613 = vmatpush.bf16.msra.mxu0 %v2260
    %5614 = vmatpush.bf16.msra.mxu0 %v2259
    %5615 = vmatpush.bf16.msra.mxu0 %v2258
    %5616 = vmatpush.bf16.msra.mxu0 %v2257
    %5617 = vmatmul.bf16.gmra.mxu0 %v5113
    %v5618 = vpop.f32.mrf.mxu0
    %v5619 = vadd.f32 %v5606, %v5618
    %v5620 = vpop.f32.mrf.mxu0
    %5621 = vdwg.mxu0
    %5622 = vmatpush.bf16.msra.mxu0 %v2272
    %5623 = vmatpush.bf16.msra.mxu0 %v2271
    %5624 = vmatpush.bf16.msra.mxu0 %v2270
    %5625 = vmatpush.bf16.msra.mxu0 %v2269
    %5626 = vmatpush.bf16.msra.mxu0 %v2268
    %5627 = vmatpush.bf16.msra.mxu0 %v2267
    %5628 = vmatpush.bf16.msra.mxu0 %v2266
    %5629 = vmatpush.bf16.msra.mxu0 %v2265
    %5630 = vmatmul.bf16.gmra.mxu0 %v5114
    %v5631 = vpop.f32.mrf.mxu0
    %v5632 = vadd.f32 %v5619, %v5631
    %v5633 = vpop.f32.mrf.mxu0
    %5634 = vdwg.mxu0
    %v5635 = vld [vmem:[#allocation7 + $0x18] sm:$0xff]
    %v5636 = vld [vmem:[#allocation7 + $0x20] sm:$0xf]
    %v5637 = vld [vmem:[#allocation4 + $0x18] sm:$0xff]
    %v5638 = vld [vmem:[#allocation4 + $0x20] sm:$0xf]
    %v5641 = vperm.slane %v5637, 0
    %v5642 = vperm.slane %v5637, 1
    %v5643 = vperm.slane %v5637, 2
    %v5644 = vperm.slane %v5637, 3
    %v5645 = vperm.slane %v5637, 4
    %v5646 = vperm.slane %v5637, 5
    %v5647 = vperm.slane %v5637, 6
    %v5648 = vperm.slane %v5637, 7
    %v5649 = vperm.slane %v5638, 0
    %v5650 = vperm.slane %v5638, 1
    %v5651 = vperm.slane %v5638, 2
    %v5652 = vperm.slane %v5638, 3
    %v5665 = vmul.f32 %v2533, %v5641
    %v5666 = vmul.f32 %v2534, %v5642
    %v5667 = vmul.f32 %v2535, %v5643
    %v5668 = vmul.f32 %v2536, %v5644
    %v5669 = vmul.f32 %v2537, %v5645
    %v5670 = vmul.f32 %v2538, %v5646
    %v5671 = vmul.f32 %v2539, %v5647
    %v5672 = vmul.f32 %v2540, %v5648
    %v5673 = vmul.f32 %v2541, %v5649
    %v5674 = vmul.f32 %v2542, %v5650
    %v5675 = vmul.f32 %v2543, %v5651
    %v5676 = vmul.f32 %v2544, %v5652
    %v5679 = vperm.slane %v5635, 0
    %v5680 = vperm.slane %v5635, 1
    %v5681 = vperm.slane %v5635, 2
    %v5682 = vperm.slane %v5635, 3
    %v5683 = vperm.slane %v5635, 4
    %v5684 = vperm.slane %v5635, 5
    %v5685 = vperm.slane %v5635, 6
    %v5686 = vperm.slane %v5635, 7
    %v5687 = vperm.slane %v5636, 0
    %v5688 = vperm.slane %v5636, 1
    %v5689 = vperm.slane %v5636, 2
    %v5690 = vperm.slane %v5636, 3
    %v5703 = vadd.f32 %v5679, %v5665
    %v5704 = vadd.f32 %v5680, %v5666
    %v5705 = vadd.f32 %v5681, %v5667
    %v5706 = vadd.f32 %v5682, %v5668
    %v5707 = vadd.f32 %v5683, %v5669
    %v5708 = vadd.f32 %v5684, %v5670
    %v5709 = vadd.f32 %v5685, %v5671
    %v5710 = vadd.f32 %v5686, %v5672
    %v5711 = vadd.f32 %v5687, %v5673
    %v5712 = vadd.f32 %v5688, %v5674
    %v5713 = vadd.f32 %v5689, %v5675
    %v5714 = vadd.f32 %v5690, %v5676
    %v5715 = vld [vmem:[%s4985 + $0x18] sm:$0xff]
    %v5716 = vld [vmem:[%s4985 + $0x20] sm:$0xf]
    %v5719 = vperm.slane %v5715, 0
    %v5720 = vperm.slane %v5715, 1
    %v5721 = vperm.slane %v5715, 2
    %v5722 = vperm.slane %v5715, 3
    %v5723 = vperm.slane %v5715, 4
    %v5724 = vperm.slane %v5715, 5
    %v5725 = vperm.slane %v5715, 6
    %v5726 = vperm.slane %v5715, 7
    %v5727 = vperm.slane %v5716, 0
    %v5728 = vperm.slane %v5716, 1
    %v5729 = vperm.slane %v5716, 2
    %v5730 = vperm.slane %v5716, 3
    %v5743 = vmul.f32 %v2629, %v5719
    %v5744 = vmul.f32 %v2630, %v5720
    %v5745 = vmul.f32 %v2631, %v5721
    %v5746 = vmul.f32 %v2632, %v5722
    %v5747 = vmul.f32 %v2633, %v5723
    %v5748 = vmul.f32 %v2634, %v5724
    %v5749 = vmul.f32 %v2635, %v5725
    %v5750 = vmul.f32 %v2636, %v5726
    %v5751 = vmul.f32 %v2637, %v5727
    %v5752 = vmul.f32 %v2638, %v5728
    %v5753 = vmul.f32 %v2639, %v5729
    %v5754 = vmul.f32 %v2640, %v5730
    %v5755 = vadd.f32 %v5703, %v5743
    %v5756 = vadd.f32 %v5704, %v5744
    %v5757 = vadd.f32 %v5705, %v5745
    %v5758 = vadd.f32 %v5706, %v5746
    %v5759 = vadd.f32 %v5707, %v5747
    %v5760 = vadd.f32 %v5708, %v5748
    %v5761 = vadd.f32 %v5709, %v5749
    %v5762 = vadd.f32 %v5710, %v5750
    %v5763 = vadd.f32 %v5711, %v5751
    %v5764 = vadd.f32 %v5712, %v5752
    %v5765 = vadd.f32 %v5713, %v5753
    %v5766 = vadd.f32 %v5714, %v5754
    %v5767 = vld [vmem:[%s5038 + $0x18] sm:$0xff]
    %v5768 = vld [vmem:[%s5038 + $0x20] sm:$0xf]
    %v5771 = vperm.slane %v5767, 0
    %v5772 = vperm.slane %v5767, 1
    %v5773 = vperm.slane %v5767, 2
    %v5774 = vperm.slane %v5767, 3
    %v5775 = vperm.slane %v5767, 4
    %v5776 = vperm.slane %v5767, 5
    %v5777 = vperm.slane %v5767, 6
    %v5778 = vperm.slane %v5767, 7
    %v5779 = vperm.slane %v5768, 0
    %v5780 = vperm.slane %v5768, 1
    %v5781 = vperm.slane %v5768, 2
    %v5782 = vperm.slane %v5768, 3
    %v5795 = vmul.f32 %v2699, %v5771
    %v5796 = vmul.f32 %v2700, %v5772
    %v5797 = vmul.f32 %v2701, %v5773
    %v5798 = vmul.f32 %v2702, %v5774
    %v5799 = vmul.f32 %v2703, %v5775
    %v5800 = vmul.f32 %v2704, %v5776
    %v5801 = vmul.f32 %v2705, %v5777
    %v5802 = vmul.f32 %v2706, %v5778
    %v5803 = vmul.f32 %v2707, %v5779
    %v5804 = vmul.f32 %v2708, %v5780
    %v5805 = vmul.f32 %v2709, %v5781
    %v5806 = vmul.f32 %v2710, %v5782
    %v5807 = vadd.f32 %v5755, %v5795
    %v5808 = vadd.f32 %v5756, %v5796
    %v5809 = vadd.f32 %v5757, %v5797
    %v5810 = vadd.f32 %v5758, %v5798
    %v5811 = vadd.f32 %v5759, %v5799
    %v5812 = vadd.f32 %v5760, %v5800
    %v5813 = vadd.f32 %v5761, %v5801
    %v5814 = vadd.f32 %v5762, %v5802
    %v5815 = vadd.f32 %v5763, %v5803
    %v5816 = vadd.f32 %v5764, %v5804
    %v5817 = vadd.f32 %v5765, %v5805
    %v5818 = vadd.f32 %v5766, %v5806
    %v5819 = vmax.f32 %v5807, 0.0
    %v5820 = vmax.f32 %v5808, 0.0
    %v5821 = vmax.f32 %v5809, 0.0
    %v5822 = vmax.f32 %v5810, 0.0
    %v5823 = vmax.f32 %v5811, 0.0
    %v5824 = vmax.f32 %v5812, 0.0
    %v5825 = vmax.f32 %v5813, 0.0
    %v5826 = vmax.f32 %v5814, 0.0
    %v5827 = vmax.f32 %v5815, 0.0
    %v5828 = vmax.f32 %v5816, 0.0
    %v5829 = vmax.f32 %v5817, 0.0
    %v5830 = vmax.f32 %v5818, 0.0
    %v5831 = vpack.c.bf16 %v5819, %v5819
    %v5832 = vpack.c.bf16 %v5820, %v5820
    %v5833 = vpack.c.bf16 %v5821, %v5821
    %v5834 = vpack.c.bf16 %v5822, %v5822
    %v5835 = vpack.c.bf16 %v5823, %v5823
    %v5836 = vpack.c.bf16 %v5824, %v5824
    %v5837 = vpack.c.bf16 %v5825, %v5825
    %v5838 = vpack.c.bf16 %v5826, %v5826
    %v5839 = vpack.c.bf16 %v5827, %v5827
    %v5840 = vpack.c.bf16 %v5828, %v5828
    %v5841 = vpack.c.bf16 %v5829, %v5829
    %v5842 = vpack.c.bf16 %v5830, %v5830
    %5843 = vmatpush.bf16.msra.mxu0 %v3370
    %5844 = vmatpush.bf16.msra.mxu0 %v3369
    %5845 = vmatpush.bf16.msra.mxu0 %v3368
    %5846 = vmatpush.bf16.msra.mxu0 %v3367
    %5847 = vmatpush.bf16.msra.mxu0 %v3366
    %5848 = vmatpush.bf16.msra.mxu0 %v3365
    %5849 = vmatpush.bf16.msra.mxu0 %v3364
    %5850 = vmatpush.bf16.msra.mxu0 %v3363
    %5851 = vmatmul.bf16.gmra.mxu0 %v5831
    %v5852 = vpop.f32.mrf.mxu0
    %v5853 = vadd.f32 0.0, %v5852
    %v5854 = vpop.f32.mrf.mxu0
    %5855 = vdwg.mxu0
    %5856 = vmatpush.bf16.msra.mxu0 %v3378
    %5857 = vmatpush.bf16.msra.mxu0 %v3377
    %5858 = vmatpush.bf16.msra.mxu0 %v3376
    %5859 = vmatpush.bf16.msra.mxu0 %v3375
    %5860 = vmatpush.bf16.msra.mxu0 %v3374
    %5861 = vmatpush.bf16.msra.mxu0 %v3373
    %5862 = vmatpush.bf16.msra.mxu0 %v3372
    %5863 = vmatpush.bf16.msra.mxu0 %v3371
    %5864 = vmatmul.bf16.gmra.mxu0 %v5832
    %v5865 = vpop.f32.mrf.mxu0
    %v5866 = vadd.f32 %v5853, %v5865
    %v5867 = vpop.f32.mrf.mxu0
    %5868 = vdwg.mxu0
    %5869 = vmatpush.bf16.msra.mxu0 %v3386
    %5870 = vmatpush.bf16.msra.mxu0 %v3385
    %5871 = vmatpush.bf16.msra.mxu0 %v3384
    %5872 = vmatpush.bf16.msra.mxu0 %v3383
    %5873 = vmatpush.bf16.msra.mxu0 %v3382
    %5874 = vmatpush.bf16.msra.mxu0 %v3381
    %5875 = vmatpush.bf16.msra.mxu0 %v3380
    %5876 = vmatpush.bf16.msra.mxu0 %v3379
    %5877 = vmatmul.bf16.gmra.mxu0 %v5833
    %v5878 = vpop.f32.mrf.mxu0
    %v5879 = vadd.f32 %v5866, %v5878
    %v5880 = vpop.f32.mrf.mxu0
    %5881 = vdwg.mxu0
    %5882 = vmatpush.bf16.msra.mxu0 %v3394
    %5883 = vmatpush.bf16.msra.mxu0 %v3393
    %5884 = vmatpush.bf16.msra.mxu0 %v3392
    %5885 = vmatpush.bf16.msra.mxu0 %v3391
    %5886 = vmatpush.bf16.msra.mxu0 %v3390
    %5887 = vmatpush.bf16.msra.mxu0 %v3389
    %5888 = vmatpush.bf16.msra.mxu0 %v3388
    %5889 = vmatpush.bf16.msra.mxu0 %v3387
    %5890 = vmatmul.bf16.gmra.mxu0 %v5834
    %v5891 = vpop.f32.mrf.mxu0
    %v5892 = vadd.f32 %v5879, %v5891
    %v5893 = vpop.f32.mrf.mxu0
    %5894 = vdwg.mxu0
    %5895 = vmatpush.bf16.msra.mxu0 %v3402
    %5896 = vmatpush.bf16.msra.mxu0 %v3401
    %5897 = vmatpush.bf16.msra.mxu0 %v3400
    %5898 = vmatpush.bf16.msra.mxu0 %v3399
    %5899 = vmatpush.bf16.msra.mxu0 %v3398
    %5900 = vmatpush.bf16.msra.mxu0 %v3397
    %5901 = vmatpush.bf16.msra.mxu0 %v3396
    %5902 = vmatpush.bf16.msra.mxu0 %v3395
    %5903 = vmatmul.bf16.gmra.mxu0 %v5835
    %v5904 = vpop.f32.mrf.mxu0
    %v5905 = vadd.f32 %v5892, %v5904
    %v5906 = vpop.f32.mrf.mxu0
    %5907 = vdwg.mxu0
    %5908 = vmatpush.bf16.msra.mxu0 %v3410
    %5909 = vmatpush.bf16.msra.mxu0 %v3409
    %5910 = vmatpush.bf16.msra.mxu0 %v3408
    %5911 = vmatpush.bf16.msra.mxu0 %v3407
    %5912 = vmatpush.bf16.msra.mxu0 %v3406
    %5913 = vmatpush.bf16.msra.mxu0 %v3405
    %5914 = vmatpush.bf16.msra.mxu0 %v3404
    %5915 = vmatpush.bf16.msra.mxu0 %v3403
    %5916 = vmatmul.bf16.gmra.mxu0 %v5836
    %v5917 = vpop.f32.mrf.mxu0
    %v5918 = vadd.f32 %v5905, %v5917
    %v5919 = vpop.f32.mrf.mxu0
    %5920 = vdwg.mxu0
    %5921 = vmatpush.bf16.msra.mxu0 %v3418
    %5922 = vmatpush.bf16.msra.mxu0 %v3417
    %5923 = vmatpush.bf16.msra.mxu0 %v3416
    %5924 = vmatpush.bf16.msra.mxu0 %v3415
    %5925 = vmatpush.bf16.msra.mxu0 %v3414
    %5926 = vmatpush.bf16.msra.mxu0 %v3413
    %5927 = vmatpush.bf16.msra.mxu0 %v3412
    %5928 = vmatpush.bf16.msra.mxu0 %v3411
    %5929 = vmatmul.bf16.gmra.mxu0 %v5837
    %v5930 = vpop.f32.mrf.mxu0
    %v5931 = vadd.f32 %v5918, %v5930
    %v5932 = vpop.f32.mrf.mxu0
    %5933 = vdwg.mxu0
    %5934 = vmatpush.bf16.msra.mxu0 %v3426
    %5935 = vmatpush.bf16.msra.mxu0 %v3425
    %5936 = vmatpush.bf16.msra.mxu0 %v3424
    %5937 = vmatpush.bf16.msra.mxu0 %v3423
    %5938 = vmatpush.bf16.msra.mxu0 %v3422
    %5939 = vmatpush.bf16.msra.mxu0 %v3421
    %5940 = vmatpush.bf16.msra.mxu0 %v3420
    %5941 = vmatpush.bf16.msra.mxu0 %v3419
    %5942 = vmatmul.bf16.gmra.mxu0 %v5838
    %v5943 = vpop.f32.mrf.mxu0
    %v5944 = vadd.f32 %v5931, %v5943
    %v5945 = vpop.f32.mrf.mxu0
    %5946 = vdwg.mxu0
    %5947 = vmatpush.bf16.msra.mxu0 %v3434
    %5948 = vmatpush.bf16.msra.mxu0 %v3433
    %5949 = vmatpush.bf16.msra.mxu0 %v3432
    %5950 = vmatpush.bf16.msra.mxu0 %v3431
    %5951 = vmatpush.bf16.msra.mxu0 %v3430
    %5952 = vmatpush.bf16.msra.mxu0 %v3429
    %5953 = vmatpush.bf16.msra.mxu0 %v3428
    %5954 = vmatpush.bf16.msra.mxu0 %v3427
    %5955 = vmatmul.bf16.gmra.mxu0 %v5839
    %v5956 = vpop.f32.mrf.mxu0
    %v5957 = vadd.f32 %v5944, %v5956
    %v5958 = vpop.f32.mrf.mxu0
    %5959 = vdwg.mxu0
    %5960 = vmatpush.bf16.msra.mxu0 %v3442
    %5961 = vmatpush.bf16.msra.mxu0 %v3441
    %5962 = vmatpush.bf16.msra.mxu0 %v3440
    %5963 = vmatpush.bf16.msra.mxu0 %v3439
    %5964 = vmatpush.bf16.msra.mxu0 %v3438
    %5965 = vmatpush.bf16.msra.mxu0 %v3437
    %5966 = vmatpush.bf16.msra.mxu0 %v3436
    %5967 = vmatpush.bf16.msra.mxu0 %v3435
    %5968 = vmatmul.bf16.gmra.mxu0 %v5840
    %v5969 = vpop.f32.mrf.mxu0
    %v5970 = vadd.f32 %v5957, %v5969
    %v5971 = vpop.f32.mrf.mxu0
    %5972 = vdwg.mxu0
    %5973 = vmatpush.bf16.msra.mxu0 %v3450
    %5974 = vmatpush.bf16.msra.mxu0 %v3449
    %5975 = vmatpush.bf16.msra.mxu0 %v3448
    %5976 = vmatpush.bf16.msra.mxu0 %v3447
    %5977 = vmatpush.bf16.msra.mxu0 %v3446
    %5978 = vmatpush.bf16.msra.mxu0 %v3445
    %5979 = vmatpush.bf16.msra.mxu0 %v3444
    %5980 = vmatpush.bf16.msra.mxu0 %v3443
    %5981 = vmatmul.bf16.gmra.mxu0 %v5841
    %v5982 = vpop.f32.mrf.mxu0
    %v5983 = vadd.f32 %v5970, %v5982
    %v5984 = vpop.f32.mrf.mxu0
    %5985 = vdwg.mxu0
    %5986 = vmatpush.bf16.msra.mxu0 %v3458
    %5987 = vmatpush.bf16.msra.mxu0 %v3457
    %5988 = vmatpush.bf16.msra.mxu0 %v3456
    %5989 = vmatpush.bf16.msra.mxu0 %v3455
    %5990 = vmatpush.bf16.msra.mxu0 %v3454
    %5991 = vmatpush.bf16.msra.mxu0 %v3453
    %5992 = vmatpush.bf16.msra.mxu0 %v3452
    %5993 = vmatpush.bf16.msra.mxu0 %v3451
    %5994 = vmatmul.bf16.gmra.mxu0 %v5842
    %v5995 = vpop.f32.mrf.mxu0
    %v5996 = vadd.f32 %v5983, %v5995
    %v5997 = vpop.f32.mrf.mxu0
    %5998 = vdwg.mxu0
    %v5999 = vadd.f32 %v5632, %v5996
    %v6000 = vld [vmem:[#allocation7 + $0x24] sm:$0xff]
    %v6001 = vld [vmem:[#allocation7 + $0x2c] sm:$0xf]
    %v6002 = vld [vmem:[#allocation4 + $0x24] sm:$0xff]
    %v6003 = vld [vmem:[#allocation4 + $0x2c] sm:$0xf]
    %v6006 = vperm.slane %v6002, 0
    %v6007 = vperm.slane %v6002, 1
    %v6008 = vperm.slane %v6002, 2
    %v6009 = vperm.slane %v6002, 3
    %v6010 = vperm.slane %v6002, 4
    %v6011 = vperm.slane %v6002, 5
    %v6012 = vperm.slane %v6002, 6
    %v6013 = vperm.slane %v6002, 7
    %v6014 = vperm.slane %v6003, 0
    %v6015 = vperm.slane %v6003, 1
    %v6016 = vperm.slane %v6003, 2
    %v6017 = vperm.slane %v6003, 3
    %v6030 = vmul.f32 %v3720, %v6006
    %v6031 = vmul.f32 %v3721, %v6007
    %v6032 = vmul.f32 %v3722, %v6008
    %v6033 = vmul.f32 %v3723, %v6009
    %v6034 = vmul.f32 %v3724, %v6010
    %v6035 = vmul.f32 %v3725, %v6011
    %v6036 = vmul.f32 %v3726, %v6012
    %v6037 = vmul.f32 %v3727, %v6013
    %v6038 = vmul.f32 %v3728, %v6014
    %v6039 = vmul.f32 %v3729, %v6015
    %v6040 = vmul.f32 %v3730, %v6016
    %v6041 = vmul.f32 %v3731, %v6017
    %v6044 = vperm.slane %v6000, 0
    %v6045 = vperm.slane %v6000, 1
    %v6046 = vperm.slane %v6000, 2
    %v6047 = vperm.slane %v6000, 3
    %v6048 = vperm.slane %v6000, 4
    %v6049 = vperm.slane %v6000, 5
    %v6050 = vperm.slane %v6000, 6
    %v6051 = vperm.slane %v6000, 7
    %v6052 = vperm.slane %v6001, 0
    %v6053 = vperm.slane %v6001, 1
    %v6054 = vperm.slane %v6001, 2
    %v6055 = vperm.slane %v6001, 3
    %v6068 = vadd.f32 %v6044, %v6030
    %v6069 = vadd.f32 %v6045, %v6031
    %v6070 = vadd.f32 %v6046, %v6032
    %v6071 = vadd.f32 %v6047, %v6033
    %v6072 = vadd.f32 %v6048, %v6034
    %v6073 = vadd.f32 %v6049, %v6035
    %v6074 = vadd.f32 %v6050, %v6036
    %v6075 = vadd.f32 %v6051, %v6037
    %v6076 = vadd.f32 %v6052, %v6038
    %v6077 = vadd.f32 %v6053, %v6039
    %v6078 = vadd.f32 %v6054, %v6040
    %v6079 = vadd.f32 %v6055, %v6041
    %v6080 = vld [vmem:[%s4985 + $0x24] sm:$0xff]
    %v6081 = vld [vmem:[%s4985 + $0x2c] sm:$0xf]
    %v6084 = vperm.slane %v6080, 0
    %v6085 = vperm.slane %v6080, 1
    %v6086 = vperm.slane %v6080, 2
    %v6087 = vperm.slane %v6080, 3
    %v6088 = vperm.slane %v6080, 4
    %v6089 = vperm.slane %v6080, 5
    %v6090 = vperm.slane %v6080, 6
    %v6091 = vperm.slane %v6080, 7
    %v6092 = vperm.slane %v6081, 0
    %v6093 = vperm.slane %v6081, 1
    %v6094 = vperm.slane %v6081, 2
    %v6095 = vperm.slane %v6081, 3
    %v6108 = vmul.f32 %v3816, %v6084
    %v6109 = vmul.f32 %v3817, %v6085
    %v6110 = vmul.f32 %v3818, %v6086
    %v6111 = vmul.f32 %v3819, %v6087
    %v6112 = vmul.f32 %v3820, %v6088
    %v6113 = vmul.f32 %v3821, %v6089
    %v6114 = vmul.f32 %v3822, %v6090
    %v6115 = vmul.f32 %v3823, %v6091
    %v6116 = vmul.f32 %v3824, %v6092
    %v6117 = vmul.f32 %v3825, %v6093
    %v6118 = vmul.f32 %v3826, %v6094
    %v6119 = vmul.f32 %v3827, %v6095
    %v6120 = vadd.f32 %v6068, %v6108
    %v6121 = vadd.f32 %v6069, %v6109
    %v6122 = vadd.f32 %v6070, %v6110
    %v6123 = vadd.f32 %v6071, %v6111
    %v6124 = vadd.f32 %v6072, %v6112
    %v6125 = vadd.f32 %v6073, %v6113
    %v6126 = vadd.f32 %v6074, %v6114
    %v6127 = vadd.f32 %v6075, %v6115
    %v6128 = vadd.f32 %v6076, %v6116
    %v6129 = vadd.f32 %v6077, %v6117
    %v6130 = vadd.f32 %v6078, %v6118
    %v6131 = vadd.f32 %v6079, %v6119
    %v6132 = vld [vmem:[%s5038 + $0x24] sm:$0xff]
    %v6133 = vld [vmem:[%s5038 + $0x2c] sm:$0xf]
    %v6136 = vperm.slane %v6132, 0
    %v6137 = vperm.slane %v6132, 1
    %v6138 = vperm.slane %v6132, 2
    %v6139 = vperm.slane %v6132, 3
    %v6140 = vperm.slane %v6132, 4
    %v6141 = vperm.slane %v6132, 5
    %v6142 = vperm.slane %v6132, 6
    %v6143 = vperm.slane %v6132, 7
    %v6144 = vperm.slane %v6133, 0
    %v6145 = vperm.slane %v6133, 1
    %v6146 = vperm.slane %v6133, 2
    %v6147 = vperm.slane %v6133, 3
    %v6160 = vmul.f32 %v3886, %v6136
    %v6161 = vmul.f32 %v3887, %v6137
    %v6162 = vmul.f32 %v3888, %v6138
    %v6163 = vmul.f32 %v3889, %v6139
    %v6164 = vmul.f32 %v3890, %v6140
    %v6165 = vmul.f32 %v3891, %v6141
    %v6166 = vmul.f32 %v3892, %v6142
    %v6167 = vmul.f32 %v3893, %v6143
    %v6168 = vmul.f32 %v3894, %v6144
    %v6169 = vmul.f32 %v3895, %v6145
    %v6170 = vmul.f32 %v3896, %v6146
    %v6171 = vmul.f32 %v3897, %v6147
    %v6172 = vadd.f32 %v6120, %v6160
    %v6173 = vadd.f32 %v6121, %v6161
    %v6174 = vadd.f32 %v6122, %v6162
    %v6175 = vadd.f32 %v6123, %v6163
    %v6176 = vadd.f32 %v6124, %v6164
    %v6177 = vadd.f32 %v6125, %v6165
    %v6178 = vadd.f32 %v6126, %v6166
    %v6179 = vadd.f32 %v6127, %v6167
    %v6180 = vadd.f32 %v6128, %v6168
    %v6181 = vadd.f32 %v6129, %v6169
    %v6182 = vadd.f32 %v6130, %v6170
    %v6183 = vadd.f32 %v6131, %v6171
    %v6184 = vmax.f32 %v6172, 0.0
    %v6185 = vmax.f32 %v6173, 0.0
    %v6186 = vmax.f32 %v6174, 0.0
    %v6187 = vmax.f32 %v6175, 0.0
    %v6188 = vmax.f32 %v6176, 0.0
    %v6189 = vmax.f32 %v6177, 0.0
    %v6190 = vmax.f32 %v6178, 0.0
    %v6191 = vmax.f32 %v6179, 0.0
    %v6192 = vmax.f32 %v6180, 0.0
    %v6193 = vmax.f32 %v6181, 0.0
    %v6194 = vmax.f32 %v6182, 0.0
    %v6195 = vmax.f32 %v6183, 0.0
    %v6196 = vpack.c.bf16 %v6184, %v6184
    %v6197 = vpack.c.bf16 %v6185, %v6185
    %v6198 = vpack.c.bf16 %v6186, %v6186
    %v6199 = vpack.c.bf16 %v6187, %v6187
    %v6200 = vpack.c.bf16 %v6188, %v6188
    %v6201 = vpack.c.bf16 %v6189, %v6189
    %v6202 = vpack.c.bf16 %v6190, %v6190
    %v6203 = vpack.c.bf16 %v6191, %v6191
    %v6204 = vpack.c.bf16 %v6192, %v6192
    %v6205 = vpack.c.bf16 %v6193, %v6193
    %v6206 = vpack.c.bf16 %v6194, %v6194
    %v6207 = vpack.c.bf16 %v6195, %v6195
    %6208 = vmatpush.bf16.msra.mxu0 %v4557
    %6209 = vmatpush.bf16.msra.mxu0 %v4556
    %6210 = vmatpush.bf16.msra.mxu0 %v4555
    %6211 = vmatpush.bf16.msra.mxu0 %v4554
    %6212 = vmatpush.bf16.msra.mxu0 %v4553
    %6213 = vmatpush.bf16.msra.mxu0 %v4552
    %6214 = vmatpush.bf16.msra.mxu0 %v4551
    %6215 = vmatpush.bf16.msra.mxu0 %v4550
    %6216 = vmatmul.bf16.gmra.mxu0 %v6196
    %v6217 = vpop.f32.mrf.mxu0
    %v6218 = vadd.f32 0.0, %v6217
    %v6219 = vpop.f32.mrf.mxu0
    %6220 = vdwg.mxu0
    %6221 = vmatpush.bf16.msra.mxu0 %v4565
    %6222 = vmatpush.bf16.msra.mxu0 %v4564
    %6223 = vmatpush.bf16.msra.mxu0 %v4563
    %6224 = vmatpush.bf16.msra.mxu0 %v4562
    %6225 = vmatpush.bf16.msra.mxu0 %v4561
    %6226 = vmatpush.bf16.msra.mxu0 %v4560
    %6227 = vmatpush.bf16.msra.mxu0 %v4559
    %6228 = vmatpush.bf16.msra.mxu0 %v4558
    %6229 = vmatmul.bf16.gmra.mxu0 %v6197
    %v6230 = vpop.f32.mrf.mxu0
    %v6231 = vadd.f32 %v6218, %v6230
    %v6232 = vpop.f32.mrf.mxu0
    %6233 = vdwg.mxu0
    %6234 = vmatpush.bf16.msra.mxu0 %v4573
    %6235 = vmatpush.bf16.msra.mxu0 %v4572
    %6236 = vmatpush.bf16.msra.mxu0 %v4571
    %6237 = vmatpush.bf16.msra.mxu0 %v4570
    %6238 = vmatpush.bf16.msra.mxu0 %v4569
    %6239 = vmatpush.bf16.msra.mxu0 %v4568
    %6240 = vmatpush.bf16.msra.mxu0 %v4567
    %6241 = vmatpush.bf16.msra.mxu0 %v4566
    %6242 = vmatmul.bf16.gmra.mxu0 %v6198
    %v6243 = vpop.f32.mrf.mxu0
    %v6244 = vadd.f32 %v6231, %v6243
    %v6245 = vpop.f32.mrf.mxu0
    %6246 = vdwg.mxu0
    %6247 = vmatpush.bf16.msra.mxu0 %v4581
    %6248 = vmatpush.bf16.msra.mxu0 %v4580
    %6249 = vmatpush.bf16.msra.mxu0 %v4579
    %6250 = vmatpush.bf16.msra.mxu0 %v4578
    %6251 = vmatpush.bf16.msra.mxu0 %v4577
    %6252 = vmatpush.bf16.msra.mxu0 %v4576
    %6253 = vmatpush.bf16.msra.mxu0 %v4575
    %6254 = vmatpush.bf16.msra.mxu0 %v4574
    %6255 = vmatmul.bf16.gmra.mxu0 %v6199
    %v6256 = vpop.f32.mrf.mxu0
    %v6257 = vadd.f32 %v6244, %v6256
    %v6258 = vpop.f32.mrf.mxu0
    %6259 = vdwg.mxu0
    %6260 = vmatpush.bf16.msra.mxu0 %v4589
    %6261 = vmatpush.bf16.msra.mxu0 %v4588
    %6262 = vmatpush.bf16.msra.mxu0 %v4587
    %6263 = vmatpush.bf16.msra.mxu0 %v4586
    %6264 = vmatpush.bf16.msra.mxu0 %v4585
    %6265 = vmatpush.bf16.msra.mxu0 %v4584
    %6266 = vmatpush.bf16.msra.mxu0 %v4583
    %6267 = vmatpush.bf16.msra.mxu0 %v4582
    %6268 = vmatmul.bf16.gmra.mxu0 %v6200
    %v6269 = vpop.f32.mrf.mxu0
    %v6270 = vadd.f32 %v6257, %v6269
    %v6271 = vpop.f32.mrf.mxu0
    %6272 = vdwg.mxu0
    %6273 = vmatpush.bf16.msra.mxu0 %v4597
    %6274 = vmatpush.bf16.msra.mxu0 %v4596
    %6275 = vmatpush.bf16.msra.mxu0 %v4595
    %6276 = vmatpush.bf16.msra.mxu0 %v4594
    %6277 = vmatpush.bf16.msra.mxu0 %v4593
    %6278 = vmatpush.bf16.msra.mxu0 %v4592
    %6279 = vmatpush.bf16.msra.mxu0 %v4591
    %6280 = vmatpush.bf16.msra.mxu0 %v4590
    %6281 = vmatmul.bf16.gmra.mxu0 %v6201
    %v6282 = vpop.f32.mrf.mxu0
    %v6283 = vadd.f32 %v6270, %v6282
    %v6284 = vpop.f32.mrf.mxu0
    %6285 = vdwg.mxu0
    %6286 = vmatpush.bf16.msra.mxu0 %v4605
    %6287 = vmatpush.bf16.msra.mxu0 %v4604
    %6288 = vmatpush.bf16.msra.mxu0 %v4603
    %6289 = vmatpush.bf16.msra.mxu0 %v4602
    %6290 = vmatpush.bf16.msra.mxu0 %v4601
    %6291 = vmatpush.bf16.msra.mxu0 %v4600
    %6292 = vmatpush.bf16.msra.mxu0 %v4599
    %6293 = vmatpush.bf16.msra.mxu0 %v4598
    %6294 = vmatmul.bf16.gmra.mxu0 %v6202
    %v6295 = vpop.f32.mrf.mxu0
    %v6296 = vadd.f32 %v6283, %v6295
    %v6297 = vpop.f32.mrf.mxu0
    %6298 = vdwg.mxu0
    %6299 = vmatpush.bf16.msra.mxu0 %v4613
    %6300 = vmatpush.bf16.msra.mxu0 %v4612
    %6301 = vmatpush.bf16.msra.mxu0 %v4611
    %6302 = vmatpush.bf16.msra.mxu0 %v4610
    %6303 = vmatpush.bf16.msra.mxu0 %v4609
    %6304 = vmatpush.bf16.msra.mxu0 %v4608
    %6305 = vmatpush.bf16.msra.mxu0 %v4607
    %6306 = vmatpush.bf16.msra.mxu0 %v4606
    %6307 = vmatmul.bf16.gmra.mxu0 %v6203
    %v6308 = vpop.f32.mrf.mxu0
    %v6309 = vadd.f32 %v6296, %v6308
    %v6310 = vpop.f32.mrf.mxu0
    %6311 = vdwg.mxu0
    %6312 = vmatpush.bf16.msra.mxu0 %v4621
    %6313 = vmatpush.bf16.msra.mxu0 %v4620
    %6314 = vmatpush.bf16.msra.mxu0 %v4619
    %6315 = vmatpush.bf16.msra.mxu0 %v4618
    %6316 = vmatpush.bf16.msra.mxu0 %v4617
    %6317 = vmatpush.bf16.msra.mxu0 %v4616
    %6318 = vmatpush.bf16.msra.mxu0 %v4615
    %6319 = vmatpush.bf16.msra.mxu0 %v4614
    %6320 = vmatmul.bf16.gmra.mxu0 %v6204
    %v6321 = vpop.f32.mrf.mxu0
    %v6322 = vadd.f32 %v6309, %v6321
    %v6323 = vpop.f32.mrf.mxu0
    %6324 = vdwg.mxu0
    %6325 = vmatpush.bf16.msra.mxu0 %v4629
    %6326 = vmatpush.bf16.msra.mxu0 %v4628
    %6327 = vmatpush.bf16.msra.mxu0 %v4627
    %6328 = vmatpush.bf16.msra.mxu0 %v4626
    %6329 = vmatpush.bf16.msra.mxu0 %v4625
    %6330 = vmatpush.bf16.msra.mxu0 %v4624
    %6331 = vmatpush.bf16.msra.mxu0 %v4623
    %6332 = vmatpush.bf16.msra.mxu0 %v4622
    %6333 = vmatmul.bf16.gmra.mxu0 %v6205
    %v6334 = vpop.f32.mrf.mxu0
    %v6335 = vadd.f32 %v6322, %v6334
    %v6336 = vpop.f32.mrf.mxu0
    %6337 = vdwg.mxu0
    %6338 = vmatpush.bf16.msra.mxu0 %v4637
    %6339 = vmatpush.bf16.msra.mxu0 %v4636
    %6340 = vmatpush.bf16.msra.mxu0 %v4635
    %6341 = vmatpush.bf16.msra.mxu0 %v4634
    %6342 = vmatpush.bf16.msra.mxu0 %v4633
    %6343 = vmatpush.bf16.msra.mxu0 %v4632
    %6344 = vmatpush.bf16.msra.mxu0 %v4631
    %6345 = vmatpush.bf16.msra.mxu0 %v4630
    %6346 = vmatmul.bf16.gmra.mxu0 %v6206
    %v6347 = vpop.f32.mrf.mxu0
    %v6348 = vadd.f32 %v6335, %v6347
    %v6349 = vpop.f32.mrf.mxu0
    %6350 = vdwg.mxu0
    %6351 = vmatpush.bf16.msra.mxu0 %v4645
    %6352 = vmatpush.bf16.msra.mxu0 %v4644
    %6353 = vmatpush.bf16.msra.mxu0 %v4643
    %6354 = vmatpush.bf16.msra.mxu0 %v4642
    %6355 = vmatpush.bf16.msra.mxu0 %v4641
    %6356 = vmatpush.bf16.msra.mxu0 %v4640
    %6357 = vmatpush.bf16.msra.mxu0 %v4639
    %6358 = vmatpush.bf16.msra.mxu0 %v4638
    %6359 = vmatmul.bf16.gmra.mxu0 %v6207
    %v6360 = vpop.f32.mrf.mxu0
    %v6361 = vadd.f32 %v6348, %v6360
    %v6362 = vpop.f32.mrf.mxu0
    %6363 = vdwg.mxu0
    %v6364 = vadd.f32 %v5999, %v6361
    %v6365 = vadd.f32 %v6364, %v4901
    %v6366 = vmax.f32 %v6365, 0.0
    %v6367 = vpack.c.bf16 %v4904, %v4904
    %v6368 = vld [vmem:[#allocation12] sm:$0xf]
    %v6369 = vld [vmem:[#allocation12 + $0x4] sm:$0xf]
    %v6370 = vld [vmem:[#allocation12 + $0x8] sm:$0xf]
    %v6371 = vld [vmem:[#allocation12 + $0xc] sm:$0xf]
    %v6372 = vld [vmem:[#allocation12 + $0x10] sm:$0xf]
    %v6373 = vld [vmem:[#allocation12 + $0x14] sm:$0xf]
    %v6374 = vld [vmem:[#allocation12 + $0x18] sm:$0xf]
    %v6375 = vld [vmem:[#allocation12 + $0x1c] sm:$0xf]
    %v6376 = vld [vmem:[#allocation12 + $0x20] sm:$0xf]
    %v6377 = vld [vmem:[#allocation12 + $0x24] sm:$0xf]
    %v6378 = vld [vmem:[#allocation12 + $0x28] sm:$0xf]
    %v6379 = vld [vmem:[#allocation12 + $0x2c] sm:$0xf]
    %v6380 = vld [vmem:[#allocation12 + $0x30] sm:$0xf]
    %v6381 = vld [vmem:[#allocation12 + $0x34] sm:$0xf]
    %v6382 = vld [vmem:[#allocation12 + $0x38] sm:$0xf]
    %v6383 = vld [vmem:[#allocation12 + $0x3c] sm:$0xf]
    %v6384 = vld [vmem:[#allocation13] sm:$0x1]
    %v6386 = vperm.slane %v6384, 0
    %v6404 = vunpack.c.l.b16 %v6368
    %v6405 = vunpack.c.l.b16 %v6369
    %v6406 = vunpack.c.l.b16 %v6370
    %v6407 = vunpack.c.l.b16 %v6371
    %v6408 = vunpack.c.l.b16 %v6372
    %v6409 = vunpack.c.l.b16 %v6373
    %v6410 = vunpack.c.l.b16 %v6374
    %v6411 = vunpack.c.l.b16 %v6375
    %v6412 = vunpack.c.l.b16 %v6376
    %v6413 = vunpack.c.l.b16 %v6377
    %v6414 = vunpack.c.l.b16 %v6378
    %v6415 = vunpack.c.l.b16 %v6379
    %v6416 = vunpack.c.l.b16 %v6380
    %v6417 = vunpack.c.l.b16 %v6381
    %v6418 = vunpack.c.l.b16 %v6382
    %v6419 = vunpack.c.l.b16 %v6383
    %v6420 = vpack.c.b16 %v6405, %v6404
    %v6421 = vpack.c.b16 %v6407, %v6406
    %v6422 = vpack.c.b16 %v6409, %v6408
    %v6423 = vpack.c.b16 %v6411, %v6410
    %v6424 = vpack.c.b16 %v6413, %v6412
    %v6425 = vpack.c.b16 %v6415, %v6414
    %v6426 = vpack.c.b16 %v6417, %v6416
    %v6427 = vpack.c.b16 %v6419, %v6418
    %6436 = vmatpush.bf16.msra.mxu0 %v6427
    %6437 = vmatpush.bf16.msra.mxu0 %v6426
    %6438 = vmatpush.bf16.msra.mxu0 %v6425
    %6439 = vmatpush.bf16.msra.mxu0 %v6424
    %6440 = vmatpush.bf16.msra.mxu0 %v6423
    %6441 = vmatpush.bf16.msra.mxu0 %v6422
    %6442 = vmatpush.bf16.msra.mxu0 %v6421
    %6443 = vmatpush.bf16.msra.mxu0 %v6420
    %6444 = vmatmul.bf16.gmra.mxu0 %v6367
    %v6445 = vpop.f32.mrf.mxu0
    %v6446 = vadd.f32 %v6386, %v6445
    %v6447 = vpop.f32.mrf.mxu0
    %6448 = vdwg.mxu0
    %v6449 = vpack.c.bf16 %v6366, %v6366
    %6450 = vmatpush.bf16.msra.mxu0 %v6427
    %6451 = vmatpush.bf16.msra.mxu0 %v6426
    %6452 = vmatpush.bf16.msra.mxu0 %v6425
    %6453 = vmatpush.bf16.msra.mxu0 %v6424
    %6454 = vmatpush.bf16.msra.mxu0 %v6423
    %6455 = vmatpush.bf16.msra.mxu0 %v6422
    %6456 = vmatpush.bf16.msra.mxu0 %v6421
    %6457 = vmatpush.bf16.msra.mxu0 %v6420
    %6458 = vmatmul.bf16.gmra.mxu0 %v6449
    %v6459 = vpop.f32.mrf.mxu0
    %v6460 = vadd.f32 %v6386, %v6459
    %v6461 = vpop.f32.mrf.mxu0
    %6462 = vdwg.mxu0
    %v6463 = vlaneseq
    %v6464 = vand.u32 %v6463, 127
    %vm6465 = vcmp.lt.s32.totalorder %v6464, 4
    %v6466 = vxor.u32 %v6446, 2147483648
    %v6467 = vmul.f32 %v6466, 1.442695
    %v6468 = vpow.pop %v6467
    %v6469 = vadd.f32 %v6468, 1.0
    %v6470 = vrcp.pop %v6469
    %v6471 = vmul.f32 %v6469, %v6470
    %v6472 = vsub.f32 1.0, %v6471
    %v6473 = vmul.f32 %v6470, %v6472
    %v6474 = vadd.f32 %v6470, %v6473
    %vm6475 = vweird.f32 %v6469
    %vm6476 = vweird.f32 %v6470
    %vm6477 = vmor %vm6475, %vm6476
    %v6478 = vsel %vm6477, %v6470, %v6474
    %v6479 = vand.u32 2147483647, %v6469
    %vm6480 = vcmp.eq.f32.partialorder %v6479, 8.507059e+37
    %v6481 = vand.u32 %v6469, 2147483648
    %v6482 = vor.u32 1.1754944e-38, %v6481
    %v6483 = vsel %vm6480, %v6482, %v6478
    %v6484 = vmul.f32 1.0, %v6483
    %v6485 = vsel %vm6465, %v6484, %v6446
    %6486 = vst [vmem:[%s9] sm:$0xff] %v6485
    %s6487 = scalar_lea.vmem %s9, 8
    %6488 = vst [vmem:[%s6487] sm:$0xff] %v6460
    // Predicated region
    $region70: #{_lambda_.1} parent=1 // pred_check
      _
    $region71: #{_lambda_.1} parent=1 // pred_check_branch
      %6490 = sbr.rel (0) target = $region73
    $region72: #{_lambda_.1} parent=1 // pred_region
      _
    $region73: #{_lambda_.1} parent=1 // pred_fallthru
      _
    // Predicated region
    $region74: #{_lambda_.1} parent=1 // pred_check
      _
    $region75: #{_lambda_.1} parent=1 // pred_check_branch
      %6492 = sbr.rel (0) target = $region77
    $region76: #{_lambda_.1} parent=1 // pred_region
      _
    $region77: #{_lambda_.1} parent=1 // pred_fallthru
      _
    %6493 = vsyncpa [#allocation3], 1
    %6494 = vsyncpa [#allocation5], 1
    %6495 = vsyncpa [#allocation8], 1
    %6496 = vsyncpa [#allocation11], 1
    %6497 = vsyncpa [#allocation14], 1

</llo_original>
